<compile_context>
chip_gen: v7x
topology: tpu7x:2x2x1
jax: 0.10.0
libtpu: 0.0.40
codegen_flags: <defaults>
</compile_context>

<pallas_src>
import functools

import jax
import jax.numpy as jnp
from jax.experimental import pallas as pl
from jax.experimental.pallas import tpu as pltpu

LANE = 128


def _round_up(x, m):
    return ((x + m - 1) // m) * m


def rnn_seq_kernel(x_ref,       # (T, Hp)      f32 embedded inputs (all steps)
                   w_ih_ref,    # (L, Hp, 3Hp) gate-fused input->hidden [r|z|n]
                   w_hh_ref,    # (L, Hp, 3Hp) gate-fused hidden->hidden [r|z|n]
                   b_ih_ref,    # (L, 1, 3Hp)  f32
                   b_hh_ref,    # (L, 1, 3Hp)  f32
                   w_dec_ref,   # (Hp, Op)
                   b_dec_ref,   # (1, Op)      f32
                   h0_ref,      # (L, 1, Hp)   f32 initial hidden
                   logits_ref,  # (T, Op)      f32 all-step logits
                   h_out_ref,   # (L, 1, Hp)   f32 final hidden
                   x_buf):      # VMEM scratch (T, Hp) f32: current layer's inputs
    n_layers = h0_ref.shape[0]
    hp = h0_ref.shape[-1]
    T = x_ref.shape[0]
    wdt = w_ih_ref.dtype          # matmul operand dtype (bf16 or f32)

    x_buf[...] = x_ref[...]       # layer 0 input = embedded tokens

    for l in range(n_layers):     # L is small & static
        # Batched-over-time input projection: one full MXU tile per layer.
        gi_all = (jnp.dot(x_buf[...].astype(wdt), w_ih_ref[l],
                          preferred_element_type=jnp.float32)
                  + b_ih_ref[l])                                  # (T, 3Hp)

        h = h0_ref[l]                                             # (1, Hp)
        for t in range(T):        # serial recurrence (only h-dependent path)
            gi = gi_all[t:t + 1, :]                               # (1, 3Hp)
            gh = (jnp.dot(h.astype(wdt), w_hh_ref[l],
                          preferred_element_type=jnp.float32)
                  + b_hh_ref[l])                                  # (1, 3Hp)

            # Fused r/z sigmoid on one (1, 2*Hp) slab; tanh only on n slice.
            rz = jax.nn.sigmoid(gi[:, :2 * hp] + gh[:, :2 * hp])
            r = rz[:, :hp]
            z = rz[:, hp:]
            n = jnp.tanh(gi[:, 2 * hp:] + r * gh[:, 2 * hp:])
            h = (1.0 - z) * n + z * h                             # (1, Hp)

            x_buf[pl.ds(t, 1), :] = h          # next layer's input at time t
        h_out_ref[l] = h                       # final hidden of this layer

    # Decoder hoisted out of the recurrence: one (T,Hp)@(Hp,Op) matmul,
    # lane/sublane-dense (T,Op) store.
    logits_ref[...] = (jnp.dot(x_buf[...].astype(wdt), w_dec_ref[...],
                               preferred_element_type=jnp.float32)
                       + b_dec_ref[...])


def pack_params(emb, w_ih, w_hh, b_ih, b_hh, w_dec, b_dec,
                weight_dtype=jnp.bfloat16):
    """Re-pack parameters: gate-fused, lane-dense (128-padded); weights in
    `weight_dtype` (bf16 by default), biases/embedding in f32."""
    V, H = emb.shape
    L = w_ih.shape[0]
    O = w_dec.shape[1]
    Hp = _round_up(H, LANE)
    Op = _round_up(O, LANE)

    emb_p = jnp.zeros((V, Hp), jnp.float32).at[:, :H].set(emb)

    w_ih_p = jnp.zeros((L, Hp, 3 * Hp), jnp.float32)
    w_hh_p = jnp.zeros((L, Hp, 3 * Hp), jnp.float32)
    b_ih_p = jnp.zeros((L, 1, 3 * Hp), jnp.float32)
    b_hh_p = jnp.zeros((L, 1, 3 * Hp), jnp.float32)
    for g in range(3):                         # gate order r, z, n (PyTorch)
        w_ih_p = w_ih_p.at[:, :H, g * Hp:g * Hp + H].set(w_ih[:, g])
        w_hh_p = w_hh_p.at[:, :H, g * Hp:g * Hp + H].set(w_hh[:, g])
        b_ih_p = b_ih_p.at[:, 0, g * Hp:g * Hp + H].set(b_ih[:, g])
        b_hh_p = b_hh_p.at[:, 0, g * Hp:g * Hp + H].set(b_hh[:, g])

    w_dec_p = jnp.zeros((Hp, Op), jnp.float32).at[:H, :O].set(w_dec)
    b_dec_p = jnp.zeros((1, Op), jnp.float32).at[:, :O].set(b_dec)

    return (emb_p,
            w_ih_p.astype(weight_dtype), w_hh_p.astype(weight_dtype),
            b_ih_p, b_hh_p,
            w_dec_p.astype(weight_dtype), b_dec_p)


@functools.partial(jax.jit, static_argnames=("O",))
def rnn_forward(tokens, emb_p, w_ih_p, w_hh_p, b_ih_p, b_hh_p,
                w_dec_p, b_dec_p, h0, *, O):
    """Apply the RNN module's forward T times (one per token), carrying hidden.

    Returns (logits (T, O), final hidden (L, 1, H)).  T=1 is exactly the
    original single-step forward.
    """
    T = tokens.shape[0]
    L, _, H = h0.shape
    Hp = w_ih_p.shape[1]
    Op = w_dec_p.shape[1]

    # Embedding gather for all T tokens in the wrapper (one XLA gather),
    # instead of T separate single-row HBM DMAs inside the kernel.
    x_emb = jnp.take(emb_p, tokens, axis=0)                       # (T, Hp) f32

    h0_p = jnp.zeros((L, 1, Hp), jnp.float32).at[:, :, :H].set(h0)

    vmem = pl.BlockSpec(memory_space=pltpu.MemorySpace.VMEM)

    logits_p, h_p = pl.pallas_call(
        rnn_seq_kernel,
        out_shape=(jax.ShapeDtypeStruct((T, Op), jnp.float32),
                   jax.ShapeDtypeStruct((L, 1, Hp), jnp.float32)),
        in_specs=[vmem] * 8,
        out_specs=(vmem, vmem),
        scratch_shapes=[pltpu.VMEM((T, Hp), jnp.float32)],
    )(x_emb, w_ih_p, w_hh_p, b_ih_p, b_hh_p, w_dec_p, b_dec_p, h0_p)

    # Slice lane padding back off.
    return logits_p[:, :O], h_p[:, :, :H]


def rnn_reference(tokens, emb, w_ih, w_hh, b_ih, b_hh, w_dec, b_dec, h0):
    """Pure-JAX reference: PyTorch-GRU semantics, applied once per token."""
    h = h0
    logits_all = []
    for tok in tokens:
        x = emb[tok][None, :]                                     # (1, H)
        new_h = []
        for l in range(h0.shape[0]):
            h_prev = h[l]
            i_r = x @ w_ih[l, 0] + b_ih[l, 0]
            i_z = x @ w_ih[l, 1] + b_ih[l, 1]
            i_n = x @ w_ih[l, 2] + b_ih[l, 2]
            h_r = h_prev @ w_hh[l, 0] + b_hh[l, 0]
            h_z = h_prev @ w_hh[l, 1] + b_hh[l, 1]
            h_n = h_prev @ w_hh[l, 2] + b_hh[l, 2]
            r = jax.nn.sigmoid(i_r + h_r)
            z = jax.nn.sigmoid(i_z + h_z)
            n = jnp.tanh(i_n + r * h_n)
            h_new = (1.0 - z) * n + z * h_prev
            new_h.append(h_new)
            x = h_new
        h = jnp.stack(new_h, axis=0)
        logits_all.append(x @ w_dec + b_dec)
    return jnp.concatenate(logits_all, axis=0), h


if __name__ == "__main__":
    # Small hyperparameters consistent with the module's forward pass.
    input_size = 64     # vocab size
    hidden_size = 32
    output_size = 64
    n_layers = 2
    seq_len = 8         # number of forward() steps fused into one kernel call

    key = jax.random.PRNGKey(0)
    keys = jax.random.split(key, 8)
    stdv = 1.0 / jnp.sqrt(hidden_size)

    emb = jax.random.normal(keys[0], (input_size, hidden_size), jnp.float32)
    # Per-gate weights already transposed so the kernel computes vec(1,H) @ W(H,H).
    w_ih = jax.random.uniform(keys[1], (n_layers, 3, hidden_size, hidden_size),
                              jnp.float32, -stdv, stdv)
    w_hh = jax.random.uniform(keys[2], (n_layers, 3, hidden_size, hidden_size),
                              jnp.float32, -stdv, stdv)
    b_ih = jax.random.uniform(keys[3], (n_layers, 3, hidden_size),
                              jnp.float32, -stdv, stdv)
    b_hh = jax.random.uniform(keys[4], (n_layers, 3, hidden_size),
                              jnp.float32, -stdv, stdv)
    w_dec = jax.random.uniform(keys[5], (hidden_size, output_size),
                               jnp.float32, -stdv, stdv)
    b_dec = jax.random.uniform(keys[6], (1, output_size), jnp.float32, -stdv, stdv)

    tokens = jax.random.randint(keys[7], (seq_len,), 0, input_size, jnp.int32)
    # init_hidden(): zeros(n_layers, 1, hidden_size)
    h0 = jnp.zeros((n_layers, 1, hidden_size), jnp.float32)

    # ---- f32-weight config: tight numerical check against the reference ----
    packed_f32 = pack_params(emb, w_ih, w_hh, b_ih, b_hh, w_dec, b_dec,
                             weight_dtype=jnp.float32)
    logits32, h32 = rnn_forward(tokens, *packed_f32, h0, O=output_size)
    jax.block_until_ready((logits32, h32))

    logits_ref, h_ref = rnn_reference(tokens, emb, w_ih, w_hh, b_ih, b_hh,
                                      w_dec, b_dec, h0)
    assert logits32.shape == (seq_len, output_size)
    assert h32.shape == (n_layers, 1, hidden_size)
    assert jnp.allclose(logits32, logits_ref, atol=1e-5, rtol=1e-5)
    assert jnp.allclose(h32, h_ref, atol=1e-5, rtol=1e-5)

    # ---- bf16-weight config (perf default): compare against a reference that
    #      uses the same bf16-rounded weights; f32 gate math / accumulation. ----
    packed_bf16 = pack_params(emb, w_ih, w_hh, b_ih, b_hh, w_dec, b_dec,
                              weight_dtype=jnp.bfloat16)
    logits_bf, h_bf = rnn_forward(tokens, *packed_bf16, h0, O=output_size)
    jax.block_until_ready((logits_bf, h_bf))

    rnd = lambda a: a.astype(jnp.bfloat16).astype(jnp.float32)
    logits_ref_bf, h_ref_bf = rnn_reference(tokens, emb, rnd(w_ih), rnd(w_hh),
                                            b_ih, b_hh, rnd(w_dec), b_dec, h0)
    assert jnp.allclose(logits_bf, logits_ref_bf, atol=5e-2, rtol=5e-2)
    assert jnp.allclose(h_bf, h_ref_bf, atol=5e-2, rtol=5e-2)

    print("KERNEL_OK")
</pallas_src>

<mosaic_0001>
module attributes {stable_mosaic.version = 11 : i64} {
  func.func @rnn_seq_kernel(%arg0: memref<8x128xf32, #tpu.memory_space<vmem>>, %arg1: memref<2x128x384xf32, #tpu.memory_space<vmem>>, %arg2: memref<2x128x384xf32, #tpu.memory_space<vmem>>, %arg3: memref<2x1x384xf32, #tpu.memory_space<vmem>>, %arg4: memref<2x1x384xf32, #tpu.memory_space<vmem>>, %arg5: memref<128x128xf32, #tpu.memory_space<vmem>>, %arg6: memref<1x128xf32, #tpu.memory_space<vmem>>, %arg7: memref<2x1x128xf32, #tpu.memory_space<vmem>>, %arg8: memref<8x128xf32, #tpu.memory_space<vmem>>, %arg9: memref<2x1x128xf32, #tpu.memory_space<vmem>>, %arg10: memref<8x128xf32, #tpu.memory_space<vmem>>) attributes {dimension_semantics = [], scalar_prefetch = 0 : i64, scratch_operands = 1 : i64, tpu.core_type = #tpu.core_type<tc>} {
    %c0 = arith.constant 0 : index
    %c0_0 = arith.constant 0 : index
    %0 = vector.load %arg0[%c0, %c0_0] : memref<8x128xf32, #tpu.memory_space<vmem>>, vector<8x128xf32>
    %c0_1 = arith.constant 0 : index
    %c0_2 = arith.constant 0 : index
    %1 = vector.load %arg10[%c0_1, %c0_2] : memref<8x128xf32, #tpu.memory_space<vmem>>, vector<8x128xf32>
    tpu.vector_store %arg10[%c0_1, %c0_2], %0 {strides = array<i32>} : memref<8x128xf32, #tpu.memory_space<vmem>>, vector<8x128xf32>,
    %c0_3 = arith.constant 0 : index
    %c0_4 = arith.constant 0 : index
    %2 = vector.load %arg10[%c0_3, %c0_4] : memref<8x128xf32, #tpu.memory_space<vmem>>, vector<8x128xf32>
    %c0_5 = arith.constant 0 : index
    %c0_6 = arith.constant 0 : index
    %c0_7 = arith.constant 0 : index
    %3 = vector.load %arg1[%c0_5, %c0_6, %c0_7] : memref<2x128x384xf32, #tpu.memory_space<vmem>>, vector<1x128x384xf32>
    %4 = vector.shape_cast %3 : vector<1x128x384xf32> to vector<128x384xf32>
    %cst = arith.constant dense<0.000000e+00> : vector<8x384xf32>
    %5 = tpu.matmul %2, %4, %cst {dimension_numbers = #tpu.dot_dimension_numbers<[1], [0], [0], [1], [0, 0, 1, 1], [], []>} : vector<8x128xf32>, vector<128x384xf32>, vector<8x384xf32> -> vector<8x384xf32>
    %c0_8 = arith.constant 0 : index
    %c0_9 = arith.constant 0 : index
    %c0_10 = arith.constant 0 : index
    %6 = vector.load %arg3[%c0_8, %c0_9, %c0_10] : memref<2x1x384xf32, #tpu.memory_space<vmem>>, vector<1x1x384xf32>
    %7 = vector.shape_cast %6 : vector<1x1x384xf32> to vector<1x384xf32>
    %8 = vector.broadcast %7 : vector<1x384xf32> to vector<8x384xf32>
    %9 = arith.addf %5, %8 : vector<8x384xf32>
    %c0_11 = arith.constant 0 : index
    %c0_12 = arith.constant 0 : index
    %c0_13 = arith.constant 0 : index
    %10 = vector.load %arg7[%c0_11, %c0_12, %c0_13] : memref<2x1x128xf32, #tpu.memory_space<vmem>>, vector<1x1x128xf32>
    %11 = vector.shape_cast %10 : vector<1x1x128xf32> to vector<1x128xf32>
    %12 = vector.extract_strided_slice %9 {offsets = [0, 0], sizes = [1, 384], strides = [1, 1]} : vector<8x384xf32> to vector<1x384xf32>
    %c0_14 = arith.constant 0 : index
    %c0_15 = arith.constant 0 : index
    %c0_16 = arith.constant 0 : index
    %13 = vector.load %arg2[%c0_14, %c0_15, %c0_16] : memref<2x128x384xf32, #tpu.memory_space<vmem>>, vector<1x128x384xf32>
    %14 = vector.shape_cast %13 : vector<1x128x384xf32> to vector<128x384xf32>
    %cst_17 = arith.constant dense<0.000000e+00> : vector<1x384xf32>
    %15 = tpu.matmul %11, %14, %cst_17 {dimension_numbers = #tpu.dot_dimension_numbers<[1], [0], [0], [1], [0, 0, 1, 1], [], []>} : vector<1x128xf32>, vector<128x384xf32>, vector<1x384xf32> -> vector<1x384xf32>
    %c0_18 = arith.constant 0 : index
    %c0_19 = arith.constant 0 : index
    %c0_20 = arith.constant 0 : index
    %16 = vector.load %arg4[%c0_18, %c0_19, %c0_20] : memref<2x1x384xf32, #tpu.memory_space<vmem>>, vector<1x1x384xf32>
    %17 = vector.shape_cast %16 : vector<1x1x384xf32> to vector<1x384xf32>
    %18 = arith.addf %15, %17 : vector<1x384xf32>
    %19 = vector.extract_strided_slice %12 {offsets = [0, 0], sizes = [1, 256], strides = [1, 1]} : vector<1x384xf32> to vector<1x256xf32>
    %20 = vector.extract_strided_slice %18 {offsets = [0, 0], sizes = [1, 256], strides = [1, 1]} : vector<1x384xf32> to vector<1x256xf32>
    %21 = arith.addf %19, %20 : vector<1x256xf32>
    %22 = arith.negf %21 : vector<1x256xf32>
    %23 = math.exp %22 : vector<1x256xf32>
    %cst_21 = arith.constant 1.000000e+00 : f32
    %24 = vector.broadcast %cst_21 : f32 to vector<1x256xf32>
    %25 = arith.addf %24, %23 : vector<1x256xf32>
    %26 = arith.divf %24, %25 : vector<1x256xf32>
    %27 = vector.extract_strided_slice %26 {offsets = [0, 0], sizes = [1, 128], strides = [1, 1]} : vector<1x256xf32> to vector<1x128xf32>
    %28 = vector.extract_strided_slice %26 {offsets = [0, 128], sizes = [1, 128], strides = [1, 1]} : vector<1x256xf32> to vector<1x128xf32>
    %29 = vector.extract_strided_slice %12 {offsets = [0, 256], sizes = [1, 128], strides = [1, 1]} : vector<1x384xf32> to vector<1x128xf32>
    %30 = vector.extract_strided_slice %18 {offsets = [0, 256], sizes = [1, 128], strides = [1, 1]} : vector<1x384xf32> to vector<1x128xf32>
    %31 = arith.mulf %27, %30 : vector<1x128xf32>
    %32 = arith.addf %29, %31 : vector<1x128xf32>
    %33 = math.tanh %32 : vector<1x128xf32>
    %cst_22 = arith.constant 1.000000e+00 : f32
    %34 = vector.broadcast %cst_22 : f32 to vector<1x128xf32>
    %35 = arith.subf %34, %28 : vector<1x128xf32>
    %36 = arith.mulf %35, %33 : vector<1x128xf32>
    %37 = arith.mulf %28, %11 : vector<1x128xf32>
    %38 = arith.addf %36, %37 : vector<1x128xf32>
    %c0_23 = arith.constant 0 : index
    %c0_24 = arith.constant 0 : index
    %39 = vector.load %arg10[%c0_23, %c0_24] : memref<8x128xf32, #tpu.memory_space<vmem>>, vector<1x128xf32>
    tpu.vector_store %arg10[%c0_23, %c0_24], %38 {strides = array<i32>} : memref<8x128xf32, #tpu.memory_space<vmem>>, vector<1x128xf32>,
    %40 = vector.extract_strided_slice %9 {offsets = [1, 0], sizes = [1, 384], strides = [1, 1]} : vector<8x384xf32> to vector<1x384xf32>
    %c0_25 = arith.constant 0 : index
    %c0_26 = arith.constant 0 : index
    %c0_27 = arith.constant 0 : index
    %41 = vector.load %arg2[%c0_25, %c0_26, %c0_27] : memref<2x128x384xf32, #tpu.memory_space<vmem>>, vector<1x128x384xf32>
    %42 = vector.shape_cast %41 : vector<1x128x384xf32> to vector<128x384xf32>
    %cst_28 = arith.constant dense<0.000000e+00> : vector<1x384xf32>
    %43 = tpu.matmul %38, %42, %cst_28 {dimension_numbers = #tpu.dot_dimension_numbers<[1], [0], [0], [1], [0, 0, 1, 1], [], []>} : vector<1x128xf32>, vector<128x384xf32>, vector<1x384xf32> -> vector<1x384xf32>
    %c0_29 = arith.constant 0 : index
    %c0_30 = arith.constant 0 : index
    %c0_31 = arith.constant 0 : index
    %44 = vector.load %arg4[%c0_29, %c0_30, %c0_31] : memref<2x1x384xf32, #tpu.memory_space<vmem>>, vector<1x1x384xf32>
    %45 = vector.shape_cast %44 : vector<1x1x384xf32> to vector<1x384xf32>
    %46 = arith.addf %43, %45 : vector<1x384xf32>
    %47 = vector.extract_strided_slice %40 {offsets = [0, 0], sizes = [1, 256], strides = [1, 1]} : vector<1x384xf32> to vector<1x256xf32>
    %48 = vector.extract_strided_slice %46 {offsets = [0, 0], sizes = [1, 256], strides = [1, 1]} : vector<1x384xf32> to vector<1x256xf32>
    %49 = arith.addf %47, %48 : vector<1x256xf32>
    %50 = arith.negf %49 : vector<1x256xf32>
    %51 = math.exp %50 : vector<1x256xf32>
    %cst_32 = arith.constant 1.000000e+00 : f32
    %52 = vector.broadcast %cst_32 : f32 to vector<1x256xf32>
    %53 = arith.addf %52, %51 : vector<1x256xf32>
    %54 = arith.divf %52, %53 : vector<1x256xf32>
    %55 = vector.extract_strided_slice %54 {offsets = [0, 0], sizes = [1, 128], strides = [1, 1]} : vector<1x256xf32> to vector<1x128xf32>
    %56 = vector.extract_strided_slice %54 {offsets = [0, 128], sizes = [1, 128], strides = [1, 1]} : vector<1x256xf32> to vector<1x128xf32>
    %57 = vector.extract_strided_slice %40 {offsets = [0, 256], sizes = [1, 128], strides = [1, 1]} : vector<1x384xf32> to vector<1x128xf32>
    %58 = vector.extract_strided_slice %46 {offsets = [0, 256], sizes = [1, 128], strides = [1, 1]} : vector<1x384xf32> to vector<1x128xf32>
    %59 = arith.mulf %55, %58 : vector<1x128xf32>
    %60 = arith.addf %57, %59 : vector<1x128xf32>
    %61 = math.tanh %60 : vector<1x128xf32>
    %cst_33 = arith.constant 1.000000e+00 : f32
    %62 = vector.broadcast %cst_33 : f32 to vector<1x128xf32>
    %63 = arith.subf %62, %56 : vector<1x128xf32>
    %64 = arith.mulf %63, %61 : vector<1x128xf32>
    %65 = arith.mulf %56, %38 : vector<1x128xf32>
    %66 = arith.addf %64, %65 : vector<1x128xf32>
    %c1 = arith.constant 1 : index
    %c0_34 = arith.constant 0 : index
    %67 = vector.load %arg10[%c1, %c0_34] : memref<8x128xf32, #tpu.memory_space<vmem>>, vector<1x128xf32>
    tpu.vector_store %arg10[%c1, %c0_34], %66 {strides = array<i32>} : memref<8x128xf32, #tpu.memory_space<vmem>>, vector<1x128xf32>,
    %68 = vector.extract_strided_slice %9 {offsets = [2, 0], sizes = [1, 384], strides = [1, 1]} : vector<8x384xf32> to vector<1x384xf32>
    %c0_35 = arith.constant 0 : index
    %c0_36 = arith.constant 0 : index
    %c0_37 = arith.constant 0 : index
    %69 = vector.load %arg2[%c0_35, %c0_36, %c0_37] : memref<2x128x384xf32, #tpu.memory_space<vmem>>, vector<1x128x384xf32>
    %70 = vector.shape_cast %69 : vector<1x128x384xf32> to vector<128x384xf32>
    %cst_38 = arith.constant dense<0.000000e+00> : vector<1x384xf32>
    %71 = tpu.matmul %66, %70, %cst_38 {dimension_numbers = #tpu.dot_dimension_numbers<[1], [0], [0], [1], [0, 0, 1, 1], [], []>} : vector<1x128xf32>, vector<128x384xf32>, vector<1x384xf32> -> vector<1x384xf32>
    %c0_39 = arith.constant 0 : index
    %c0_40 = arith.constant 0 : index
    %c0_41 = arith.constant 0 : index
    %72 = vector.load %arg4[%c0_39, %c0_40, %c0_41] : memref<2x1x384xf32, #tpu.memory_space<vmem>>, vector<1x1x384xf32>
    %73 = vector.shape_cast %72 : vector<1x1x384xf32> to vector<1x384xf32>
    %74 = arith.addf %71, %73 : vector<1x384xf32>
    %75 = vector.extract_strided_slice %68 {offsets = [0, 0], sizes = [1, 256], strides = [1, 1]} : vector<1x384xf32> to vector<1x256xf32>
    %76 = vector.extract_strided_slice %74 {offsets = [0, 0], sizes = [1, 256], strides = [1, 1]} : vector<1x384xf32> to vector<1x256xf32>
    %77 = arith.addf %75, %76 : vector<1x256xf32>
    %78 = arith.negf %77 : vector<1x256xf32>
    %79 = math.exp %78 : vector<1x256xf32>
    %cst_42 = arith.constant 1.000000e+00 : f32
    %80 = vector.broadcast %cst_42 : f32 to vector<1x256xf32>
    %81 = arith.addf %80, %79 : vector<1x256xf32>
    %82 = arith.divf %80, %81 : vector<1x256xf32>
    %83 = vector.extract_strided_slice %82 {offsets = [0, 0], sizes = [1, 128], strides = [1, 1]} : vector<1x256xf32> to vector<1x128xf32>
    %84 = vector.extract_strided_slice %82 {offsets = [0, 128], sizes = [1, 128], strides = [1, 1]} : vector<1x256xf32> to vector<1x128xf32>
    %85 = vector.extract_strided_slice %68 {offsets = [0, 256], sizes = [1, 128], strides = [1, 1]} : vector<1x384xf32> to vector<1x128xf32>
    %86 = vector.extract_strided_slice %74 {offsets = [0, 256], sizes = [1, 128], strides = [1, 1]} : vector<1x384xf32> to vector<1x128xf32>
    %87 = arith.mulf %83, %86 : vector<1x128xf32>
    %88 = arith.addf %85, %87 : vector<1x128xf32>
    %89 = math.tanh %88 : vector<1x128xf32>
    %cst_43 = arith.constant 1.000000e+00 : f32
    %90 = vector.broadcast %cst_43 : f32 to vector<1x128xf32>
    %91 = arith.subf %90, %84 : vector<1x128xf32>
    %92 = arith.mulf %91, %89 : vector<1x128xf32>
    %93 = arith.mulf %84, %66 : vector<1x128xf32>
    %94 = arith.addf %92, %93 : vector<1x128xf32>
    %c2 = arith.constant 2 : index
    %c0_44 = arith.constant 0 : index
    %95 = vector.load %arg10[%c2, %c0_44] : memref<8x128xf32, #tpu.memory_space<vmem>>, vector<1x128xf32>
    tpu.vector_store %arg10[%c2, %c0_44], %94 {strides = array<i32>} : memref<8x128xf32, #tpu.memory_space<vmem>>, vector<1x128xf32>,
    %96 = vector.extract_strided_slice %9 {offsets = [3, 0], sizes = [1, 384], strides = [1, 1]} : vector<8x384xf32> to vector<1x384xf32>
    %c0_45 = arith.constant 0 : index
    %c0_46 = arith.constant 0 : index
    %c0_47 = arith.constant 0 : index
    %97 = vector.load %arg2[%c0_45, %c0_46, %c0_47] : memref<2x128x384xf32, #tpu.memory_space<vmem>>, vector<1x128x384xf32>
    %98 = vector.shape_cast %97 : vector<1x128x384xf32> to vector<128x384xf32>
    %cst_48 = arith.constant dense<0.000000e+00> : vector<1x384xf32>
    %99 = tpu.matmul %94, %98, %cst_48 {dimension_numbers = #tpu.dot_dimension_numbers<[1], [0], [0], [1], [0, 0, 1, 1], [], []>} : vector<1x128xf32>, vector<128x384xf32>, vector<1x384xf32> -> vector<1x384xf32>
    %c0_49 = arith.constant 0 : index
    %c0_50 = arith.constant 0 : index
    %c0_51 = arith.constant 0 : index
    %100 = vector.load %arg4[%c0_49, %c0_50, %c0_51] : memref<2x1x384xf32, #tpu.memory_space<vmem>>, vector<1x1x384xf32>
    %101 = vector.shape_cast %100 : vector<1x1x384xf32> to vector<1x384xf32>
    %102 = arith.addf %99, %101 : vector<1x384xf32>
    %103 = vector.extract_strided_slice %96 {offsets = [0, 0], sizes = [1, 256], strides = [1, 1]} : vector<1x384xf32> to vector<1x256xf32>
    %104 = vector.extract_strided_slice %102 {offsets = [0, 0], sizes = [1, 256], strides = [1, 1]} : vector<1x384xf32> to vector<1x256xf32>
    %105 = arith.addf %103, %104 : vector<1x256xf32>
    %106 = arith.negf %105 : vector<1x256xf32>
    %107 = math.exp %106 : vector<1x256xf32>
    %cst_52 = arith.constant 1.000000e+00 : f32
    %108 = vector.broadcast %cst_52 : f32 to vector<1x256xf32>
    %109 = arith.addf %108, %107 : vector<1x256xf32>
    %110 = arith.divf %108, %109 : vector<1x256xf32>
    %111 = vector.extract_strided_slice %110 {offsets = [0, 0], sizes = [1, 128], strides = [1, 1]} : vector<1x256xf32> to vector<1x128xf32>
    %112 = vector.extract_strided_slice %110 {offsets = [0, 128], sizes = [1, 128], strides = [1, 1]} : vector<1x256xf32> to vector<1x128xf32>
    %113 = vector.extract_strided_slice %96 {offsets = [0, 256], sizes = [1, 128], strides = [1, 1]} : vector<1x384xf32> to vector<1x128xf32>
    %114 = vector.extract_strided_slice %102 {offsets = [0, 256], sizes = [1, 128], strides = [1, 1]} : vector<1x384xf32> to vector<1x128xf32>
    %115 = arith.mulf %111, %114 : vector<1x128xf32>
    %116 = arith.addf %113, %115 : vector<1x128xf32>
    %117 = math.tanh %116 : vector<1x128xf32>
    %cst_53 = arith.constant 1.000000e+00 : f32
    %118 = vector.broadcast %cst_53 : f32 to vector<1x128xf32>
    %119 = arith.subf %118, %112 : vector<1x128xf32>
    %120 = arith.mulf %119, %117 : vector<1x128xf32>
    %121 = arith.mulf %112, %94 : vector<1x128xf32>
    %122 = arith.addf %120, %121 : vector<1x128xf32>
    %c3 = arith.constant 3 : index
    %c0_54 = arith.constant 0 : index
    %123 = vector.load %arg10[%c3, %c0_54] : memref<8x128xf32, #tpu.memory_space<vmem>>, vector<1x128xf32>
    tpu.vector_store %arg10[%c3, %c0_54], %122 {strides = array<i32>} : memref<8x128xf32, #tpu.memory_space<vmem>>, vector<1x128xf32>,
    %124 = vector.extract_strided_slice %9 {offsets = [4, 0], sizes = [1, 384], strides = [1, 1]} : vector<8x384xf32> to vector<1x384xf32>
    %c0_55 = arith.constant 0 : index
    %c0_56 = arith.constant 0 : index
    %c0_57 = arith.constant 0 : index
    %125 = vector.load %arg2[%c0_55, %c0_56, %c0_57] : memref<2x128x384xf32, #tpu.memory_space<vmem>>, vector<1x128x384xf32>
    %126 = vector.shape_cast %125 : vector<1x128x384xf32> to vector<128x384xf32>
    %cst_58 = arith.constant dense<0.000000e+00> : vector<1x384xf32>
    %127 = tpu.matmul %122, %126, %cst_58 {dimension_numbers = #tpu.dot_dimension_numbers<[1], [0], [0], [1], [0, 0, 1, 1], [], []>} : vector<1x128xf32>, vector<128x384xf32>, vector<1x384xf32> -> vector<1x384xf32>
    %c0_59 = arith.constant 0 : index
    %c0_60 = arith.constant 0 : index
    %c0_61 = arith.constant 0 : index
    %128 = vector.load %arg4[%c0_59, %c0_60, %c0_61] : memref<2x1x384xf32, #tpu.memory_space<vmem>>, vector<1x1x384xf32>
    %129 = vector.shape_cast %128 : vector<1x1x384xf32> to vector<1x384xf32>
    %130 = arith.addf %127, %129 : vector<1x384xf32>
    %131 = vector.extract_strided_slice %124 {offsets = [0, 0], sizes = [1, 256], strides = [1, 1]} : vector<1x384xf32> to vector<1x256xf32>
    %132 = vector.extract_strided_slice %130 {offsets = [0, 0], sizes = [1, 256], strides = [1, 1]} : vector<1x384xf32> to vector<1x256xf32>
    %133 = arith.addf %131, %132 : vector<1x256xf32>
    %134 = arith.negf %133 : vector<1x256xf32>
    %135 = math.exp %134 : vector<1x256xf32>
    %cst_62 = arith.constant 1.000000e+00 : f32
    %136 = vector.broadcast %cst_62 : f32 to vector<1x256xf32>
    %137 = arith.addf %136, %135 : vector<1x256xf32>
    %138 = arith.divf %136, %137 : vector<1x256xf32>
    %139 = vector.extract_strided_slice %138 {offsets = [0, 0], sizes = [1, 128], strides = [1, 1]} : vector<1x256xf32> to vector<1x128xf32>
    %140 = vector.extract_strided_slice %138 {offsets = [0, 128], sizes = [1, 128], strides = [1, 1]} : vector<1x256xf32> to vector<1x128xf32>
    %141 = vector.extract_strided_slice %124 {offsets = [0, 256], sizes = [1, 128], strides = [1, 1]} : vector<1x384xf32> to vector<1x128xf32>
    %142 = vector.extract_strided_slice %130 {offsets = [0, 256], sizes = [1, 128], strides = [1, 1]} : vector<1x384xf32> to vector<1x128xf32>
    %143 = arith.mulf %139, %142 : vector<1x128xf32>
    %144 = arith.addf %141, %143 : vector<1x128xf32>
    %145 = math.tanh %144 : vector<1x128xf32>
    %cst_63 = arith.constant 1.000000e+00 : f32
    %146 = vector.broadcast %cst_63 : f32 to vector<1x128xf32>
    %147 = arith.subf %146, %140 : vector<1x128xf32>
    %148 = arith.mulf %147, %145 : vector<1x128xf32>
    %149 = arith.mulf %140, %122 : vector<1x128xf32>
    %150 = arith.addf %148, %149 : vector<1x128xf32>
    %c4 = arith.constant 4 : index
    %c0_64 = arith.constant 0 : index
    %151 = vector.load %arg10[%c4, %c0_64] : memref<8x128xf32, #tpu.memory_space<vmem>>, vector<1x128xf32>
    tpu.vector_store %arg10[%c4, %c0_64], %150 {strides = array<i32>} : memref<8x128xf32, #tpu.memory_space<vmem>>, vector<1x128xf32>,
    %152 = vector.extract_strided_slice %9 {offsets = [5, 0], sizes = [1, 384], strides = [1, 1]} : vector<8x384xf32> to vector<1x384xf32>
    %c0_65 = arith.constant 0 : index
    %c0_66 = arith.constant 0 : index
    %c0_67 = arith.constant 0 : index
    %153 = vector.load %arg2[%c0_65, %c0_66, %c0_67] : memref<2x128x384xf32, #tpu.memory_space<vmem>>, vector<1x128x384xf32>
    %154 = vector.shape_cast %153 : vector<1x128x384xf32> to vector<128x384xf32>
    %cst_68 = arith.constant dense<0.000000e+00> : vector<1x384xf32>
    %155 = tpu.matmul %150, %154, %cst_68 {dimension_numbers = #tpu.dot_dimension_numbers<[1], [0], [0], [1], [0, 0, 1, 1], [], []>} : vector<1x128xf32>, vector<128x384xf32>, vector<1x384xf32> -> vector<1x384xf32>
    %c0_69 = arith.constant 0 : index
    %c0_70 = arith.constant 0 : index
    %c0_71 = arith.constant 0 : index
    %156 = vector.load %arg4[%c0_69, %c0_70, %c0_71] : memref<2x1x384xf32, #tpu.memory_space<vmem>>, vector<1x1x384xf32>
    %157 = vector.shape_cast %156 : vector<1x1x384xf32> to vector<1x384xf32>
    %158 = arith.addf %155, %157 : vector<1x384xf32>
    %159 = vector.extract_strided_slice %152 {offsets = [0, 0], sizes = [1, 256], strides = [1, 1]} : vector<1x384xf32> to vector<1x256xf32>
    %160 = vector.extract_strided_slice %158 {offsets = [0, 0], sizes = [1, 256], strides = [1, 1]} : vector<1x384xf32> to vector<1x256xf32>
    %161 = arith.addf %159, %160 : vector<1x256xf32>
    %162 = arith.negf %161 : vector<1x256xf32>
    %163 = math.exp %162 : vector<1x256xf32>
    %cst_72 = arith.constant 1.000000e+00 : f32
    %164 = vector.broadcast %cst_72 : f32 to vector<1x256xf32>
    %165 = arith.addf %164, %163 : vector<1x256xf32>
    %166 = arith.divf %164, %165 : vector<1x256xf32>
    %167 = vector.extract_strided_slice %166 {offsets = [0, 0], sizes = [1, 128], strides = [1, 1]} : vector<1x256xf32> to vector<1x128xf32>
    %168 = vector.extract_strided_slice %166 {offsets = [0, 128], sizes = [1, 128], strides = [1, 1]} : vector<1x256xf32> to vector<1x128xf32>
    %169 = vector.extract_strided_slice %152 {offsets = [0, 256], sizes = [1, 128], strides = [1, 1]} : vector<1x384xf32> to vector<1x128xf32>
    %170 = vector.extract_strided_slice %158 {offsets = [0, 256], sizes = [1, 128], strides = [1, 1]} : vector<1x384xf32> to vector<1x128xf32>
    %171 = arith.mulf %167, %170 : vector<1x128xf32>
    %172 = arith.addf %169, %171 : vector<1x128xf32>
    %173 = math.tanh %172 : vector<1x128xf32>
    %cst_73 = arith.constant 1.000000e+00 : f32
    %174 = vector.broadcast %cst_73 : f32 to vector<1x128xf32>
    %175 = arith.subf %174, %168 : vector<1x128xf32>
    %176 = arith.mulf %175, %173 : vector<1x128xf32>
    %177 = arith.mulf %168, %150 : vector<1x128xf32>
    %178 = arith.addf %176, %177 : vector<1x128xf32>
    %c5 = arith.constant 5 : index
    %c0_74 = arith.constant 0 : index
    %179 = vector.load %arg10[%c5, %c0_74] : memref<8x128xf32, #tpu.memory_space<vmem>>, vector<1x128xf32>
    tpu.vector_store %arg10[%c5, %c0_74], %178 {strides = array<i32>} : memref<8x128xf32, #tpu.memory_space<vmem>>, vector<1x128xf32>,
    %180 = vector.extract_strided_slice %9 {offsets = [6, 0], sizes = [1, 384], strides = [1, 1]} : vector<8x384xf32> to vector<1x384xf32>
    %c0_75 = arith.constant 0 : index
    %c0_76 = arith.constant 0 : index
    %c0_77 = arith.constant 0 : index
    %181 = vector.load %arg2[%c0_75, %c0_76, %c0_77] : memref<2x128x384xf32, #tpu.memory_space<vmem>>, vector<1x128x384xf32>
    %182 = vector.shape_cast %181 : vector<1x128x384xf32> to vector<128x384xf32>
    %cst_78 = arith.constant dense<0.000000e+00> : vector<1x384xf32>
    %183 = tpu.matmul %178, %182, %cst_78 {dimension_numbers = #tpu.dot_dimension_numbers<[1], [0], [0], [1], [0, 0, 1, 1], [], []>} : vector<1x128xf32>, vector<128x384xf32>, vector<1x384xf32> -> vector<1x384xf32>
    %c0_79 = arith.constant 0 : index
    %c0_80 = arith.constant 0 : index
    %c0_81 = arith.constant 0 : index
    %184 = vector.load %arg4[%c0_79, %c0_80, %c0_81] : memref<2x1x384xf32, #tpu.memory_space<vmem>>, vector<1x1x384xf32>
    %185 = vector.shape_cast %184 : vector<1x1x384xf32> to vector<1x384xf32>
    %186 = arith.addf %183, %185 : vector<1x384xf32>
    %187 = vector.extract_strided_slice %180 {offsets = [0, 0], sizes = [1, 256], strides = [1, 1]} : vector<1x384xf32> to vector<1x256xf32>
    %188 = vector.extract_strided_slice %186 {offsets = [0, 0], sizes = [1, 256], strides = [1, 1]} : vector<1x384xf32> to vector<1x256xf32>
    %189 = arith.addf %187, %188 : vector<1x256xf32>
    %190 = arith.negf %189 : vector<1x256xf32>
    %191 = math.exp %190 : vector<1x256xf32>
    %cst_82 = arith.constant 1.000000e+00 : f32
    %192 = vector.broadcast %cst_82 : f32 to vector<1x256xf32>
    %193 = arith.addf %192, %191 : vector<1x256xf32>
    %194 = arith.divf %192, %193 : vector<1x256xf32>
    %195 = vector.extract_strided_slice %194 {offsets = [0, 0], sizes = [1, 128], strides = [1, 1]} : vector<1x256xf32> to vector<1x128xf32>
    %196 = vector.extract_strided_slice %194 {offsets = [0, 128], sizes = [1, 128], strides = [1, 1]} : vector<1x256xf32> to vector<1x128xf32>
    %197 = vector.extract_strided_slice %180 {offsets = [0, 256], sizes = [1, 128], strides = [1, 1]} : vector<1x384xf32> to vector<1x128xf32>
    %198 = vector.extract_strided_slice %186 {offsets = [0, 256], sizes = [1, 128], strides = [1, 1]} : vector<1x384xf32> to vector<1x128xf32>
    %199 = arith.mulf %195, %198 : vector<1x128xf32>
    %200 = arith.addf %197, %199 : vector<1x128xf32>
    %201 = math.tanh %200 : vector<1x128xf32>
    %cst_83 = arith.constant 1.000000e+00 : f32
    %202 = vector.broadcast %cst_83 : f32 to vector<1x128xf32>
    %203 = arith.subf %202, %196 : vector<1x128xf32>
    %204 = arith.mulf %203, %201 : vector<1x128xf32>
    %205 = arith.mulf %196, %178 : vector<1x128xf32>
    %206 = arith.addf %204, %205 : vector<1x128xf32>
    %c6 = arith.constant 6 : index
    %c0_84 = arith.constant 0 : index
    %207 = vector.load %arg10[%c6, %c0_84] : memref<8x128xf32, #tpu.memory_space<vmem>>, vector<1x128xf32>
    tpu.vector_store %arg10[%c6, %c0_84], %206 {strides = array<i32>} : memref<8x128xf32, #tpu.memory_space<vmem>>, vector<1x128xf32>,
    %208 = vector.extract_strided_slice %9 {offsets = [7, 0], sizes = [1, 384], strides = [1, 1]} : vector<8x384xf32> to vector<1x384xf32>
    %c0_85 = arith.constant 0 : index
    %c0_86 = arith.constant 0 : index
    %c0_87 = arith.constant 0 : index
    %209 = vector.load %arg2[%c0_85, %c0_86, %c0_87] : memref<2x128x384xf32, #tpu.memory_space<vmem>>, vector<1x128x384xf32>
    %210 = vector.shape_cast %209 : vector<1x128x384xf32> to vector<128x384xf32>
    %cst_88 = arith.constant dense<0.000000e+00> : vector<1x384xf32>
    %211 = tpu.matmul %206, %210, %cst_88 {dimension_numbers = #tpu.dot_dimension_numbers<[1], [0], [0], [1], [0, 0, 1, 1], [], []>} : vector<1x128xf32>, vector<128x384xf32>, vector<1x384xf32> -> vector<1x384xf32>
    %c0_89 = arith.constant 0 : index
    %c0_90 = arith.constant 0 : index
    %c0_91 = arith.constant 0 : index
    %212 = vector.load %arg4[%c0_89, %c0_90, %c0_91] : memref<2x1x384xf32, #tpu.memory_space<vmem>>, vector<1x1x384xf32>
    %213 = vector.shape_cast %212 : vector<1x1x384xf32> to vector<1x384xf32>
    %214 = arith.addf %211, %213 : vector<1x384xf32>
    %215 = vector.extract_strided_slice %208 {offsets = [0, 0], sizes = [1, 256], strides = [1, 1]} : vector<1x384xf32> to vector<1x256xf32>
    %216 = vector.extract_strided_slice %214 {offsets = [0, 0], sizes = [1, 256], strides = [1, 1]} : vector<1x384xf32> to vector<1x256xf32>
    %217 = arith.addf %215, %216 : vector<1x256xf32>
    %218 = arith.negf %217 : vector<1x256xf32>
    %219 = math.exp %218 : vector<1x256xf32>
    %cst_92 = arith.constant 1.000000e+00 : f32
    %220 = vector.broadcast %cst_92 : f32 to vector<1x256xf32>
    %221 = arith.addf %220, %219 : vector<1x256xf32>
    %222 = arith.divf %220, %221 : vector<1x256xf32>
    %223 = vector.extract_strided_slice %222 {offsets = [0, 0], sizes = [1, 128], strides = [1, 1]} : vector<1x256xf32> to vector<1x128xf32>
    %224 = vector.extract_strided_slice %222 {offsets = [0, 128], sizes = [1, 128], strides = [1, 1]} : vector<1x256xf32> to vector<1x128xf32>
    %225 = vector.extract_strided_slice %208 {offsets = [0, 256], sizes = [1, 128], strides = [1, 1]} : vector<1x384xf32> to vector<1x128xf32>
    %226 = vector.extract_strided_slice %214 {offsets = [0, 256], sizes = [1, 128], strides = [1, 1]} : vector<1x384xf32> to vector<1x128xf32>
    %227 = arith.mulf %223, %226 : vector<1x128xf32>
    %228 = arith.addf %225, %227 : vector<1x128xf32>
    %229 = math.tanh %228 : vector<1x128xf32>
    %cst_93 = arith.constant 1.000000e+00 : f32
    %230 = vector.broadcast %cst_93 : f32 to vector<1x128xf32>
    %231 = arith.subf %230, %224 : vector<1x128xf32>
    %232 = arith.mulf %231, %229 : vector<1x128xf32>
    %233 = arith.mulf %224, %206 : vector<1x128xf32>
    %234 = arith.addf %232, %233 : vector<1x128xf32>
    %c7 = arith.constant 7 : index
    %c0_94 = arith.constant 0 : index
    %235 = vector.load %arg10[%c7, %c0_94] : memref<8x128xf32, #tpu.memory_space<vmem>>, vector<1x128xf32>
    tpu.vector_store %arg10[%c7, %c0_94], %234 {strides = array<i32>} : memref<8x128xf32, #tpu.memory_space<vmem>>, vector<1x128xf32>,
    %c0_95 = arith.constant 0 : index
    %c0_96 = arith.constant 0 : index
    %c0_97 = arith.constant 0 : index
    %236 = vector.load %arg9[%c0_95, %c0_96, %c0_97] : memref<2x1x128xf32, #tpu.memory_space<vmem>>, vector<1x1x128xf32>
    %237 = vector.shape_cast %236 : vector<1x1x128xf32> to vector<1x128xf32>
    %238 = vector.shape_cast %234 : vector<1x128xf32> to vector<1x1x128xf32>
    tpu.vector_store %arg9[%c0_95, %c0_96, %c0_97], %238 {strides = array<i32>} : memref<2x1x128xf32, #tpu.memory_space<vmem>>, vector<1x1x128xf32>,
    %c0_98 = arith.constant 0 : index
    %c0_99 = arith.constant 0 : index
    %239 = vector.load %arg10[%c0_98, %c0_99] : memref<8x128xf32, #tpu.memory_space<vmem>>, vector<8x128xf32>
    %c1_100 = arith.constant 1 : index
    %c0_101 = arith.constant 0 : index
    %c0_102 = arith.constant 0 : index
    %240 = vector.load %arg1[%c1_100, %c0_101, %c0_102] : memref<2x128x384xf32, #tpu.memory_space<vmem>>, vector<1x128x384xf32>
    %241 = vector.shape_cast %240 : vector<1x128x384xf32> to vector<128x384xf32>
    %cst_103 = arith.constant dense<0.000000e+00> : vector<8x384xf32>
    %242 = tpu.matmul %239, %241, %cst_103 {dimension_numbers = #tpu.dot_dimension_numbers<[1], [0], [0], [1], [0, 0, 1, 1], [], []>} : vector<8x128xf32>, vector<128x384xf32>, vector<8x384xf32> -> vector<8x384xf32>
    %c1_104 = arith.constant 1 : index
    %c0_105 = arith.constant 0 : index
    %c0_106 = arith.constant 0 : index
    %243 = vector.load %arg3[%c1_104, %c0_105, %c0_106] : memref<2x1x384xf32, #tpu.memory_space<vmem>>, vector<1x1x384xf32>
    %244 = vector.shape_cast %243 : vector<1x1x384xf32> to vector<1x384xf32>
    %245 = vector.broadcast %244 : vector<1x384xf32> to vector<8x384xf32>
    %246 = arith.addf %242, %245 : vector<8x384xf32>
    %c1_107 = arith.constant 1 : index
    %c0_108 = arith.constant 0 : index
    %c0_109 = arith.constant 0 : index
    %247 = vector.load %arg7[%c1_107, %c0_108, %c0_109] : memref<2x1x128xf32, #tpu.memory_space<vmem>>, vector<1x1x128xf32>
    %248 = vector.shape_cast %247 : vector<1x1x128xf32> to vector<1x128xf32>
    %249 = vector.extract_strided_slice %246 {offsets = [0, 0], sizes = [1, 384], strides = [1, 1]} : vector<8x384xf32> to vector<1x384xf32>
    %c1_110 = arith.constant 1 : index
    %c0_111 = arith.constant 0 : index
    %c0_112 = arith.constant 0 : index
    %250 = vector.load %arg2[%c1_110, %c0_111, %c0_112] : memref<2x128x384xf32, #tpu.memory_space<vmem>>, vector<1x128x384xf32>
    %251 = vector.shape_cast %250 : vector<1x128x384xf32> to vector<128x384xf32>
    %cst_113 = arith.constant dense<0.000000e+00> : vector<1x384xf32>
    %252 = tpu.matmul %248, %251, %cst_113 {dimension_numbers = #tpu.dot_dimension_numbers<[1], [0], [0], [1], [0, 0, 1, 1], [], []>} : vector<1x128xf32>, vector<128x384xf32>, vector<1x384xf32> -> vector<1x384xf32>
    %c1_114 = arith.constant 1 : index
    %c0_115 = arith.constant 0 : index
    %c0_116 = arith.constant 0 : index
    %253 = vector.load %arg4[%c1_114, %c0_115, %c0_116] : memref<2x1x384xf32, #tpu.memory_space<vmem>>, vector<1x1x384xf32>
    %254 = vector.shape_cast %253 : vector<1x1x384xf32> to vector<1x384xf32>
    %255 = arith.addf %252, %254 : vector<1x384xf32>
    %256 = vector.extract_strided_slice %249 {offsets = [0, 0], sizes = [1, 256], strides = [1, 1]} : vector<1x384xf32> to vector<1x256xf32>
    %257 = vector.extract_strided_slice %255 {offsets = [0, 0], sizes = [1, 256], strides = [1, 1]} : vector<1x384xf32> to vector<1x256xf32>
    %258 = arith.addf %256, %257 : vector<1x256xf32>
    %259 = arith.negf %258 : vector<1x256xf32>
    %260 = math.exp %259 : vector<1x256xf32>
    %cst_117 = arith.constant 1.000000e+00 : f32
    %261 = vector.broadcast %cst_117 : f32 to vector<1x256xf32>
    %262 = arith.addf %261, %260 : vector<1x256xf32>
    %263 = arith.divf %261, %262 : vector<1x256xf32>
    %264 = vector.extract_strided_slice %263 {offsets = [0, 0], sizes = [1, 128], strides = [1, 1]} : vector<1x256xf32> to vector<1x128xf32>
    %265 = vector.extract_strided_slice %263 {offsets = [0, 128], sizes = [1, 128], strides = [1, 1]} : vector<1x256xf32> to vector<1x128xf32>
    %266 = vector.extract_strided_slice %249 {offsets = [0, 256], sizes = [1, 128], strides = [1, 1]} : vector<1x384xf32> to vector<1x128xf32>
    %267 = vector.extract_strided_slice %255 {offsets = [0, 256], sizes = [1, 128], strides = [1, 1]} : vector<1x384xf32> to vector<1x128xf32>
    %268 = arith.mulf %264, %267 : vector<1x128xf32>
    %269 = arith.addf %266, %268 : vector<1x128xf32>
    %270 = math.tanh %269 : vector<1x128xf32>
    %cst_118 = arith.constant 1.000000e+00 : f32
    %271 = vector.broadcast %cst_118 : f32 to vector<1x128xf32>
    %272 = arith.subf %271, %265 : vector<1x128xf32>
    %273 = arith.mulf %272, %270 : vector<1x128xf32>
    %274 = arith.mulf %265, %248 : vector<1x128xf32>
    %275 = arith.addf %273, %274 : vector<1x128xf32>
    %c0_119 = arith.constant 0 : index
    %c0_120 = arith.constant 0 : index
    %276 = vector.load %arg10[%c0_119, %c0_120] : memref<8x128xf32, #tpu.memory_space<vmem>>, vector<1x128xf32>
    tpu.vector_store %arg10[%c0_119, %c0_120], %275 {strides = array<i32>} : memref<8x128xf32, #tpu.memory_space<vmem>>, vector<1x128xf32>,
    %277 = vector.extract_strided_slice %246 {offsets = [1, 0], sizes = [1, 384], strides = [1, 1]} : vector<8x384xf32> to vector<1x384xf32>
    %c1_121 = arith.constant 1 : index
    %c0_122 = arith.constant 0 : index
    %c0_123 = arith.constant 0 : index
    %278 = vector.load %arg2[%c1_121, %c0_122, %c0_123] : memref<2x128x384xf32, #tpu.memory_space<vmem>>, vector<1x128x384xf32>
    %279 = vector.shape_cast %278 : vector<1x128x384xf32> to vector<128x384xf32>
    %cst_124 = arith.constant dense<0.000000e+00> : vector<1x384xf32>
    %280 = tpu.matmul %275, %279, %cst_124 {dimension_numbers = #tpu.dot_dimension_numbers<[1], [0], [0], [1], [0, 0, 1, 1], [], []>} : vector<1x128xf32>, vector<128x384xf32>, vector<1x384xf32> -> vector<1x384xf32>
    %c1_125 = arith.constant 1 : index
    %c0_126 = arith.constant 0 : index
    %c0_127 = arith.constant 0 : index
    %281 = vector.load %arg4[%c1_125, %c0_126, %c0_127] : memref<2x1x384xf32, #tpu.memory_space<vmem>>, vector<1x1x384xf32>
    %282 = vector.shape_cast %281 : vector<1x1x384xf32> to vector<1x384xf32>
    %283 = arith.addf %280, %282 : vector<1x384xf32>
    %284 = vector.extract_strided_slice %277 {offsets = [0, 0], sizes = [1, 256], strides = [1, 1]} : vector<1x384xf32> to vector<1x256xf32>
    %285 = vector.extract_strided_slice %283 {offsets = [0, 0], sizes = [1, 256], strides = [1, 1]} : vector<1x384xf32> to vector<1x256xf32>
    %286 = arith.addf %284, %285 : vector<1x256xf32>
    %287 = arith.negf %286 : vector<1x256xf32>
    %288 = math.exp %287 : vector<1x256xf32>
    %cst_128 = arith.constant 1.000000e+00 : f32
    %289 = vector.broadcast %cst_128 : f32 to vector<1x256xf32>
    %290 = arith.addf %289, %288 : vector<1x256xf32>
    %291 = arith.divf %289, %290 : vector<1x256xf32>
    %292 = vector.extract_strided_slice %291 {offsets = [0, 0], sizes = [1, 128], strides = [1, 1]} : vector<1x256xf32> to vector<1x128xf32>
    %293 = vector.extract_strided_slice %291 {offsets = [0, 128], sizes = [1, 128], strides = [1, 1]} : vector<1x256xf32> to vector<1x128xf32>
    %294 = vector.extract_strided_slice %277 {offsets = [0, 256], sizes = [1, 128], strides = [1, 1]} : vector<1x384xf32> to vector<1x128xf32>
    %295 = vector.extract_strided_slice %283 {offsets = [0, 256], sizes = [1, 128], strides = [1, 1]} : vector<1x384xf32> to vector<1x128xf32>
    %296 = arith.mulf %292, %295 : vector<1x128xf32>
    %297 = arith.addf %294, %296 : vector<1x128xf32>
    %298 = math.tanh %297 : vector<1x128xf32>
    %cst_129 = arith.constant 1.000000e+00 : f32
    %299 = vector.broadcast %cst_129 : f32 to vector<1x128xf32>
    %300 = arith.subf %299, %293 : vector<1x128xf32>
    %301 = arith.mulf %300, %298 : vector<1x128xf32>
    %302 = arith.mulf %293, %275 : vector<1x128xf32>
    %303 = arith.addf %301, %302 : vector<1x128xf32>
    %c1_130 = arith.constant 1 : index
    %c0_131 = arith.constant 0 : index
    %304 = vector.load %arg10[%c1_130, %c0_131] : memref<8x128xf32, #tpu.memory_space<vmem>>, vector<1x128xf32>
    tpu.vector_store %arg10[%c1_130, %c0_131], %303 {strides = array<i32>} : memref<8x128xf32, #tpu.memory_space<vmem>>, vector<1x128xf32>,
    %305 = vector.extract_strided_slice %246 {offsets = [2, 0], sizes = [1, 384], strides = [1, 1]} : vector<8x384xf32> to vector<1x384xf32>
    %c1_132 = arith.constant 1 : index
    %c0_133 = arith.constant 0 : index
    %c0_134 = arith.constant 0 : index
    %306 = vector.load %arg2[%c1_132, %c0_133, %c0_134] : memref<2x128x384xf32, #tpu.memory_space<vmem>>, vector<1x128x384xf32>
    %307 = vector.shape_cast %306 : vector<1x128x384xf32> to vector<128x384xf32>
    %cst_135 = arith.constant dense<0.000000e+00> : vector<1x384xf32>
    %308 = tpu.matmul %303, %307, %cst_135 {dimension_numbers = #tpu.dot_dimension_numbers<[1], [0], [0], [1], [0, 0, 1, 1], [], []>} : vector<1x128xf32>, vector<128x384xf32>, vector<1x384xf32> -> vector<1x384xf32>
    %c1_136 = arith.constant 1 : index
    %c0_137 = arith.constant 0 : index
    %c0_138 = arith.constant 0 : index
    %309 = vector.load %arg4[%c1_136, %c0_137, %c0_138] : memref<2x1x384xf32, #tpu.memory_space<vmem>>, vector<1x1x384xf32>
    %310 = vector.shape_cast %309 : vector<1x1x384xf32> to vector<1x384xf32>
    %311 = arith.addf %308, %310 : vector<1x384xf32>
    %312 = vector.extract_strided_slice %305 {offsets = [0, 0], sizes = [1, 256], strides = [1, 1]} : vector<1x384xf32> to vector<1x256xf32>
    %313 = vector.extract_strided_slice %311 {offsets = [0, 0], sizes = [1, 256], strides = [1, 1]} : vector<1x384xf32> to vector<1x256xf32>
    %314 = arith.addf %312, %313 : vector<1x256xf32>
    %315 = arith.negf %314 : vector<1x256xf32>
    %316 = math.exp %315 : vector<1x256xf32>
    %cst_139 = arith.constant 1.000000e+00 : f32
    %317 = vector.broadcast %cst_139 : f32 to vector<1x256xf32>
    %318 = arith.addf %317, %316 : vector<1x256xf32>
    %319 = arith.divf %317, %318 : vector<1x256xf32>
    %320 = vector.extract_strided_slice %319 {offsets = [0, 0], sizes = [1, 128], strides = [1, 1]} : vector<1x256xf32> to vector<1x128xf32>
    %321 = vector.extract_strided_slice %319 {offsets = [0, 128], sizes = [1, 128], strides = [1, 1]} : vector<1x256xf32> to vector<1x128xf32>
    %322 = vector.extract_strided_slice %305 {offsets = [0, 256], sizes = [1, 128], strides = [1, 1]} : vector<1x384xf32> to vector<1x128xf32>
    %323 = vector.extract_strided_slice %311 {offsets = [0, 256], sizes = [1, 128], strides = [1, 1]} : vector<1x384xf32> to vector<1x128xf32>
    %324 = arith.mulf %320, %323 : vector<1x128xf32>
    %325 = arith.addf %322, %324 : vector<1x128xf32>
    %326 = math.tanh %325 : vector<1x128xf32>
    %cst_140 = arith.constant 1.000000e+00 : f32
    %327 = vector.broadcast %cst_140 : f32 to vector<1x128xf32>
    %328 = arith.subf %327, %321 : vector<1x128xf32>
    %329 = arith.mulf %328, %326 : vector<1x128xf32>
    %330 = arith.mulf %321, %303 : vector<1x128xf32>
    %331 = arith.addf %329, %330 : vector<1x128xf32>
    %c2_141 = arith.constant 2 : index
    %c0_142 = arith.constant 0 : index
    %332 = vector.load %arg10[%c2_141, %c0_142] : memref<8x128xf32, #tpu.memory_space<vmem>>, vector<1x128xf32>
    tpu.vector_store %arg10[%c2_141, %c0_142], %331 {strides = array<i32>} : memref<8x128xf32, #tpu.memory_space<vmem>>, vector<1x128xf32>,
    %333 = vector.extract_strided_slice %246 {offsets = [3, 0], sizes = [1, 384], strides = [1, 1]} : vector<8x384xf32> to vector<1x384xf32>
    %c1_143 = arith.constant 1 : index
    %c0_144 = arith.constant 0 : index
    %c0_145 = arith.constant 0 : index
    %334 = vector.load %arg2[%c1_143, %c0_144, %c0_145] : memref<2x128x384xf32, #tpu.memory_space<vmem>>, vector<1x128x384xf32>
    %335 = vector.shape_cast %334 : vector<1x128x384xf32> to vector<128x384xf32>
    %cst_146 = arith.constant dense<0.000000e+00> : vector<1x384xf32>
    %336 = tpu.matmul %331, %335, %cst_146 {dimension_numbers = #tpu.dot_dimension_numbers<[1], [0], [0], [1], [0, 0, 1, 1], [], []>} : vector<1x128xf32>, vector<128x384xf32>, vector<1x384xf32> -> vector<1x384xf32>
    %c1_147 = arith.constant 1 : index
    %c0_148 = arith.constant 0 : index
    %c0_149 = arith.constant 0 : index
    %337 = vector.load %arg4[%c1_147, %c0_148, %c0_149] : memref<2x1x384xf32, #tpu.memory_space<vmem>>, vector<1x1x384xf32>
    %338 = vector.shape_cast %337 : vector<1x1x384xf32> to vector<1x384xf32>
    %339 = arith.addf %336, %338 : vector<1x384xf32>
    %340 = vector.extract_strided_slice %333 {offsets = [0, 0], sizes = [1, 256], strides = [1, 1]} : vector<1x384xf32> to vector<1x256xf32>
    %341 = vector.extract_strided_slice %339 {offsets = [0, 0], sizes = [1, 256], strides = [1, 1]} : vector<1x384xf32> to vector<1x256xf32>
    %342 = arith.addf %340, %341 : vector<1x256xf32>
    %343 = arith.negf %342 : vector<1x256xf32>
    %344 = math.exp %343 : vector<1x256xf32>
    %cst_150 = arith.constant 1.000000e+00 : f32
    %345 = vector.broadcast %cst_150 : f32 to vector<1x256xf32>
    %346 = arith.addf %345, %344 : vector<1x256xf32>
    %347 = arith.divf %345, %346 : vector<1x256xf32>
    %348 = vector.extract_strided_slice %347 {offsets = [0, 0], sizes = [1, 128], strides = [1, 1]} : vector<1x256xf32> to vector<1x128xf32>
    %349 = vector.extract_strided_slice %347 {offsets = [0, 128], sizes = [1, 128], strides = [1, 1]} : vector<1x256xf32> to vector<1x128xf32>
    %350 = vector.extract_strided_slice %333 {offsets = [0, 256], sizes = [1, 128], strides = [1, 1]} : vector<1x384xf32> to vector<1x128xf32>
    %351 = vector.extract_strided_slice %339 {offsets = [0, 256], sizes = [1, 128], strides = [1, 1]} : vector<1x384xf32> to vector<1x128xf32>
    %352 = arith.mulf %348, %351 : vector<1x128xf32>
    %353 = arith.addf %350, %352 : vector<1x128xf32>
    %354 = math.tanh %353 : vector<1x128xf32>
    %cst_151 = arith.constant 1.000000e+00 : f32
    %355 = vector.broadcast %cst_151 : f32 to vector<1x128xf32>
    %356 = arith.subf %355, %349 : vector<1x128xf32>
    %357 = arith.mulf %356, %354 : vector<1x128xf32>
    %358 = arith.mulf %349, %331 : vector<1x128xf32>
    %359 = arith.addf %357, %358 : vector<1x128xf32>
    %c3_152 = arith.constant 3 : index
    %c0_153 = arith.constant 0 : index
    %360 = vector.load %arg10[%c3_152, %c0_153] : memref<8x128xf32, #tpu.memory_space<vmem>>, vector<1x128xf32>
    tpu.vector_store %arg10[%c3_152, %c0_153], %359 {strides = array<i32>} : memref<8x128xf32, #tpu.memory_space<vmem>>, vector<1x128xf32>,
    %361 = vector.extract_strided_slice %246 {offsets = [4, 0], sizes = [1, 384], strides = [1, 1]} : vector<8x384xf32> to vector<1x384xf32>
    %c1_154 = arith.constant 1 : index
    %c0_155 = arith.constant 0 : index
    %c0_156 = arith.constant 0 : index
    %362 = vector.load %arg2[%c1_154, %c0_155, %c0_156] : memref<2x128x384xf32, #tpu.memory_space<vmem>>, vector<1x128x384xf32>
    %363 = vector.shape_cast %362 : vector<1x128x384xf32> to vector<128x384xf32>
    %cst_157 = arith.constant dense<0.000000e+00> : vector<1x384xf32>
    %364 = tpu.matmul %359, %363, %cst_157 {dimension_numbers = #tpu.dot_dimension_numbers<[1], [0], [0], [1], [0, 0, 1, 1], [], []>} : vector<1x128xf32>, vector<128x384xf32>, vector<1x384xf32> -> vector<1x384xf32>
    %c1_158 = arith.constant 1 : index
    %c0_159 = arith.constant 0 : index
    %c0_160 = arith.constant 0 : index
    %365 = vector.load %arg4[%c1_158, %c0_159, %c0_160] : memref<2x1x384xf32, #tpu.memory_space<vmem>>, vector<1x1x384xf32>
    %366 = vector.shape_cast %365 : vector<1x1x384xf32> to vector<1x384xf32>
    %367 = arith.addf %364, %366 : vector<1x384xf32>
    %368 = vector.extract_strided_slice %361 {offsets = [0, 0], sizes = [1, 256], strides = [1, 1]} : vector<1x384xf32> to vector<1x256xf32>
    %369 = vector.extract_strided_slice %367 {offsets = [0, 0], sizes = [1, 256], strides = [1, 1]} : vector<1x384xf32> to vector<1x256xf32>
    %370 = arith.addf %368, %369 : vector<1x256xf32>
    %371 = arith.negf %370 : vector<1x256xf32>
    %372 = math.exp %371 : vector<1x256xf32>
    %cst_161 = arith.constant 1.000000e+00 : f32
    %373 = vector.broadcast %cst_161 : f32 to vector<1x256xf32>
    %374 = arith.addf %373, %372 : vector<1x256xf32>
    %375 = arith.divf %373, %374 : vector<1x256xf32>
    %376 = vector.extract_strided_slice %375 {offsets = [0, 0], sizes = [1, 128], strides = [1, 1]} : vector<1x256xf32> to vector<1x128xf32>
    %377 = vector.extract_strided_slice %375 {offsets = [0, 128], sizes = [1, 128], strides = [1, 1]} : vector<1x256xf32> to vector<1x128xf32>
    %378 = vector.extract_strided_slice %361 {offsets = [0, 256], sizes = [1, 128], strides = [1, 1]} : vector<1x384xf32> to vector<1x128xf32>
    %379 = vector.extract_strided_slice %367 {offsets = [0, 256], sizes = [1, 128], strides = [1, 1]} : vector<1x384xf32> to vector<1x128xf32>
    %380 = arith.mulf %376, %379 : vector<1x128xf32>
    %381 = arith.addf %378, %380 : vector<1x128xf32>
    %382 = math.tanh %381 : vector<1x128xf32>
    %cst_162 = arith.constant 1.000000e+00 : f32
    %383 = vector.broadcast %cst_162 : f32 to vector<1x128xf32>
    %384 = arith.subf %383, %377 : vector<1x128xf32>
    %385 = arith.mulf %384, %382 : vector<1x128xf32>
    %386 = arith.mulf %377, %359 : vector<1x128xf32>
    %387 = arith.addf %385, %386 : vector<1x128xf32>
    %c4_163 = arith.constant 4 : index
    %c0_164 = arith.constant 0 : index
    %388 = vector.load %arg10[%c4_163, %c0_164] : memref<8x128xf32, #tpu.memory_space<vmem>>, vector<1x128xf32>
    tpu.vector_store %arg10[%c4_163, %c0_164], %387 {strides = array<i32>} : memref<8x128xf32, #tpu.memory_space<vmem>>, vector<1x128xf32>,
    %389 = vector.extract_strided_slice %246 {offsets = [5, 0], sizes = [1, 384], strides = [1, 1]} : vector<8x384xf32> to vector<1x384xf32>
    %c1_165 = arith.constant 1 : index
    %c0_166 = arith.constant 0 : index
    %c0_167 = arith.constant 0 : index
    %390 = vector.load %arg2[%c1_165, %c0_166, %c0_167] : memref<2x128x384xf32, #tpu.memory_space<vmem>>, vector<1x128x384xf32>
    %391 = vector.shape_cast %390 : vector<1x128x384xf32> to vector<128x384xf32>
    %cst_168 = arith.constant dense<0.000000e+00> : vector<1x384xf32>
    %392 = tpu.matmul %387, %391, %cst_168 {dimension_numbers = #tpu.dot_dimension_numbers<[1], [0], [0], [1], [0, 0, 1, 1], [], []>} : vector<1x128xf32>, vector<128x384xf32>, vector<1x384xf32> -> vector<1x384xf32>
    %c1_169 = arith.constant 1 : index
    %c0_170 = arith.constant 0 : index
    %c0_171 = arith.constant 0 : index
    %393 = vector.load %arg4[%c1_169, %c0_170, %c0_171] : memref<2x1x384xf32, #tpu.memory_space<vmem>>, vector<1x1x384xf32>
    %394 = vector.shape_cast %393 : vector<1x1x384xf32> to vector<1x384xf32>
    %395 = arith.addf %392, %394 : vector<1x384xf32>
    %396 = vector.extract_strided_slice %389 {offsets = [0, 0], sizes = [1, 256], strides = [1, 1]} : vector<1x384xf32> to vector<1x256xf32>
    %397 = vector.extract_strided_slice %395 {offsets = [0, 0], sizes = [1, 256], strides = [1, 1]} : vector<1x384xf32> to vector<1x256xf32>
    %398 = arith.addf %396, %397 : vector<1x256xf32>
    %399 = arith.negf %398 : vector<1x256xf32>
    %400 = math.exp %399 : vector<1x256xf32>
    %cst_172 = arith.constant 1.000000e+00 : f32
    %401 = vector.broadcast %cst_172 : f32 to vector<1x256xf32>
    %402 = arith.addf %401, %400 : vector<1x256xf32>
    %403 = arith.divf %401, %402 : vector<1x256xf32>
    %404 = vector.extract_strided_slice %403 {offsets = [0, 0], sizes = [1, 128], strides = [1, 1]} : vector<1x256xf32> to vector<1x128xf32>
    %405 = vector.extract_strided_slice %403 {offsets = [0, 128], sizes = [1, 128], strides = [1, 1]} : vector<1x256xf32> to vector<1x128xf32>
    %406 = vector.extract_strided_slice %389 {offsets = [0, 256], sizes = [1, 128], strides = [1, 1]} : vector<1x384xf32> to vector<1x128xf32>
    %407 = vector.extract_strided_slice %395 {offsets = [0, 256], sizes = [1, 128], strides = [1, 1]} : vector<1x384xf32> to vector<1x128xf32>
    %408 = arith.mulf %404, %407 : vector<1x128xf32>
    %409 = arith.addf %406, %408 : vector<1x128xf32>
    %410 = math.tanh %409 : vector<1x128xf32>
    %cst_173 = arith.constant 1.000000e+00 : f32
    %411 = vector.broadcast %cst_173 : f32 to vector<1x128xf32>
    %412 = arith.subf %411, %405 : vector<1x128xf32>
    %413 = arith.mulf %412, %410 : vector<1x128xf32>
    %414 = arith.mulf %405, %387 : vector<1x128xf32>
    %415 = arith.addf %413, %414 : vector<1x128xf32>
    %c5_174 = arith.constant 5 : index
    %c0_175 = arith.constant 0 : index
    %416 = vector.load %arg10[%c5_174, %c0_175] : memref<8x128xf32, #tpu.memory_space<vmem>>, vector<1x128xf32>
    tpu.vector_store %arg10[%c5_174, %c0_175], %415 {strides = array<i32>} : memref<8x128xf32, #tpu.memory_space<vmem>>, vector<1x128xf32>,
    %417 = vector.extract_strided_slice %246 {offsets = [6, 0], sizes = [1, 384], strides = [1, 1]} : vector<8x384xf32> to vector<1x384xf32>
    %c1_176 = arith.constant 1 : index
    %c0_177 = arith.constant 0 : index
    %c0_178 = arith.constant 0 : index
    %418 = vector.load %arg2[%c1_176, %c0_177, %c0_178] : memref<2x128x384xf32, #tpu.memory_space<vmem>>, vector<1x128x384xf32>
    %419 = vector.shape_cast %418 : vector<1x128x384xf32> to vector<128x384xf32>
    %cst_179 = arith.constant dense<0.000000e+00> : vector<1x384xf32>
    %420 = tpu.matmul %415, %419, %cst_179 {dimension_numbers = #tpu.dot_dimension_numbers<[1], [0], [0], [1], [0, 0, 1, 1], [], []>} : vector<1x128xf32>, vector<128x384xf32>, vector<1x384xf32> -> vector<1x384xf32>
    %c1_180 = arith.constant 1 : index
    %c0_181 = arith.constant 0 : index
    %c0_182 = arith.constant 0 : index
    %421 = vector.load %arg4[%c1_180, %c0_181, %c0_182] : memref<2x1x384xf32, #tpu.memory_space<vmem>>, vector<1x1x384xf32>
    %422 = vector.shape_cast %421 : vector<1x1x384xf32> to vector<1x384xf32>
    %423 = arith.addf %420, %422 : vector<1x384xf32>
    %424 = vector.extract_strided_slice %417 {offsets = [0, 0], sizes = [1, 256], strides = [1, 1]} : vector<1x384xf32> to vector<1x256xf32>
    %425 = vector.extract_strided_slice %423 {offsets = [0, 0], sizes = [1, 256], strides = [1, 1]} : vector<1x384xf32> to vector<1x256xf32>
    %426 = arith.addf %424, %425 : vector<1x256xf32>
    %427 = arith.negf %426 : vector<1x256xf32>
    %428 = math.exp %427 : vector<1x256xf32>
    %cst_183 = arith.constant 1.000000e+00 : f32
    %429 = vector.broadcast %cst_183 : f32 to vector<1x256xf32>
    %430 = arith.addf %429, %428 : vector<1x256xf32>
    %431 = arith.divf %429, %430 : vector<1x256xf32>
    %432 = vector.extract_strided_slice %431 {offsets = [0, 0], sizes = [1, 128], strides = [1, 1]} : vector<1x256xf32> to vector<1x128xf32>
    %433 = vector.extract_strided_slice %431 {offsets = [0, 128], sizes = [1, 128], strides = [1, 1]} : vector<1x256xf32> to vector<1x128xf32>
    %434 = vector.extract_strided_slice %417 {offsets = [0, 256], sizes = [1, 128], strides = [1, 1]} : vector<1x384xf32> to vector<1x128xf32>
    %435 = vector.extract_strided_slice %423 {offsets = [0, 256], sizes = [1, 128], strides = [1, 1]} : vector<1x384xf32> to vector<1x128xf32>
    %436 = arith.mulf %432, %435 : vector<1x128xf32>
    %437 = arith.addf %434, %436 : vector<1x128xf32>
    %438 = math.tanh %437 : vector<1x128xf32>
    %cst_184 = arith.constant 1.000000e+00 : f32
    %439 = vector.broadcast %cst_184 : f32 to vector<1x128xf32>
    %440 = arith.subf %439, %433 : vector<1x128xf32>
    %441 = arith.mulf %440, %438 : vector<1x128xf32>
    %442 = arith.mulf %433, %415 : vector<1x128xf32>
    %443 = arith.addf %441, %442 : vector<1x128xf32>
    %c6_185 = arith.constant 6 : index
    %c0_186 = arith.constant 0 : index
    %444 = vector.load %arg10[%c6_185, %c0_186] : memref<8x128xf32, #tpu.memory_space<vmem>>, vector<1x128xf32>
    tpu.vector_store %arg10[%c6_185, %c0_186], %443 {strides = array<i32>} : memref<8x128xf32, #tpu.memory_space<vmem>>, vector<1x128xf32>,
    %445 = vector.extract_strided_slice %246 {offsets = [7, 0], sizes = [1, 384], strides = [1, 1]} : vector<8x384xf32> to vector<1x384xf32>
    %c1_187 = arith.constant 1 : index
    %c0_188 = arith.constant 0 : index
    %c0_189 = arith.constant 0 : index
    %446 = vector.load %arg2[%c1_187, %c0_188, %c0_189] : memref<2x128x384xf32, #tpu.memory_space<vmem>>, vector<1x128x384xf32>
    %447 = vector.shape_cast %446 : vector<1x128x384xf32> to vector<128x384xf32>
    %cst_190 = arith.constant dense<0.000000e+00> : vector<1x384xf32>
    %448 = tpu.matmul %443, %447, %cst_190 {dimension_numbers = #tpu.dot_dimension_numbers<[1], [0], [0], [1], [0, 0, 1, 1], [], []>} : vector<1x128xf32>, vector<128x384xf32>, vector<1x384xf32> -> vector<1x384xf32>
    %c1_191 = arith.constant 1 : index
    %c0_192 = arith.constant 0 : index
    %c0_193 = arith.constant 0 : index
    %449 = vector.load %arg4[%c1_191, %c0_192, %c0_193] : memref<2x1x384xf32, #tpu.memory_space<vmem>>, vector<1x1x384xf32>
    %450 = vector.shape_cast %449 : vector<1x1x384xf32> to vector<1x384xf32>
    %451 = arith.addf %448, %450 : vector<1x384xf32>
    %452 = vector.extract_strided_slice %445 {offsets = [0, 0], sizes = [1, 256], strides = [1, 1]} : vector<1x384xf32> to vector<1x256xf32>
    %453 = vector.extract_strided_slice %451 {offsets = [0, 0], sizes = [1, 256], strides = [1, 1]} : vector<1x384xf32> to vector<1x256xf32>
    %454 = arith.addf %452, %453 : vector<1x256xf32>
    %455 = arith.negf %454 : vector<1x256xf32>
    %456 = math.exp %455 : vector<1x256xf32>
    %cst_194 = arith.constant 1.000000e+00 : f32
    %457 = vector.broadcast %cst_194 : f32 to vector<1x256xf32>
    %458 = arith.addf %457, %456 : vector<1x256xf32>
    %459 = arith.divf %457, %458 : vector<1x256xf32>
    %460 = vector.extract_strided_slice %459 {offsets = [0, 0], sizes = [1, 128], strides = [1, 1]} : vector<1x256xf32> to vector<1x128xf32>
    %461 = vector.extract_strided_slice %459 {offsets = [0, 128], sizes = [1, 128], strides = [1, 1]} : vector<1x256xf32> to vector<1x128xf32>
    %462 = vector.extract_strided_slice %445 {offsets = [0, 256], sizes = [1, 128], strides = [1, 1]} : vector<1x384xf32> to vector<1x128xf32>
    %463 = vector.extract_strided_slice %451 {offsets = [0, 256], sizes = [1, 128], strides = [1, 1]} : vector<1x384xf32> to vector<1x128xf32>
    %464 = arith.mulf %460, %463 : vector<1x128xf32>
    %465 = arith.addf %462, %464 : vector<1x128xf32>
    %466 = math.tanh %465 : vector<1x128xf32>
    %cst_195 = arith.constant 1.000000e+00 : f32
    %467 = vector.broadcast %cst_195 : f32 to vector<1x128xf32>
    %468 = arith.subf %467, %461 : vector<1x128xf32>
    %469 = arith.mulf %468, %466 : vector<1x128xf32>
    %470 = arith.mulf %461, %443 : vector<1x128xf32>
    %471 = arith.addf %469, %470 : vector<1x128xf32>
    %c7_196 = arith.constant 7 : index
    %c0_197 = arith.constant 0 : index
    %472 = vector.load %arg10[%c7_196, %c0_197] : memref<8x128xf32, #tpu.memory_space<vmem>>, vector<1x128xf32>
    tpu.vector_store %arg10[%c7_196, %c0_197], %471 {strides = array<i32>} : memref<8x128xf32, #tpu.memory_space<vmem>>, vector<1x128xf32>,
    %c1_198 = arith.constant 1 : index
    %c0_199 = arith.constant 0 : index
    %c0_200 = arith.constant 0 : index
    %473 = vector.load %arg9[%c1_198, %c0_199, %c0_200] : memref<2x1x128xf32, #tpu.memory_space<vmem>>, vector<1x1x128xf32>
    %474 = vector.shape_cast %473 : vector<1x1x128xf32> to vector<1x128xf32>
    %475 = vector.shape_cast %471 : vector<1x128xf32> to vector<1x1x128xf32>
    tpu.vector_store %arg9[%c1_198, %c0_199, %c0_200], %475 {strides = array<i32>} : memref<2x1x128xf32, #tpu.memory_space<vmem>>, vector<1x1x128xf32>,
    %c0_201 = arith.constant 0 : index
    %c0_202 = arith.constant 0 : index
    %476 = vector.load %arg10[%c0_201, %c0_202] : memref<8x128xf32, #tpu.memory_space<vmem>>, vector<8x128xf32>
    %c0_203 = arith.constant 0 : index
    %c0_204 = arith.constant 0 : index
    %477 = vector.load %arg5[%c0_203, %c0_204] : memref<128x128xf32, #tpu.memory_space<vmem>>, vector<128x128xf32>
    %cst_205 = arith.constant dense<0.000000e+00> : vector<8x128xf32>
    %478 = tpu.matmul %476, %477, %cst_205 {dimension_numbers = #tpu.dot_dimension_numbers<[1], [0], [0], [1], [0, 0, 1, 1], [], []>} : vector<8x128xf32>, vector<128x128xf32>, vector<8x128xf32> -> vector<8x128xf32>
    %c0_206 = arith.constant 0 : index
    %c0_207 = arith.constant 0 : index
    %479 = vector.load %arg6[%c0_206, %c0_207] : memref<1x128xf32, #tpu.memory_space<vmem>>, vector<1x128xf32>
    %480 = vector.broadcast %479 : vector<1x128xf32> to vector<8x128xf32>
    %481 = arith.addf %478, %480 : vector<8x128xf32>
    %c0_208 = arith.constant 0 : index
    %c0_209 = arith.constant 0 : index
    %482 = vector.load %arg8[%c0_208, %c0_209] : memref<8x128xf32, #tpu.memory_space<vmem>>, vector<8x128xf32>
    tpu.vector_store %arg8[%c0_208, %c0_209], %481 {strides = array<i32>} : memref<8x128xf32, #tpu.memory_space<vmem>>, vector<8x128xf32>,
    return
  }
}

</mosaic_0001>

<llo_original>
// kernel: rnn_forward.1
$region0: #{rnn_forward.1}
  #allocation0 [shape = 'u32[]', space=smem, size = 0x4, offset = 0x4, fixed_abs, tag = 'smem constant byte address 0x4 - core index']
  #allocation1 [shape = 'u32[144,128]{1,0:T(1,128)}', space=vmem, size = 0x12000, scoped, tag = 'internal scratch']
  #allocation2 [shape = 'f32[8,128]{1,0:T(8,128)}', space=vmem, size = 0x1000, scoped, tag = 'scratch operand']
  %s0 = inlined_call_operand.vmem [shape: f32[8,128], index: 0, kind: input, shape index: {}]
  %s1 = inlined_call_operand.hbm [shape: f32[2,128,384], index: 1, kind: input, shape index: {}]
  %s2 = inlined_call_operand.hbm [shape: f32[2,128,384], index: 2, kind: input, shape index: {}]
  %s3 = inlined_call_operand.hbm [shape: f32[2,1,384], index: 3, kind: input, shape index: {}]
  %s4 = inlined_call_operand.hbm [shape: f32[2,1,384], index: 4, kind: input, shape index: {}]
  %s5 = inlined_call_operand.vmem [shape: f32[128,128], index: 5, kind: input, shape index: {}]
  %s6 = inlined_call_operand.vmem [shape: f32[1,128], index: 6, kind: input, shape index: {}]
  %s7 = inlined_call_operand.vmem [shape: f32[2,1,128], index: 7, kind: input, shape index: {}]
  %s8 = inlined_call_operand.hbm [shape: f32[8,128], index: 8, kind: output, shape index: {0}]
  %s9 = inlined_call_operand.hbm [shape: f32[2,1,128], index: 9, kind: output, shape index: {1}]
  %10 = xla_tuple %s8, %s9
  %s11 = sld [smem:[#allocation0]]
  $region66: #{rnn_forward.1} parent=0
    _
  %s13 = ssub.s32 1, %s11
  %s14 = scalar_select 0, %s13, %s11
  $region1: #{rnn_forward.1} parent=0
    #allocation3 [shape = 'u8[393216]{0}', space=vmem, size = 0x60000, scoped, tag = 'input window, operand 1, single buffered']
    #allocation4 [shape = 's32[1]{0}', space=sflag, size = 0x4, scoped, tag = 'scoped memory for rnn_forward.1']
    #allocation5 [shape = 's32[1]{0}', space=sflag, size = 0x4, scoped, tag = 'scoped memory for rnn_forward.1']
    #allocation6 [shape = 'u8[393216]{0}', space=vmem, size = 0x60000, scoped, tag = 'input window, operand 2, single buffered']
    #allocation7 [shape = 's32[1]{0}', space=sflag, size = 0x4, scoped, tag = 'scoped memory for rnn_forward.1']
    #allocation8 [shape = 'u8[3072]{0}', space=vmem, size = 0xc00, scoped, tag = 'input window, operand 3, single buffered']
    #allocation9 [shape = 'u8[3072]{0}', space=vmem, size = 0xc00, scoped, tag = 'input window, operand 4, single buffered']
    #allocation10 [shape = 's32[1]{0}', space=sflag, size = 0x4, scoped, tag = 'scoped memory for rnn_forward.1']
    #allocation11 [shape = 'u8[4096]{0}', space=vmem, size = 0x1000, scoped, tag = 'output window, operand 0, single buffered']
    #allocation12 [shape = 'u8[1024]{0}', space=vmem, size = 0x400, scoped, tag = 'output window, operand 1, single buffered']
    #allocation13 [shape = 's32[1]{0}', space=sflag, size = 0x4, scoped, tag = 'scoped memory for rnn_forward.1']
    %15 = vsyncpa [#allocation4], 0
    %16 = vsyncpa [#allocation7], 0
    %17 = vsyncpa [#allocation10], 0
    %18 = vsyncpa [#allocation5], 0
    %19 = vsyncpa [#allocation13], 0
    // Predicated region
    $region2: #{rnn_forward.1} parent=1 // pred_check
      _
    $region3: #{rnn_forward.1} parent=1 // pred_check_branch
      %21 = sbr.rel (0) target = $region5
    $region4: #{rnn_forward.1} parent=1 // pred_region
      _
    $region5: #{rnn_forward.1} parent=1 // pred_fallthru
      _
    // Predicated region
    $region6: #{rnn_forward.1} parent=1 // pred_check
      _
    $region7: #{rnn_forward.1} parent=1 // pred_check_branch
      %23 = sbr.rel (0) target = $region9
    $region8: #{rnn_forward.1} parent=1 // pred_region
      %s25 = ssub.s32 12288, 12288
      %26 = vsyncadd [#allocation4], %s25
      %s27 = sshll.u32 [#allocation3], 4
      %s28 = int_to_ptr.vmem [resolvable:$true] %s27
      %33 = dma.hbm_to_vmem [thread:$0]  %s1, 12288, %s28, [#allocation4], 384, 384, 24
    $region9: #{rnn_forward.1} parent=1 // pred_fallthru
      _
    // Predicated region
    $region10: #{rnn_forward.1} parent=1 // pred_check
      _
    $region11: #{rnn_forward.1} parent=1 // pred_check_branch
      %35 = sbr.rel (0) target = $region13
    $region12: #{rnn_forward.1} parent=1 // pred_region
      %s37 = ssub.s32 12288, 12288
      %38 = vsyncadd [#allocation7], %s37
      %s39 = sshll.u32 [#allocation6], 4
      %s40 = int_to_ptr.vmem [resolvable:$true] %s39
      %45 = dma.hbm_to_vmem [thread:$0]  %s2, 12288, %s40, [#allocation7], 384, 384, 24
    $region13: #{rnn_forward.1} parent=1 // pred_fallthru
      _
    // Predicated region
    $region14: #{rnn_forward.1} parent=1 // pred_check
      _
    $region15: #{rnn_forward.1} parent=1 // pred_check_branch
      %47 = sbr.rel (0) target = $region17
    $region16: #{rnn_forward.1} parent=1 // pred_region
      %s49 = ssub.s32 96, 96
      %50 = vsyncadd [#allocation7], %s49
      %s51 = sshll.u32 [#allocation8], 4
      %s52 = int_to_ptr.vmem [resolvable:$true] %s51
      %57 = dma.hbm_to_vmem [thread:$0]  %s3, 96, %s52, [#allocation7], 48, 48, 3
    $region17: #{rnn_forward.1} parent=1 // pred_fallthru
      _
    // Predicated region
    $region18: #{rnn_forward.1} parent=1 // pred_check
      _
    $region19: #{rnn_forward.1} parent=1 // pred_check_branch
      %59 = sbr.rel (0) target = $region21
    $region20: #{rnn_forward.1} parent=1 // pred_region
      %s61 = ssub.s32 96, 96
      %62 = vsyncadd [#allocation10], %s61
      %s63 = sshll.u32 [#allocation9], 4
      %s64 = int_to_ptr.vmem [resolvable:$true] %s63
      %69 = dma.hbm_to_vmem [thread:$0]  %s4, 96, %s64, [#allocation10], 48, 48, 3
    $region21: #{rnn_forward.1} parent=1 // pred_fallthru
      _
    // Predicated region
    $region22: #{rnn_forward.1} parent=1 // pred_check
      _
    $region23: #{rnn_forward.1} parent=1 // pred_check_branch
      %71 = sbr.rel (0) target = $region25
    $region24: #{rnn_forward.1} parent=1 // pred_region
      _
    $region25: #{rnn_forward.1} parent=1 // pred_fallthru
      _
    // Predicated region
    $region26: #{rnn_forward.1} parent=1 // pred_check
      _
    $region27: #{rnn_forward.1} parent=1 // pred_check_branch
      %73 = sbr.rel (0) target = $region29
    $region28: #{rnn_forward.1} parent=1 // pred_region
      _
    $region29: #{rnn_forward.1} parent=1 // pred_fallthru
      _
    // Predicated region
    $region30: #{rnn_forward.1} parent=1 // pred_check
      _
    $region31: #{rnn_forward.1} parent=1 // pred_check_branch
      %75 = sbr.rel (0) target = $region33
    $region32: #{rnn_forward.1} parent=1 // pred_region
      _
    $region33: #{rnn_forward.1} parent=1 // pred_fallthru
      _
    // Predicated region
    $region34: #{rnn_forward.1} parent=1 // pred_check
      _
    $region35: #{rnn_forward.1} parent=1 // pred_check_branch
      %77 = sbr.rel (0) target = $region37
    $region36: #{rnn_forward.1} parent=1 // pred_region
      %78 = dma.done [#allocation4], 12288
    $region37: #{rnn_forward.1} parent=1 // pred_fallthru
      _
    // Predicated region
    $region38: #{rnn_forward.1} parent=1 // pred_check
      _
    $region39: #{rnn_forward.1} parent=1 // pred_check_branch
      %80 = sbr.rel (0) target = $region41
    $region40: #{rnn_forward.1} parent=1 // pred_region
      %81 = dma.done [#allocation7], 12288
    $region41: #{rnn_forward.1} parent=1 // pred_fallthru
      _
    // Predicated region
    $region42: #{rnn_forward.1} parent=1 // pred_check
      _
    $region43: #{rnn_forward.1} parent=1 // pred_check_branch
      %83 = sbr.rel (0) target = $region45
    $region44: #{rnn_forward.1} parent=1 // pred_region
      %84 = dma.done [#allocation7], 96
    $region45: #{rnn_forward.1} parent=1 // pred_fallthru
      _
    // Predicated region
    $region46: #{rnn_forward.1} parent=1 // pred_check
      _
    $region47: #{rnn_forward.1} parent=1 // pred_check_branch
      %86 = sbr.rel (0) target = $region49
    $region48: #{rnn_forward.1} parent=1 // pred_region
      %87 = dma.done [#allocation10], 96
    $region49: #{rnn_forward.1} parent=1 // pred_fallthru
      _
    %v88 = vld [vmem:[%s0] sm:$0xff]
    %89 = vst [vmem:[#allocation2] sm:$0xff] %v88
    %v90 = vld [vmem:[#allocation2] sm:$0xff]
    %v91 = vld [vmem:[#allocation3] sm:$0xff]
    %v92 = vld [vmem:[#allocation3 + $0x8] sm:$0xff]
    %v93 = vld [vmem:[#allocation3 + $0x10] sm:$0xff]
    %v94 = vld [vmem:[#allocation3 + $0x18] sm:$0xff]
    %v95 = vld [vmem:[#allocation3 + $0x20] sm:$0xff]
    %v96 = vld [vmem:[#allocation3 + $0x28] sm:$0xff]
    %v97 = vld [vmem:[#allocation3 + $0x30] sm:$0xff]
    %v98 = vld [vmem:[#allocation3 + $0x38] sm:$0xff]
    %v99 = vld [vmem:[#allocation3 + $0x40] sm:$0xff]
    %v100 = vld [vmem:[#allocation3 + $0x48] sm:$0xff]
    %v101 = vld [vmem:[#allocation3 + $0x50] sm:$0xff]
    %v102 = vld [vmem:[#allocation3 + $0x58] sm:$0xff]
    %v103 = vld [vmem:[#allocation3 + $0x60] sm:$0xff]
    %v104 = vld [vmem:[#allocation3 + $0x68] sm:$0xff]
    %v105 = vld [vmem:[#allocation3 + $0x70] sm:$0xff]
    %v106 = vld [vmem:[#allocation3 + $0x78] sm:$0xff]
    %v107 = vld [vmem:[#allocation3 + $0x80] sm:$0xff]
    %v108 = vld [vmem:[#allocation3 + $0x88] sm:$0xff]
    %v109 = vld [vmem:[#allocation3 + $0x90] sm:$0xff]
    %v110 = vld [vmem:[#allocation3 + $0x98] sm:$0xff]
    %v111 = vld [vmem:[#allocation3 + $0xa0] sm:$0xff]
    %v112 = vld [vmem:[#allocation3 + $0xa8] sm:$0xff]
    %v113 = vld [vmem:[#allocation3 + $0xb0] sm:$0xff]
    %v114 = vld [vmem:[#allocation3 + $0xb8] sm:$0xff]
    %v115 = vld [vmem:[#allocation3 + $0xc0] sm:$0xff]
    %v116 = vld [vmem:[#allocation3 + $0xc8] sm:$0xff]
    %v117 = vld [vmem:[#allocation3 + $0xd0] sm:$0xff]
    %v118 = vld [vmem:[#allocation3 + $0xd8] sm:$0xff]
    %v119 = vld [vmem:[#allocation3 + $0xe0] sm:$0xff]
    %v120 = vld [vmem:[#allocation3 + $0xe8] sm:$0xff]
    %v121 = vld [vmem:[#allocation3 + $0xf0] sm:$0xff]
    %v122 = vld [vmem:[#allocation3 + $0xf8] sm:$0xff]
    %v123 = vld [vmem:[#allocation3 + $0x100] sm:$0xff]
    %v124 = vld [vmem:[#allocation3 + $0x108] sm:$0xff]
    %v125 = vld [vmem:[#allocation3 + $0x110] sm:$0xff]
    %v126 = vld [vmem:[#allocation3 + $0x118] sm:$0xff]
    %v127 = vld [vmem:[#allocation3 + $0x120] sm:$0xff]
    %v128 = vld [vmem:[#allocation3 + $0x128] sm:$0xff]
    %v129 = vld [vmem:[#allocation3 + $0x130] sm:$0xff]
    %v130 = vld [vmem:[#allocation3 + $0x138] sm:$0xff]
    %v131 = vld [vmem:[#allocation3 + $0x140] sm:$0xff]
    %v132 = vld [vmem:[#allocation3 + $0x148] sm:$0xff]
    %v133 = vld [vmem:[#allocation3 + $0x150] sm:$0xff]
    %v134 = vld [vmem:[#allocation3 + $0x158] sm:$0xff]
    %v135 = vld [vmem:[#allocation3 + $0x160] sm:$0xff]
    %v136 = vld [vmem:[#allocation3 + $0x168] sm:$0xff]
    %v137 = vld [vmem:[#allocation3 + $0x170] sm:$0xff]
    %v138 = vld [vmem:[#allocation3 + $0x178] sm:$0xff]
    %v139 = vld [vmem:[#allocation8] sm:$0x7]
    %v141 = vlaneseq
    %v142 = vshrl.u32 %v141, 7
    %v143 = vsub.s32 0, %v142
    %v144 = vrot.slane %v139, %v143
    %v145 = vlaneseq
    %v146 = vshrl.u32 %v145, 7
    %v147 = vsub.s32 1, %v146
    %v148 = vrot.slane %v139, %v147
    %v149 = vlaneseq
    %v150 = vshrl.u32 %v149, 7
    %v151 = vsub.s32 2, %v150
    %v152 = vrot.slane %v139, %v151
    %156 = vmatprep.subr.mxu0 %v92
    %157 = vmatpush1.msra.mxu0 %v91
    %158 = vmatprep.subr.mxu0 %v95
    %159 = vmatpush1.msra.mxu0 %v94
    %160 = vmatprep.subr.mxu0 %v98
    %161 = vmatpush1.msra.mxu0 %v97
    %162 = vmatprep.subr.mxu0 %v101
    %163 = vmatpush1.msra.mxu0 %v100
    %164 = vmatprep.subr.mxu0 %v104
    %165 = vmatpush1.msra.mxu0 %v103
    %166 = vmatprep.subr.mxu0 %v107
    %167 = vmatpush1.msra.mxu0 %v106
    %168 = vmatprep.subr.mxu0 %v110
    %169 = vmatpush1.msra.mxu0 %v109
    %170 = vmatprep.subr.mxu0 %v113
    %171 = vmatpush1.msra.mxu0 %v112
    %172 = vmatprep.subr.mxu0 %v116
    %173 = vmatpush1.msra.mxu0 %v115
    %174 = vmatprep.subr.mxu0 %v119
    %175 = vmatpush1.msra.mxu0 %v118
    %176 = vmatprep.subr.mxu0 %v122
    %177 = vmatpush1.msra.mxu0 %v121
    %178 = vmatprep.subr.mxu0 %v125
    %179 = vmatpush1.msra.mxu0 %v124
    %180 = vmatprep.subr.mxu0 %v128
    %181 = vmatpush1.msra.mxu0 %v127
    %182 = vmatprep.subr.mxu0 %v131
    %183 = vmatpush1.msra.mxu0 %v130
    %184 = vmatprep.subr.mxu0 %v134
    %185 = vmatpush1.msra.mxu0 %v133
    %186 = vmatprep.subr.mxu0 %v137
    %187 = vmatpush1.msra.mxu0 %v136
    %188 = vmatprep.subr.mxu0 0.0
    %189 = vmatpush1.msra.mxu0 0.0
    %190 = vmatprep.subr.mxu0 0.0
    %191 = vmatpush1.msra.mxu0 0.0
    %192 = vmatprep.subr.mxu0 0.0
    %193 = vmatpush1.msra.mxu0 0.0
    %194 = vmatprep.subr.mxu0 0.0
    %195 = vmatpush1.msra.mxu0 0.0
    %196 = vmatprep.subr.mxu0 0.0
    %197 = vmatpush1.msra.mxu0 0.0
    %198 = vmatprep.subr.mxu0 0.0
    %199 = vmatpush1.msra.mxu0 0.0
    %200 = vmatprep.subr.mxu0 0.0
    %201 = vmatpush1.msra.mxu0 0.0
    %202 = vmatprep.subr.mxu0 0.0
    %203 = vmatpush1.msra.mxu0 0.0
    %204 = vmatprep.subr.mxu0 0.0
    %205 = vmatpush1.msra.mxu0 0.0
    %206 = vmatprep.subr.mxu0 0.0
    %207 = vmatpush1.msra.mxu0 0.0
    %208 = vmatprep.subr.mxu0 0.0
    %209 = vmatpush1.msra.mxu0 0.0
    %210 = vmatprep.subr.mxu0 0.0
    %211 = vmatpush1.msra.mxu0 0.0
    %212 = vmatprep.subr.mxu0 0.0
    %213 = vmatpush1.msra.mxu0 0.0
    %214 = vmatprep.subr.mxu0 0.0
    %215 = vmatpush1.msra.mxu0 0.0
    %216 = vmatprep.subr.mxu0 0.0
    %217 = vmatpush1.msra.mxu0 0.0
    %218 = vmatprep.subr.mxu0 0.0
    %219 = vmatpush1.msra.mxu0 0.0
    %220 = vmatprep.mubr.f32.mxu0 0.0
    %221 = vmatmul.mubr.f32.gmra.mrb[0].mxu0 %v90
    %v222 = vpop.f32.mrb[0].mxu0
    %v223 = vadd.f32 %v144, %v222
    %v224 = vpop.f32.mrb[0].mxu0
    %v225 = vadd.f32 %v148, %v224
    %226 = vdwg.mxu0
    %227 = vmatprep.subr.mxu0 0.0
    %228 = vmatpush1.msra.mxu0 %v93
    %229 = vmatprep.subr.mxu0 0.0
    %230 = vmatpush1.msra.mxu0 %v96
    %231 = vmatprep.subr.mxu0 0.0
    %232 = vmatpush1.msra.mxu0 %v99
    %233 = vmatprep.subr.mxu0 0.0
    %234 = vmatpush1.msra.mxu0 %v102
    %235 = vmatprep.subr.mxu0 0.0
    %236 = vmatpush1.msra.mxu0 %v105
    %237 = vmatprep.subr.mxu0 0.0
    %238 = vmatpush1.msra.mxu0 %v108
    %239 = vmatprep.subr.mxu0 0.0
    %240 = vmatpush1.msra.mxu0 %v111
    %241 = vmatprep.subr.mxu0 0.0
    %242 = vmatpush1.msra.mxu0 %v114
    %243 = vmatprep.subr.mxu0 0.0
    %244 = vmatpush1.msra.mxu0 %v117
    %245 = vmatprep.subr.mxu0 0.0
    %246 = vmatpush1.msra.mxu0 %v120
    %247 = vmatprep.subr.mxu0 0.0
    %248 = vmatpush1.msra.mxu0 %v123
    %249 = vmatprep.subr.mxu0 0.0
    %250 = vmatpush1.msra.mxu0 %v126
    %251 = vmatprep.subr.mxu0 0.0
    %252 = vmatpush1.msra.mxu0 %v129
    %253 = vmatprep.subr.mxu0 0.0
    %254 = vmatpush1.msra.mxu0 %v132
    %255 = vmatprep.subr.mxu0 0.0
    %256 = vmatpush1.msra.mxu0 %v135
    %257 = vmatprep.subr.mxu0 0.0
    %258 = vmatpush1.msra.mxu0 %v138
    %259 = vmatprep.subr.mxu0 0.0
    %260 = vmatpush1.msra.mxu0 0.0
    %261 = vmatprep.subr.mxu0 0.0
    %262 = vmatpush1.msra.mxu0 0.0
    %263 = vmatprep.subr.mxu0 0.0
    %264 = vmatpush1.msra.mxu0 0.0
    %265 = vmatprep.subr.mxu0 0.0
    %266 = vmatpush1.msra.mxu0 0.0
    %267 = vmatprep.subr.mxu0 0.0
    %268 = vmatpush1.msra.mxu0 0.0
    %269 = vmatprep.subr.mxu0 0.0
    %270 = vmatpush1.msra.mxu0 0.0
    %271 = vmatprep.subr.mxu0 0.0
    %272 = vmatpush1.msra.mxu0 0.0
    %273 = vmatprep.subr.mxu0 0.0
    %274 = vmatpush1.msra.mxu0 0.0
    %275 = vmatprep.subr.mxu0 0.0
    %276 = vmatpush1.msra.mxu0 0.0
    %277 = vmatprep.subr.mxu0 0.0
    %278 = vmatpush1.msra.mxu0 0.0
    %279 = vmatprep.subr.mxu0 0.0
    %280 = vmatpush1.msra.mxu0 0.0
    %281 = vmatprep.subr.mxu0 0.0
    %282 = vmatpush1.msra.mxu0 0.0
    %283 = vmatprep.subr.mxu0 0.0
    %284 = vmatpush1.msra.mxu0 0.0
    %285 = vmatprep.subr.mxu0 0.0
    %286 = vmatpush1.msra.mxu0 0.0
    %287 = vmatprep.subr.mxu0 0.0
    %288 = vmatpush1.msra.mxu0 0.0
    %289 = vmatprep.subr.mxu0 0.0
    %290 = vmatpush1.msra.mxu0 0.0
    %291 = vmatprep.mubr.f32.mxu0 0.0
    %292 = vmatmul.mubr.f32.gmra.mrb[0].mxu0 %v90
    %v293 = vpop.f32.mrb[0].mxu0
    %v294 = vadd.f32 %v152, %v293
    %v295 = vpop.f32.mrb[0].mxu0
    %296 = vdwg.mxu0
    %v297 = vld [vmem:[%s7] sm:$0x1]
    %v298 = vld [vmem:[#allocation6] sm:$0xff]
    %v299 = vld [vmem:[#allocation6 + $0x8] sm:$0xff]
    %v300 = vld [vmem:[#allocation6 + $0x10] sm:$0xff]
    %v301 = vld [vmem:[#allocation6 + $0x18] sm:$0xff]
    %v302 = vld [vmem:[#allocation6 + $0x20] sm:$0xff]
    %v303 = vld [vmem:[#allocation6 + $0x28] sm:$0xff]
    %v304 = vld [vmem:[#allocation6 + $0x30] sm:$0xff]
    %v305 = vld [vmem:[#allocation6 + $0x38] sm:$0xff]
    %v306 = vld [vmem:[#allocation6 + $0x40] sm:$0xff]
    %v307 = vld [vmem:[#allocation6 + $0x48] sm:$0xff]
    %v308 = vld [vmem:[#allocation6 + $0x50] sm:$0xff]
    %v309 = vld [vmem:[#allocation6 + $0x58] sm:$0xff]
    %v310 = vld [vmem:[#allocation6 + $0x60] sm:$0xff]
    %v311 = vld [vmem:[#allocation6 + $0x68] sm:$0xff]
    %v312 = vld [vmem:[#allocation6 + $0x70] sm:$0xff]
    %v313 = vld [vmem:[#allocation6 + $0x78] sm:$0xff]
    %v314 = vld [vmem:[#allocation6 + $0x80] sm:$0xff]
    %v315 = vld [vmem:[#allocation6 + $0x88] sm:$0xff]
    %v316 = vld [vmem:[#allocation6 + $0x90] sm:$0xff]
    %v317 = vld [vmem:[#allocation6 + $0x98] sm:$0xff]
    %v318 = vld [vmem:[#allocation6 + $0xa0] sm:$0xff]
    %v319 = vld [vmem:[#allocation6 + $0xa8] sm:$0xff]
    %v320 = vld [vmem:[#allocation6 + $0xb0] sm:$0xff]
    %v321 = vld [vmem:[#allocation6 + $0xb8] sm:$0xff]
    %v322 = vld [vmem:[#allocation6 + $0xc0] sm:$0xff]
    %v323 = vld [vmem:[#allocation6 + $0xc8] sm:$0xff]
    %v324 = vld [vmem:[#allocation6 + $0xd0] sm:$0xff]
    %v325 = vld [vmem:[#allocation6 + $0xd8] sm:$0xff]
    %v326 = vld [vmem:[#allocation6 + $0xe0] sm:$0xff]
    %v327 = vld [vmem:[#allocation6 + $0xe8] sm:$0xff]
    %v328 = vld [vmem:[#allocation6 + $0xf0] sm:$0xff]
    %v329 = vld [vmem:[#allocation6 + $0xf8] sm:$0xff]
    %v330 = vld [vmem:[#allocation6 + $0x100] sm:$0xff]
    %v331 = vld [vmem:[#allocation6 + $0x108] sm:$0xff]
    %v332 = vld [vmem:[#allocation6 + $0x110] sm:$0xff]
    %v333 = vld [vmem:[#allocation6 + $0x118] sm:$0xff]
    %v334 = vld [vmem:[#allocation6 + $0x120] sm:$0xff]
    %v335 = vld [vmem:[#allocation6 + $0x128] sm:$0xff]
    %v336 = vld [vmem:[#allocation6 + $0x130] sm:$0xff]
    %v337 = vld [vmem:[#allocation6 + $0x138] sm:$0xff]
    %v338 = vld [vmem:[#allocation6 + $0x140] sm:$0xff]
    %v339 = vld [vmem:[#allocation6 + $0x148] sm:$0xff]
    %v340 = vld [vmem:[#allocation6 + $0x150] sm:$0xff]
    %v341 = vld [vmem:[#allocation6 + $0x158] sm:$0xff]
    %v342 = vld [vmem:[#allocation6 + $0x160] sm:$0xff]
    %v343 = vld [vmem:[#allocation6 + $0x168] sm:$0xff]
    %v344 = vld [vmem:[#allocation6 + $0x170] sm:$0xff]
    %v345 = vld [vmem:[#allocation6 + $0x178] sm:$0xff]
    %v346 = vld [vmem:[#allocation9] sm:$0x7]
    %v348 = vlaneseq
    %v349 = vshrl.u32 %v348, 7
    %v350 = vsub.s32 0, %v349
    %v351 = vrot.slane %v346, %v350
    %v352 = vlaneseq
    %v353 = vshrl.u32 %v352, 7
    %v354 = vsub.s32 1, %v353
    %v355 = vrot.slane %v346, %v354
    %v356 = vlaneseq
    %v357 = vshrl.u32 %v356, 7
    %v358 = vsub.s32 2, %v357
    %v359 = vrot.slane %v346, %v358
    %363 = vmatprep.subr.mxu0 %v299
    %364 = vmatpush1.msra.mxu0 %v298
    %365 = vmatprep.subr.mxu0 %v302
    %366 = vmatpush1.msra.mxu0 %v301
    %367 = vmatprep.subr.mxu0 %v305
    %368 = vmatpush1.msra.mxu0 %v304
    %369 = vmatprep.subr.mxu0 %v308
    %370 = vmatpush1.msra.mxu0 %v307
    %371 = vmatprep.subr.mxu0 %v311
    %372 = vmatpush1.msra.mxu0 %v310
    %373 = vmatprep.subr.mxu0 %v314
    %374 = vmatpush1.msra.mxu0 %v313
    %375 = vmatprep.subr.mxu0 %v317
    %376 = vmatpush1.msra.mxu0 %v316
    %377 = vmatprep.subr.mxu0 %v320
    %378 = vmatpush1.msra.mxu0 %v319
    %379 = vmatprep.subr.mxu0 %v323
    %380 = vmatpush1.msra.mxu0 %v322
    %381 = vmatprep.subr.mxu0 %v326
    %382 = vmatpush1.msra.mxu0 %v325
    %383 = vmatprep.subr.mxu0 %v329
    %384 = vmatpush1.msra.mxu0 %v328
    %385 = vmatprep.subr.mxu0 %v332
    %386 = vmatpush1.msra.mxu0 %v331
    %387 = vmatprep.subr.mxu0 %v335
    %388 = vmatpush1.msra.mxu0 %v334
    %389 = vmatprep.subr.mxu0 %v338
    %390 = vmatpush1.msra.mxu0 %v337
    %391 = vmatprep.subr.mxu0 %v341
    %392 = vmatpush1.msra.mxu0 %v340
    %393 = vmatprep.subr.mxu0 %v344
    %394 = vmatpush1.msra.mxu0 %v343
    %395 = vmatprep.subr.mxu0 0.0
    %396 = vmatpush1.msra.mxu0 0.0
    %397 = vmatprep.subr.mxu0 0.0
    %398 = vmatpush1.msra.mxu0 0.0
    %399 = vmatprep.subr.mxu0 0.0
    %400 = vmatpush1.msra.mxu0 0.0
    %401 = vmatprep.subr.mxu0 0.0
    %402 = vmatpush1.msra.mxu0 0.0
    %403 = vmatprep.subr.mxu0 0.0
    %404 = vmatpush1.msra.mxu0 0.0
    %405 = vmatprep.subr.mxu0 0.0
    %406 = vmatpush1.msra.mxu0 0.0
    %407 = vmatprep.subr.mxu0 0.0
    %408 = vmatpush1.msra.mxu0 0.0
    %409 = vmatprep.subr.mxu0 0.0
    %410 = vmatpush1.msra.mxu0 0.0
    %411 = vmatprep.subr.mxu0 0.0
    %412 = vmatpush1.msra.mxu0 0.0
    %413 = vmatprep.subr.mxu0 0.0
    %414 = vmatpush1.msra.mxu0 0.0
    %415 = vmatprep.subr.mxu0 0.0
    %416 = vmatpush1.msra.mxu0 0.0
    %417 = vmatprep.subr.mxu0 0.0
    %418 = vmatpush1.msra.mxu0 0.0
    %419 = vmatprep.subr.mxu0 0.0
    %420 = vmatpush1.msra.mxu0 0.0
    %421 = vmatprep.subr.mxu0 0.0
    %422 = vmatpush1.msra.mxu0 0.0
    %423 = vmatprep.subr.mxu0 0.0
    %424 = vmatpush1.msra.mxu0 0.0
    %425 = vmatprep.subr.mxu0 0.0
    %426 = vmatpush1.msra.mxu0 0.0
    %427 = vmatprep.mubr.f32.mxu0 0.0
    %428 = vmatmul.mubr.f32.gmra.mrb[0].mxu0 %v297
    %v429 = vpop.f32.mrb[0].mxu0
    %v430 = vadd.f32 %v351, %v429
    %v431 = vpop.f32.mrb[0].mxu0
    %v432 = vadd.f32 %v355, %v431
    %433 = vdwg.mxu0
    %434 = vmatprep.subr.mxu0 0.0
    %435 = vmatpush1.msra.mxu0 %v300
    %436 = vmatprep.subr.mxu0 0.0
    %437 = vmatpush1.msra.mxu0 %v303
    %438 = vmatprep.subr.mxu0 0.0
    %439 = vmatpush1.msra.mxu0 %v306
    %440 = vmatprep.subr.mxu0 0.0
    %441 = vmatpush1.msra.mxu0 %v309
    %442 = vmatprep.subr.mxu0 0.0
    %443 = vmatpush1.msra.mxu0 %v312
    %444 = vmatprep.subr.mxu0 0.0
    %445 = vmatpush1.msra.mxu0 %v315
    %446 = vmatprep.subr.mxu0 0.0
    %447 = vmatpush1.msra.mxu0 %v318
    %448 = vmatprep.subr.mxu0 0.0
    %449 = vmatpush1.msra.mxu0 %v321
    %450 = vmatprep.subr.mxu0 0.0
    %451 = vmatpush1.msra.mxu0 %v324
    %452 = vmatprep.subr.mxu0 0.0
    %453 = vmatpush1.msra.mxu0 %v327
    %454 = vmatprep.subr.mxu0 0.0
    %455 = vmatpush1.msra.mxu0 %v330
    %456 = vmatprep.subr.mxu0 0.0
    %457 = vmatpush1.msra.mxu0 %v333
    %458 = vmatprep.subr.mxu0 0.0
    %459 = vmatpush1.msra.mxu0 %v336
    %460 = vmatprep.subr.mxu0 0.0
    %461 = vmatpush1.msra.mxu0 %v339
    %462 = vmatprep.subr.mxu0 0.0
    %463 = vmatpush1.msra.mxu0 %v342
    %464 = vmatprep.subr.mxu0 0.0
    %465 = vmatpush1.msra.mxu0 %v345
    %466 = vmatprep.subr.mxu0 0.0
    %467 = vmatpush1.msra.mxu0 0.0
    %468 = vmatprep.subr.mxu0 0.0
    %469 = vmatpush1.msra.mxu0 0.0
    %470 = vmatprep.subr.mxu0 0.0
    %471 = vmatpush1.msra.mxu0 0.0
    %472 = vmatprep.subr.mxu0 0.0
    %473 = vmatpush1.msra.mxu0 0.0
    %474 = vmatprep.subr.mxu0 0.0
    %475 = vmatpush1.msra.mxu0 0.0
    %476 = vmatprep.subr.mxu0 0.0
    %477 = vmatpush1.msra.mxu0 0.0
    %478 = vmatprep.subr.mxu0 0.0
    %479 = vmatpush1.msra.mxu0 0.0
    %480 = vmatprep.subr.mxu0 0.0
    %481 = vmatpush1.msra.mxu0 0.0
    %482 = vmatprep.subr.mxu0 0.0
    %483 = vmatpush1.msra.mxu0 0.0
    %484 = vmatprep.subr.mxu0 0.0
    %485 = vmatpush1.msra.mxu0 0.0
    %486 = vmatprep.subr.mxu0 0.0
    %487 = vmatpush1.msra.mxu0 0.0
    %488 = vmatprep.subr.mxu0 0.0
    %489 = vmatpush1.msra.mxu0 0.0
    %490 = vmatprep.subr.mxu0 0.0
    %491 = vmatpush1.msra.mxu0 0.0
    %492 = vmatprep.subr.mxu0 0.0
    %493 = vmatpush1.msra.mxu0 0.0
    %494 = vmatprep.subr.mxu0 0.0
    %495 = vmatpush1.msra.mxu0 0.0
    %496 = vmatprep.subr.mxu0 0.0
    %497 = vmatpush1.msra.mxu0 0.0
    %498 = vmatprep.mubr.f32.mxu0 0.0
    %499 = vmatmul.mubr.f32.gmra.mrb[0].mxu0 %v297
    %v500 = vpop.f32.mrb[0].mxu0
    %v501 = vadd.f32 %v359, %v500
    %v502 = vpop.f32.mrb[0].mxu0
    %503 = vdwg.mxu0
    %v504 = vadd.f32 %v223, %v430
    %v505 = vadd.f32 %v225, %v432
    %v506 = vxor.u32 %v504, 2147483648
    %v507 = vxor.u32 %v505, 2147483648
    %v508 = vmul.f32 %v506, 1.442695
    %v509 = vpow.pop %v508
    %v510 = vmul.f32 %v507, 1.442695
    %v511 = vpow.pop %v510
    %v512 = vadd.f32 %v509, 1.0
    %v513 = vadd.f32 %v511, 1.0
    %v514 = vrcp.pop %v512
    %v515 = vmul.f32 1.0, %v514
    %v516 = vrcp.pop %v513
    %v517 = vmul.f32 1.0, %v516
    %v518 = vmul.f32 %v515, %v501
    %v519 = vadd.f32 %v294, %v518
    %v520 = vtanh.pop %v519
    %v521 = vsub.f32 1.0, %v517
    %v522 = vmul.f32 %v521, %v520
    %v523 = vmul.f32 %v517, %v297
    %v524 = vadd.f32 %v522, %v523
    %525 = vst [vmem:[#allocation2] sm:$0x1] %v524
    %v526 = vld [vmem:[#allocation6] sm:$0xff]
    %v527 = vld [vmem:[#allocation6 + $0x8] sm:$0xff]
    %v528 = vld [vmem:[#allocation6 + $0x10] sm:$0xff]
    %v529 = vld [vmem:[#allocation6 + $0x18] sm:$0xff]
    %v530 = vld [vmem:[#allocation6 + $0x20] sm:$0xff]
    %v531 = vld [vmem:[#allocation6 + $0x28] sm:$0xff]
    %v532 = vld [vmem:[#allocation6 + $0x30] sm:$0xff]
    %v533 = vld [vmem:[#allocation6 + $0x38] sm:$0xff]
    %v534 = vld [vmem:[#allocation6 + $0x40] sm:$0xff]
    %v535 = vld [vmem:[#allocation6 + $0x48] sm:$0xff]
    %v536 = vld [vmem:[#allocation6 + $0x50] sm:$0xff]
    %v537 = vld [vmem:[#allocation6 + $0x58] sm:$0xff]
    %v538 = vld [vmem:[#allocation6 + $0x60] sm:$0xff]
    %v539 = vld [vmem:[#allocation6 + $0x68] sm:$0xff]
    %v540 = vld [vmem:[#allocation6 + $0x70] sm:$0xff]
    %v541 = vld [vmem:[#allocation6 + $0x78] sm:$0xff]
    %v542 = vld [vmem:[#allocation6 + $0x80] sm:$0xff]
    %v543 = vld [vmem:[#allocation6 + $0x88] sm:$0xff]
    %v544 = vld [vmem:[#allocation6 + $0x90] sm:$0xff]
    %v545 = vld [vmem:[#allocation6 + $0x98] sm:$0xff]
    %v546 = vld [vmem:[#allocation6 + $0xa0] sm:$0xff]
    %v547 = vld [vmem:[#allocation6 + $0xa8] sm:$0xff]
    %v548 = vld [vmem:[#allocation6 + $0xb0] sm:$0xff]
    %v549 = vld [vmem:[#allocation6 + $0xb8] sm:$0xff]
    %v550 = vld [vmem:[#allocation6 + $0xc0] sm:$0xff]
    %v551 = vld [vmem:[#allocation6 + $0xc8] sm:$0xff]
    %v552 = vld [vmem:[#allocation6 + $0xd0] sm:$0xff]
    %v553 = vld [vmem:[#allocation6 + $0xd8] sm:$0xff]
    %v554 = vld [vmem:[#allocation6 + $0xe0] sm:$0xff]
    %v555 = vld [vmem:[#allocation6 + $0xe8] sm:$0xff]
    %v556 = vld [vmem:[#allocation6 + $0xf0] sm:$0xff]
    %v557 = vld [vmem:[#allocation6 + $0xf8] sm:$0xff]
    %v558 = vld [vmem:[#allocation6 + $0x100] sm:$0xff]
    %v559 = vld [vmem:[#allocation6 + $0x108] sm:$0xff]
    %v560 = vld [vmem:[#allocation6 + $0x110] sm:$0xff]
    %v561 = vld [vmem:[#allocation6 + $0x118] sm:$0xff]
    %v562 = vld [vmem:[#allocation6 + $0x120] sm:$0xff]
    %v563 = vld [vmem:[#allocation6 + $0x128] sm:$0xff]
    %v564 = vld [vmem:[#allocation6 + $0x130] sm:$0xff]
    %v565 = vld [vmem:[#allocation6 + $0x138] sm:$0xff]
    %v566 = vld [vmem:[#allocation6 + $0x140] sm:$0xff]
    %v567 = vld [vmem:[#allocation6 + $0x148] sm:$0xff]
    %v568 = vld [vmem:[#allocation6 + $0x150] sm:$0xff]
    %v569 = vld [vmem:[#allocation6 + $0x158] sm:$0xff]
    %v570 = vld [vmem:[#allocation6 + $0x160] sm:$0xff]
    %v571 = vld [vmem:[#allocation6 + $0x168] sm:$0xff]
    %v572 = vld [vmem:[#allocation6 + $0x170] sm:$0xff]
    %v573 = vld [vmem:[#allocation6 + $0x178] sm:$0xff]
    %v574 = vld [vmem:[#allocation9] sm:$0x7]
    %v576 = vlaneseq
    %v577 = vshrl.u32 %v576, 7
    %v578 = vsub.s32 0, %v577
    %v579 = vrot.slane %v574, %v578
    %v580 = vlaneseq
    %v581 = vshrl.u32 %v580, 7
    %v582 = vsub.s32 1, %v581
    %v583 = vrot.slane %v574, %v582
    %v584 = vlaneseq
    %v585 = vshrl.u32 %v584, 7
    %v586 = vsub.s32 2, %v585
    %v587 = vrot.slane %v574, %v586
    %591 = vmatprep.subr.mxu0 %v527
    %592 = vmatpush1.msra.mxu0 %v526
    %593 = vmatprep.subr.mxu0 %v530
    %594 = vmatpush1.msra.mxu0 %v529
    %595 = vmatprep.subr.mxu0 %v533
    %596 = vmatpush1.msra.mxu0 %v532
    %597 = vmatprep.subr.mxu0 %v536
    %598 = vmatpush1.msra.mxu0 %v535
    %599 = vmatprep.subr.mxu0 %v539
    %600 = vmatpush1.msra.mxu0 %v538
    %601 = vmatprep.subr.mxu0 %v542
    %602 = vmatpush1.msra.mxu0 %v541
    %603 = vmatprep.subr.mxu0 %v545
    %604 = vmatpush1.msra.mxu0 %v544
    %605 = vmatprep.subr.mxu0 %v548
    %606 = vmatpush1.msra.mxu0 %v547
    %607 = vmatprep.subr.mxu0 %v551
    %608 = vmatpush1.msra.mxu0 %v550
    %609 = vmatprep.subr.mxu0 %v554
    %610 = vmatpush1.msra.mxu0 %v553
    %611 = vmatprep.subr.mxu0 %v557
    %612 = vmatpush1.msra.mxu0 %v556
    %613 = vmatprep.subr.mxu0 %v560
    %614 = vmatpush1.msra.mxu0 %v559
    %615 = vmatprep.subr.mxu0 %v563
    %616 = vmatpush1.msra.mxu0 %v562
    %617 = vmatprep.subr.mxu0 %v566
    %618 = vmatpush1.msra.mxu0 %v565
    %619 = vmatprep.subr.mxu0 %v569
    %620 = vmatpush1.msra.mxu0 %v568
    %621 = vmatprep.subr.mxu0 %v572
    %622 = vmatpush1.msra.mxu0 %v571
    %623 = vmatprep.subr.mxu0 0.0
    %624 = vmatpush1.msra.mxu0 0.0
    %625 = vmatprep.subr.mxu0 0.0
    %626 = vmatpush1.msra.mxu0 0.0
    %627 = vmatprep.subr.mxu0 0.0
    %628 = vmatpush1.msra.mxu0 0.0
    %629 = vmatprep.subr.mxu0 0.0
    %630 = vmatpush1.msra.mxu0 0.0
    %631 = vmatprep.subr.mxu0 0.0
    %632 = vmatpush1.msra.mxu0 0.0
    %633 = vmatprep.subr.mxu0 0.0
    %634 = vmatpush1.msra.mxu0 0.0
    %635 = vmatprep.subr.mxu0 0.0
    %636 = vmatpush1.msra.mxu0 0.0
    %637 = vmatprep.subr.mxu0 0.0
    %638 = vmatpush1.msra.mxu0 0.0
    %639 = vmatprep.subr.mxu0 0.0
    %640 = vmatpush1.msra.mxu0 0.0
    %641 = vmatprep.subr.mxu0 0.0
    %642 = vmatpush1.msra.mxu0 0.0
    %643 = vmatprep.subr.mxu0 0.0
    %644 = vmatpush1.msra.mxu0 0.0
    %645 = vmatprep.subr.mxu0 0.0
    %646 = vmatpush1.msra.mxu0 0.0
    %647 = vmatprep.subr.mxu0 0.0
    %648 = vmatpush1.msra.mxu0 0.0
    %649 = vmatprep.subr.mxu0 0.0
    %650 = vmatpush1.msra.mxu0 0.0
    %651 = vmatprep.subr.mxu0 0.0
    %652 = vmatpush1.msra.mxu0 0.0
    %653 = vmatprep.subr.mxu0 0.0
    %654 = vmatpush1.msra.mxu0 0.0
    %655 = vmatprep.mubr.f32.mxu0 0.0
    %656 = vmatmul.mubr.f32.gmra.mrb[0].mxu0 %v524
    %v657 = vpop.f32.mrb[0].mxu0
    %v658 = vadd.f32 %v579, %v657
    %v659 = vpop.f32.mrb[0].mxu0
    %v660 = vadd.f32 %v583, %v659
    %661 = vdwg.mxu0
    %662 = vmatprep.subr.mxu0 0.0
    %663 = vmatpush1.msra.mxu0 %v528
    %664 = vmatprep.subr.mxu0 0.0
    %665 = vmatpush1.msra.mxu0 %v531
    %666 = vmatprep.subr.mxu0 0.0
    %667 = vmatpush1.msra.mxu0 %v534
    %668 = vmatprep.subr.mxu0 0.0
    %669 = vmatpush1.msra.mxu0 %v537
    %670 = vmatprep.subr.mxu0 0.0
    %671 = vmatpush1.msra.mxu0 %v540
    %672 = vmatprep.subr.mxu0 0.0
    %673 = vmatpush1.msra.mxu0 %v543
    %674 = vmatprep.subr.mxu0 0.0
    %675 = vmatpush1.msra.mxu0 %v546
    %676 = vmatprep.subr.mxu0 0.0
    %677 = vmatpush1.msra.mxu0 %v549
    %678 = vmatprep.subr.mxu0 0.0
    %679 = vmatpush1.msra.mxu0 %v552
    %680 = vmatprep.subr.mxu0 0.0
    %681 = vmatpush1.msra.mxu0 %v555
    %682 = vmatprep.subr.mxu0 0.0
    %683 = vmatpush1.msra.mxu0 %v558
    %684 = vmatprep.subr.mxu0 0.0
    %685 = vmatpush1.msra.mxu0 %v561
    %686 = vmatprep.subr.mxu0 0.0
    %687 = vmatpush1.msra.mxu0 %v564
    %688 = vmatprep.subr.mxu0 0.0
    %689 = vmatpush1.msra.mxu0 %v567
    %690 = vmatprep.subr.mxu0 0.0
    %691 = vmatpush1.msra.mxu0 %v570
    %692 = vmatprep.subr.mxu0 0.0
    %693 = vmatpush1.msra.mxu0 %v573
    %694 = vmatprep.subr.mxu0 0.0
    %695 = vmatpush1.msra.mxu0 0.0
    %696 = vmatprep.subr.mxu0 0.0
    %697 = vmatpush1.msra.mxu0 0.0
    %698 = vmatprep.subr.mxu0 0.0
    %699 = vmatpush1.msra.mxu0 0.0
    %700 = vmatprep.subr.mxu0 0.0
    %701 = vmatpush1.msra.mxu0 0.0
    %702 = vmatprep.subr.mxu0 0.0
    %703 = vmatpush1.msra.mxu0 0.0
    %704 = vmatprep.subr.mxu0 0.0
    %705 = vmatpush1.msra.mxu0 0.0
    %706 = vmatprep.subr.mxu0 0.0
    %707 = vmatpush1.msra.mxu0 0.0
    %708 = vmatprep.subr.mxu0 0.0
    %709 = vmatpush1.msra.mxu0 0.0
    %710 = vmatprep.subr.mxu0 0.0
    %711 = vmatpush1.msra.mxu0 0.0
    %712 = vmatprep.subr.mxu0 0.0
    %713 = vmatpush1.msra.mxu0 0.0
    %714 = vmatprep.subr.mxu0 0.0
    %715 = vmatpush1.msra.mxu0 0.0
    %716 = vmatprep.subr.mxu0 0.0
    %717 = vmatpush1.msra.mxu0 0.0
    %718 = vmatprep.subr.mxu0 0.0
    %719 = vmatpush1.msra.mxu0 0.0
    %720 = vmatprep.subr.mxu0 0.0
    %721 = vmatpush1.msra.mxu0 0.0
    %722 = vmatprep.subr.mxu0 0.0
    %723 = vmatpush1.msra.mxu0 0.0
    %724 = vmatprep.subr.mxu0 0.0
    %725 = vmatpush1.msra.mxu0 0.0
    %726 = vmatprep.mubr.f32.mxu0 0.0
    %727 = vmatmul.mubr.f32.gmra.mrb[0].mxu0 %v524
    %v728 = vpop.f32.mrb[0].mxu0
    %v729 = vadd.f32 %v587, %v728
    %v730 = vpop.f32.mrb[0].mxu0
    %731 = vdwg.mxu0
    %v734 = vrot.slane %v658, 7
    %v735 = vrot.slane %v660, 7
    %v738 = vadd.f32 %v223, %v734
    %v739 = vadd.f32 %v225, %v735
    %v740 = vxor.u32 %v738, 2147483648
    %v741 = vxor.u32 %v739, 2147483648
    %v742 = vmul.f32 %v740, 1.442695
    %v743 = vpow.pop %v742
    %v744 = vmul.f32 %v741, 1.442695
    %v745 = vpow.pop %v744
    %v746 = vadd.f32 %v743, 1.0
    %v747 = vadd.f32 %v745, 1.0
    %v748 = vrcp.pop %v746
    %v749 = vmul.f32 1.0, %v748
    %v750 = vrcp.pop %v747
    %v751 = vmul.f32 1.0, %v750
    %v753 = vrot.slane %v729, 7
    %v755 = vmul.f32 %v749, %v753
    %v756 = vadd.f32 %v294, %v755
    %v757 = vtanh.pop %v756
    %v758 = vsub.f32 1.0, %v751
    %v759 = vmul.f32 %v758, %v757
    %v761 = vrot.slane %v524, 7
    %v763 = vmul.f32 %v751, %v761
    %v764 = vadd.f32 %v759, %v763
    %765 = vst [vmem:[#allocation2] sm:$0x2] %v764
    %v766 = vld [vmem:[#allocation6] sm:$0xff]
    %v767 = vld [vmem:[#allocation6 + $0x8] sm:$0xff]
    %v768 = vld [vmem:[#allocation6 + $0x10] sm:$0xff]
    %v769 = vld [vmem:[#allocation6 + $0x18] sm:$0xff]
    %v770 = vld [vmem:[#allocation6 + $0x20] sm:$0xff]
    %v771 = vld [vmem:[#allocation6 + $0x28] sm:$0xff]
    %v772 = vld [vmem:[#allocation6 + $0x30] sm:$0xff]
    %v773 = vld [vmem:[#allocation6 + $0x38] sm:$0xff]
    %v774 = vld [vmem:[#allocation6 + $0x40] sm:$0xff]
    %v775 = vld [vmem:[#allocation6 + $0x48] sm:$0xff]
    %v776 = vld [vmem:[#allocation6 + $0x50] sm:$0xff]
    %v777 = vld [vmem:[#allocation6 + $0x58] sm:$0xff]
    %v778 = vld [vmem:[#allocation6 + $0x60] sm:$0xff]
    %v779 = vld [vmem:[#allocation6 + $0x68] sm:$0xff]
    %v780 = vld [vmem:[#allocation6 + $0x70] sm:$0xff]
    %v781 = vld [vmem:[#allocation6 + $0x78] sm:$0xff]
    %v782 = vld [vmem:[#allocation6 + $0x80] sm:$0xff]
    %v783 = vld [vmem:[#allocation6 + $0x88] sm:$0xff]
    %v784 = vld [vmem:[#allocation6 + $0x90] sm:$0xff]
    %v785 = vld [vmem:[#allocation6 + $0x98] sm:$0xff]
    %v786 = vld [vmem:[#allocation6 + $0xa0] sm:$0xff]
    %v787 = vld [vmem:[#allocation6 + $0xa8] sm:$0xff]
    %v788 = vld [vmem:[#allocation6 + $0xb0] sm:$0xff]
    %v789 = vld [vmem:[#allocation6 + $0xb8] sm:$0xff]
    %v790 = vld [vmem:[#allocation6 + $0xc0] sm:$0xff]
    %v791 = vld [vmem:[#allocation6 + $0xc8] sm:$0xff]
    %v792 = vld [vmem:[#allocation6 + $0xd0] sm:$0xff]
    %v793 = vld [vmem:[#allocation6 + $0xd8] sm:$0xff]
    %v794 = vld [vmem:[#allocation6 + $0xe0] sm:$0xff]
    %v795 = vld [vmem:[#allocation6 + $0xe8] sm:$0xff]
    %v796 = vld [vmem:[#allocation6 + $0xf0] sm:$0xff]
    %v797 = vld [vmem:[#allocation6 + $0xf8] sm:$0xff]
    %v798 = vld [vmem:[#allocation6 + $0x100] sm:$0xff]
    %v799 = vld [vmem:[#allocation6 + $0x108] sm:$0xff]
    %v800 = vld [vmem:[#allocation6 + $0x110] sm:$0xff]
    %v801 = vld [vmem:[#allocation6 + $0x118] sm:$0xff]
    %v802 = vld [vmem:[#allocation6 + $0x120] sm:$0xff]
    %v803 = vld [vmem:[#allocation6 + $0x128] sm:$0xff]
    %v804 = vld [vmem:[#allocation6 + $0x130] sm:$0xff]
    %v805 = vld [vmem:[#allocation6 + $0x138] sm:$0xff]
    %v806 = vld [vmem:[#allocation6 + $0x140] sm:$0xff]
    %v807 = vld [vmem:[#allocation6 + $0x148] sm:$0xff]
    %v808 = vld [vmem:[#allocation6 + $0x150] sm:$0xff]
    %v809 = vld [vmem:[#allocation6 + $0x158] sm:$0xff]
    %v810 = vld [vmem:[#allocation6 + $0x160] sm:$0xff]
    %v811 = vld [vmem:[#allocation6 + $0x168] sm:$0xff]
    %v812 = vld [vmem:[#allocation6 + $0x170] sm:$0xff]
    %v813 = vld [vmem:[#allocation6 + $0x178] sm:$0xff]
    %v814 = vld [vmem:[#allocation9] sm:$0x7]
    %v816 = vrot.slane %v764, 1
    %v819 = vlaneseq
    %v820 = vshrl.u32 %v819, 7
    %v821 = vsub.s32 0, %v820
    %v822 = vrot.slane %v814, %v821
    %v823 = vlaneseq
    %v824 = vshrl.u32 %v823, 7
    %v825 = vsub.s32 1, %v824
    %v826 = vrot.slane %v814, %v825
    %v827 = vlaneseq
    %v828 = vshrl.u32 %v827, 7
    %v829 = vsub.s32 2, %v828
    %v830 = vrot.slane %v814, %v829
    %834 = vmatprep.subr.mxu0 %v767
    %835 = vmatpush1.msra.mxu0 %v766
    %836 = vmatprep.subr.mxu0 %v770
    %837 = vmatpush1.msra.mxu0 %v769
    %838 = vmatprep.subr.mxu0 %v773
    %839 = vmatpush1.msra.mxu0 %v772
    %840 = vmatprep.subr.mxu0 %v776
    %841 = vmatpush1.msra.mxu0 %v775
    %842 = vmatprep.subr.mxu0 %v779
    %843 = vmatpush1.msra.mxu0 %v778
    %844 = vmatprep.subr.mxu0 %v782
    %845 = vmatpush1.msra.mxu0 %v781
    %846 = vmatprep.subr.mxu0 %v785
    %847 = vmatpush1.msra.mxu0 %v784
    %848 = vmatprep.subr.mxu0 %v788
    %849 = vmatpush1.msra.mxu0 %v787
    %850 = vmatprep.subr.mxu0 %v791
    %851 = vmatpush1.msra.mxu0 %v790
    %852 = vmatprep.subr.mxu0 %v794
    %853 = vmatpush1.msra.mxu0 %v793
    %854 = vmatprep.subr.mxu0 %v797
    %855 = vmatpush1.msra.mxu0 %v796
    %856 = vmatprep.subr.mxu0 %v800
    %857 = vmatpush1.msra.mxu0 %v799
    %858 = vmatprep.subr.mxu0 %v803
    %859 = vmatpush1.msra.mxu0 %v802
    %860 = vmatprep.subr.mxu0 %v806
    %861 = vmatpush1.msra.mxu0 %v805
    %862 = vmatprep.subr.mxu0 %v809
    %863 = vmatpush1.msra.mxu0 %v808
    %864 = vmatprep.subr.mxu0 %v812
    %865 = vmatpush1.msra.mxu0 %v811
    %866 = vmatprep.subr.mxu0 0.0
    %867 = vmatpush1.msra.mxu0 0.0
    %868 = vmatprep.subr.mxu0 0.0
    %869 = vmatpush1.msra.mxu0 0.0
    %870 = vmatprep.subr.mxu0 0.0
    %871 = vmatpush1.msra.mxu0 0.0
    %872 = vmatprep.subr.mxu0 0.0
    %873 = vmatpush1.msra.mxu0 0.0
    %874 = vmatprep.subr.mxu0 0.0
    %875 = vmatpush1.msra.mxu0 0.0
    %876 = vmatprep.subr.mxu0 0.0
    %877 = vmatpush1.msra.mxu0 0.0
    %878 = vmatprep.subr.mxu0 0.0
    %879 = vmatpush1.msra.mxu0 0.0
    %880 = vmatprep.subr.mxu0 0.0
    %881 = vmatpush1.msra.mxu0 0.0
    %882 = vmatprep.subr.mxu0 0.0
    %883 = vmatpush1.msra.mxu0 0.0
    %884 = vmatprep.subr.mxu0 0.0
    %885 = vmatpush1.msra.mxu0 0.0
    %886 = vmatprep.subr.mxu0 0.0
    %887 = vmatpush1.msra.mxu0 0.0
    %888 = vmatprep.subr.mxu0 0.0
    %889 = vmatpush1.msra.mxu0 0.0
    %890 = vmatprep.subr.mxu0 0.0
    %891 = vmatpush1.msra.mxu0 0.0
    %892 = vmatprep.subr.mxu0 0.0
    %893 = vmatpush1.msra.mxu0 0.0
    %894 = vmatprep.subr.mxu0 0.0
    %895 = vmatpush1.msra.mxu0 0.0
    %896 = vmatprep.subr.mxu0 0.0
    %897 = vmatpush1.msra.mxu0 0.0
    %898 = vmatprep.mubr.f32.mxu0 0.0
    %899 = vmatmul.mubr.f32.gmra.mrb[0].mxu0 %v816
    %v900 = vpop.f32.mrb[0].mxu0
    %v901 = vadd.f32 %v822, %v900
    %v902 = vpop.f32.mrb[0].mxu0
    %v903 = vadd.f32 %v826, %v902
    %904 = vdwg.mxu0
    %905 = vmatprep.subr.mxu0 0.0
    %906 = vmatpush1.msra.mxu0 %v768
    %907 = vmatprep.subr.mxu0 0.0
    %908 = vmatpush1.msra.mxu0 %v771
    %909 = vmatprep.subr.mxu0 0.0
    %910 = vmatpush1.msra.mxu0 %v774
    %911 = vmatprep.subr.mxu0 0.0
    %912 = vmatpush1.msra.mxu0 %v777
    %913 = vmatprep.subr.mxu0 0.0
    %914 = vmatpush1.msra.mxu0 %v780
    %915 = vmatprep.subr.mxu0 0.0
    %916 = vmatpush1.msra.mxu0 %v783
    %917 = vmatprep.subr.mxu0 0.0
    %918 = vmatpush1.msra.mxu0 %v786
    %919 = vmatprep.subr.mxu0 0.0
    %920 = vmatpush1.msra.mxu0 %v789
    %921 = vmatprep.subr.mxu0 0.0
    %922 = vmatpush1.msra.mxu0 %v792
    %923 = vmatprep.subr.mxu0 0.0
    %924 = vmatpush1.msra.mxu0 %v795
    %925 = vmatprep.subr.mxu0 0.0
    %926 = vmatpush1.msra.mxu0 %v798
    %927 = vmatprep.subr.mxu0 0.0
    %928 = vmatpush1.msra.mxu0 %v801
    %929 = vmatprep.subr.mxu0 0.0
    %930 = vmatpush1.msra.mxu0 %v804
    %931 = vmatprep.subr.mxu0 0.0
    %932 = vmatpush1.msra.mxu0 %v807
    %933 = vmatprep.subr.mxu0 0.0
    %934 = vmatpush1.msra.mxu0 %v810
    %935 = vmatprep.subr.mxu0 0.0
    %936 = vmatpush1.msra.mxu0 %v813
    %937 = vmatprep.subr.mxu0 0.0
    %938 = vmatpush1.msra.mxu0 0.0
    %939 = vmatprep.subr.mxu0 0.0
    %940 = vmatpush1.msra.mxu0 0.0
    %941 = vmatprep.subr.mxu0 0.0
    %942 = vmatpush1.msra.mxu0 0.0
    %943 = vmatprep.subr.mxu0 0.0
    %944 = vmatpush1.msra.mxu0 0.0
    %945 = vmatprep.subr.mxu0 0.0
    %946 = vmatpush1.msra.mxu0 0.0
    %947 = vmatprep.subr.mxu0 0.0
    %948 = vmatpush1.msra.mxu0 0.0
    %949 = vmatprep.subr.mxu0 0.0
    %950 = vmatpush1.msra.mxu0 0.0
    %951 = vmatprep.subr.mxu0 0.0
    %952 = vmatpush1.msra.mxu0 0.0
    %953 = vmatprep.subr.mxu0 0.0
    %954 = vmatpush1.msra.mxu0 0.0
    %955 = vmatprep.subr.mxu0 0.0
    %956 = vmatpush1.msra.mxu0 0.0
    %957 = vmatprep.subr.mxu0 0.0
    %958 = vmatpush1.msra.mxu0 0.0
    %959 = vmatprep.subr.mxu0 0.0
    %960 = vmatpush1.msra.mxu0 0.0
    %961 = vmatprep.subr.mxu0 0.0
    %962 = vmatpush1.msra.mxu0 0.0
    %963 = vmatprep.subr.mxu0 0.0
    %964 = vmatpush1.msra.mxu0 0.0
    %965 = vmatprep.subr.mxu0 0.0
    %966 = vmatpush1.msra.mxu0 0.0
    %967 = vmatprep.subr.mxu0 0.0
    %968 = vmatpush1.msra.mxu0 0.0
    %969 = vmatprep.mubr.f32.mxu0 0.0
    %970 = vmatmul.mubr.f32.gmra.mrb[0].mxu0 %v816
    %v971 = vpop.f32.mrb[0].mxu0
    %v972 = vadd.f32 %v830, %v971
    %v973 = vpop.f32.mrb[0].mxu0
    %974 = vdwg.mxu0
    %v977 = vrot.slane %v901, 6
    %v978 = vrot.slane %v903, 6
    %v981 = vadd.f32 %v223, %v977
    %v982 = vadd.f32 %v225, %v978
    %v983 = vxor.u32 %v981, 2147483648
    %v984 = vxor.u32 %v982, 2147483648
    %v985 = vmul.f32 %v983, 1.442695
    %v986 = vpow.pop %v985
    %v987 = vmul.f32 %v984, 1.442695
    %v988 = vpow.pop %v987
    %v989 = vadd.f32 %v986, 1.0
    %v990 = vadd.f32 %v988, 1.0
    %v991 = vrcp.pop %v989
    %v992 = vmul.f32 1.0, %v991
    %v993 = vrcp.pop %v990
    %v994 = vmul.f32 1.0, %v993
    %v996 = vrot.slane %v972, 6
    %v998 = vmul.f32 %v992, %v996
    %v999 = vadd.f32 %v294, %v998
    %v1000 = vtanh.pop %v999
    %v1001 = vsub.f32 1.0, %v994
    %v1002 = vmul.f32 %v1001, %v1000
    %v1003 = vrot.slane %v764, 7
    %v1005 = vmul.f32 %v994, %v1003
    %v1006 = vadd.f32 %v1002, %v1005
    %1007 = vst [vmem:[#allocation2] sm:$0x4] %v1006
    %v1008 = vld [vmem:[#allocation6] sm:$0xff]
    %v1009 = vld [vmem:[#allocation6 + $0x8] sm:$0xff]
    %v1010 = vld [vmem:[#allocation6 + $0x10] sm:$0xff]
    %v1011 = vld [vmem:[#allocation6 + $0x18] sm:$0xff]
    %v1012 = vld [vmem:[#allocation6 + $0x20] sm:$0xff]
    %v1013 = vld [vmem:[#allocation6 + $0x28] sm:$0xff]
    %v1014 = vld [vmem:[#allocation6 + $0x30] sm:$0xff]
    %v1015 = vld [vmem:[#allocation6 + $0x38] sm:$0xff]
    %v1016 = vld [vmem:[#allocation6 + $0x40] sm:$0xff]
    %v1017 = vld [vmem:[#allocation6 + $0x48] sm:$0xff]
    %v1018 = vld [vmem:[#allocation6 + $0x50] sm:$0xff]
    %v1019 = vld [vmem:[#allocation6 + $0x58] sm:$0xff]
    %v1020 = vld [vmem:[#allocation6 + $0x60] sm:$0xff]
    %v1021 = vld [vmem:[#allocation6 + $0x68] sm:$0xff]
    %v1022 = vld [vmem:[#allocation6 + $0x70] sm:$0xff]
    %v1023 = vld [vmem:[#allocation6 + $0x78] sm:$0xff]
    %v1024 = vld [vmem:[#allocation6 + $0x80] sm:$0xff]
    %v1025 = vld [vmem:[#allocation6 + $0x88] sm:$0xff]
    %v1026 = vld [vmem:[#allocation6 + $0x90] sm:$0xff]
    %v1027 = vld [vmem:[#allocation6 + $0x98] sm:$0xff]
    %v1028 = vld [vmem:[#allocation6 + $0xa0] sm:$0xff]
    %v1029 = vld [vmem:[#allocation6 + $0xa8] sm:$0xff]
    %v1030 = vld [vmem:[#allocation6 + $0xb0] sm:$0xff]
    %v1031 = vld [vmem:[#allocation6 + $0xb8] sm:$0xff]
    %v1032 = vld [vmem:[#allocation6 + $0xc0] sm:$0xff]
    %v1033 = vld [vmem:[#allocation6 + $0xc8] sm:$0xff]
    %v1034 = vld [vmem:[#allocation6 + $0xd0] sm:$0xff]
    %v1035 = vld [vmem:[#allocation6 + $0xd8] sm:$0xff]
    %v1036 = vld [vmem:[#allocation6 + $0xe0] sm:$0xff]
    %v1037 = vld [vmem:[#allocation6 + $0xe8] sm:$0xff]
    %v1038 = vld [vmem:[#allocation6 + $0xf0] sm:$0xff]
    %v1039 = vld [vmem:[#allocation6 + $0xf8] sm:$0xff]
    %v1040 = vld [vmem:[#allocation6 + $0x100] sm:$0xff]
    %v1041 = vld [vmem:[#allocation6 + $0x108] sm:$0xff]
    %v1042 = vld [vmem:[#allocation6 + $0x110] sm:$0xff]
    %v1043 = vld [vmem:[#allocation6 + $0x118] sm:$0xff]
    %v1044 = vld [vmem:[#allocation6 + $0x120] sm:$0xff]
    %v1045 = vld [vmem:[#allocation6 + $0x128] sm:$0xff]
    %v1046 = vld [vmem:[#allocation6 + $0x130] sm:$0xff]
    %v1047 = vld [vmem:[#allocation6 + $0x138] sm:$0xff]
    %v1048 = vld [vmem:[#allocation6 + $0x140] sm:$0xff]
    %v1049 = vld [vmem:[#allocation6 + $0x148] sm:$0xff]
    %v1050 = vld [vmem:[#allocation6 + $0x150] sm:$0xff]
    %v1051 = vld [vmem:[#allocation6 + $0x158] sm:$0xff]
    %v1052 = vld [vmem:[#allocation6 + $0x160] sm:$0xff]
    %v1053 = vld [vmem:[#allocation6 + $0x168] sm:$0xff]
    %v1054 = vld [vmem:[#allocation6 + $0x170] sm:$0xff]
    %v1055 = vld [vmem:[#allocation6 + $0x178] sm:$0xff]
    %v1056 = vld [vmem:[#allocation9] sm:$0x7]
    %v1058 = vrot.slane %v1006, 2
    %v1061 = vlaneseq
    %v1062 = vshrl.u32 %v1061, 7
    %v1063 = vsub.s32 0, %v1062
    %v1064 = vrot.slane %v1056, %v1063
    %v1065 = vlaneseq
    %v1066 = vshrl.u32 %v1065, 7
    %v1067 = vsub.s32 1, %v1066
    %v1068 = vrot.slane %v1056, %v1067
    %v1069 = vlaneseq
    %v1070 = vshrl.u32 %v1069, 7
    %v1071 = vsub.s32 2, %v1070
    %v1072 = vrot.slane %v1056, %v1071
    %1076 = vmatprep.subr.mxu0 %v1009
    %1077 = vmatpush1.msra.mxu0 %v1008
    %1078 = vmatprep.subr.mxu0 %v1012
    %1079 = vmatpush1.msra.mxu0 %v1011
    %1080 = vmatprep.subr.mxu0 %v1015
    %1081 = vmatpush1.msra.mxu0 %v1014
    %1082 = vmatprep.subr.mxu0 %v1018
    %1083 = vmatpush1.msra.mxu0 %v1017
    %1084 = vmatprep.subr.mxu0 %v1021
    %1085 = vmatpush1.msra.mxu0 %v1020
    %1086 = vmatprep.subr.mxu0 %v1024
    %1087 = vmatpush1.msra.mxu0 %v1023
    %1088 = vmatprep.subr.mxu0 %v1027
    %1089 = vmatpush1.msra.mxu0 %v1026
    %1090 = vmatprep.subr.mxu0 %v1030
    %1091 = vmatpush1.msra.mxu0 %v1029
    %1092 = vmatprep.subr.mxu0 %v1033
    %1093 = vmatpush1.msra.mxu0 %v1032
    %1094 = vmatprep.subr.mxu0 %v1036
    %1095 = vmatpush1.msra.mxu0 %v1035
    %1096 = vmatprep.subr.mxu0 %v1039
    %1097 = vmatpush1.msra.mxu0 %v1038
    %1098 = vmatprep.subr.mxu0 %v1042
    %1099 = vmatpush1.msra.mxu0 %v1041
    %1100 = vmatprep.subr.mxu0 %v1045
    %1101 = vmatpush1.msra.mxu0 %v1044
    %1102 = vmatprep.subr.mxu0 %v1048
    %1103 = vmatpush1.msra.mxu0 %v1047
    %1104 = vmatprep.subr.mxu0 %v1051
    %1105 = vmatpush1.msra.mxu0 %v1050
    %1106 = vmatprep.subr.mxu0 %v1054
    %1107 = vmatpush1.msra.mxu0 %v1053
    %1108 = vmatprep.subr.mxu0 0.0
    %1109 = vmatpush1.msra.mxu0 0.0
    %1110 = vmatprep.subr.mxu0 0.0
    %1111 = vmatpush1.msra.mxu0 0.0
    %1112 = vmatprep.subr.mxu0 0.0
    %1113 = vmatpush1.msra.mxu0 0.0
    %1114 = vmatprep.subr.mxu0 0.0
    %1115 = vmatpush1.msra.mxu0 0.0
    %1116 = vmatprep.subr.mxu0 0.0
    %1117 = vmatpush1.msra.mxu0 0.0
    %1118 = vmatprep.subr.mxu0 0.0
    %1119 = vmatpush1.msra.mxu0 0.0
    %1120 = vmatprep.subr.mxu0 0.0
    %1121 = vmatpush1.msra.mxu0 0.0
    %1122 = vmatprep.subr.mxu0 0.0
    %1123 = vmatpush1.msra.mxu0 0.0
    %1124 = vmatprep.subr.mxu0 0.0
    %1125 = vmatpush1.msra.mxu0 0.0
    %1126 = vmatprep.subr.mxu0 0.0
    %1127 = vmatpush1.msra.mxu0 0.0
    %1128 = vmatprep.subr.mxu0 0.0
    %1129 = vmatpush1.msra.mxu0 0.0
    %1130 = vmatprep.subr.mxu0 0.0
    %1131 = vmatpush1.msra.mxu0 0.0
    %1132 = vmatprep.subr.mxu0 0.0
    %1133 = vmatpush1.msra.mxu0 0.0
    %1134 = vmatprep.subr.mxu0 0.0
    %1135 = vmatpush1.msra.mxu0 0.0
    %1136 = vmatprep.subr.mxu0 0.0
    %1137 = vmatpush1.msra.mxu0 0.0
    %1138 = vmatprep.subr.mxu0 0.0
    %1139 = vmatpush1.msra.mxu0 0.0
    %1140 = vmatprep.mubr.f32.mxu0 0.0
    %1141 = vmatmul.mubr.f32.gmra.mrb[0].mxu0 %v1058
    %v1142 = vpop.f32.mrb[0].mxu0
    %v1143 = vadd.f32 %v1064, %v1142
    %v1144 = vpop.f32.mrb[0].mxu0
    %v1145 = vadd.f32 %v1068, %v1144
    %1146 = vdwg.mxu0
    %1147 = vmatprep.subr.mxu0 0.0
    %1148 = vmatpush1.msra.mxu0 %v1010
    %1149 = vmatprep.subr.mxu0 0.0
    %1150 = vmatpush1.msra.mxu0 %v1013
    %1151 = vmatprep.subr.mxu0 0.0
    %1152 = vmatpush1.msra.mxu0 %v1016
    %1153 = vmatprep.subr.mxu0 0.0
    %1154 = vmatpush1.msra.mxu0 %v1019
    %1155 = vmatprep.subr.mxu0 0.0
    %1156 = vmatpush1.msra.mxu0 %v1022
    %1157 = vmatprep.subr.mxu0 0.0
    %1158 = vmatpush1.msra.mxu0 %v1025
    %1159 = vmatprep.subr.mxu0 0.0
    %1160 = vmatpush1.msra.mxu0 %v1028
    %1161 = vmatprep.subr.mxu0 0.0
    %1162 = vmatpush1.msra.mxu0 %v1031
    %1163 = vmatprep.subr.mxu0 0.0
    %1164 = vmatpush1.msra.mxu0 %v1034
    %1165 = vmatprep.subr.mxu0 0.0
    %1166 = vmatpush1.msra.mxu0 %v1037
    %1167 = vmatprep.subr.mxu0 0.0
    %1168 = vmatpush1.msra.mxu0 %v1040
    %1169 = vmatprep.subr.mxu0 0.0
    %1170 = vmatpush1.msra.mxu0 %v1043
    %1171 = vmatprep.subr.mxu0 0.0
    %1172 = vmatpush1.msra.mxu0 %v1046
    %1173 = vmatprep.subr.mxu0 0.0
    %1174 = vmatpush1.msra.mxu0 %v1049
    %1175 = vmatprep.subr.mxu0 0.0
    %1176 = vmatpush1.msra.mxu0 %v1052
    %1177 = vmatprep.subr.mxu0 0.0
    %1178 = vmatpush1.msra.mxu0 %v1055
    %1179 = vmatprep.subr.mxu0 0.0
    %1180 = vmatpush1.msra.mxu0 0.0
    %1181 = vmatprep.subr.mxu0 0.0
    %1182 = vmatpush1.msra.mxu0 0.0
    %1183 = vmatprep.subr.mxu0 0.0
    %1184 = vmatpush1.msra.mxu0 0.0
    %1185 = vmatprep.subr.mxu0 0.0
    %1186 = vmatpush1.msra.mxu0 0.0
    %1187 = vmatprep.subr.mxu0 0.0
    %1188 = vmatpush1.msra.mxu0 0.0
    %1189 = vmatprep.subr.mxu0 0.0
    %1190 = vmatpush1.msra.mxu0 0.0
    %1191 = vmatprep.subr.mxu0 0.0
    %1192 = vmatpush1.msra.mxu0 0.0
    %1193 = vmatprep.subr.mxu0 0.0
    %1194 = vmatpush1.msra.mxu0 0.0
    %1195 = vmatprep.subr.mxu0 0.0
    %1196 = vmatpush1.msra.mxu0 0.0
    %1197 = vmatprep.subr.mxu0 0.0
    %1198 = vmatpush1.msra.mxu0 0.0
    %1199 = vmatprep.subr.mxu0 0.0
    %1200 = vmatpush1.msra.mxu0 0.0
    %1201 = vmatprep.subr.mxu0 0.0
    %1202 = vmatpush1.msra.mxu0 0.0
    %1203 = vmatprep.subr.mxu0 0.0
    %1204 = vmatpush1.msra.mxu0 0.0
    %1205 = vmatprep.subr.mxu0 0.0
    %1206 = vmatpush1.msra.mxu0 0.0
    %1207 = vmatprep.subr.mxu0 0.0
    %1208 = vmatpush1.msra.mxu0 0.0
    %1209 = vmatprep.subr.mxu0 0.0
    %1210 = vmatpush1.msra.mxu0 0.0
    %1211 = vmatprep.mubr.f32.mxu0 0.0
    %1212 = vmatmul.mubr.f32.gmra.mrb[0].mxu0 %v1058
    %v1213 = vpop.f32.mrb[0].mxu0
    %v1214 = vadd.f32 %v1072, %v1213
    %v1215 = vpop.f32.mrb[0].mxu0
    %1216 = vdwg.mxu0
    %v1219 = vrot.slane %v1143, 5
    %v1220 = vrot.slane %v1145, 5
    %v1223 = vadd.f32 %v223, %v1219
    %v1224 = vadd.f32 %v225, %v1220
    %v1225 = vxor.u32 %v1223, 2147483648
    %v1226 = vxor.u32 %v1224, 2147483648
    %v1227 = vmul.f32 %v1225, 1.442695
    %v1228 = vpow.pop %v1227
    %v1229 = vmul.f32 %v1226, 1.442695
    %v1230 = vpow.pop %v1229
    %v1231 = vadd.f32 %v1228, 1.0
    %v1232 = vadd.f32 %v1230, 1.0
    %v1233 = vrcp.pop %v1231
    %v1234 = vmul.f32 1.0, %v1233
    %v1235 = vrcp.pop %v1232
    %v1236 = vmul.f32 1.0, %v1235
    %v1238 = vrot.slane %v1214, 5
    %v1240 = vmul.f32 %v1234, %v1238
    %v1241 = vadd.f32 %v294, %v1240
    %v1242 = vtanh.pop %v1241
    %v1243 = vsub.f32 1.0, %v1236
    %v1244 = vmul.f32 %v1243, %v1242
    %v1245 = vrot.slane %v1006, 7
    %v1247 = vmul.f32 %v1236, %v1245
    %v1248 = vadd.f32 %v1244, %v1247
    %1249 = vst [vmem:[#allocation2] sm:$0x8] %v1248
    %v1250 = vld [vmem:[#allocation6] sm:$0xff]
    %v1251 = vld [vmem:[#allocation6 + $0x8] sm:$0xff]
    %v1252 = vld [vmem:[#allocation6 + $0x10] sm:$0xff]
    %v1253 = vld [vmem:[#allocation6 + $0x18] sm:$0xff]
    %v1254 = vld [vmem:[#allocation6 + $0x20] sm:$0xff]
    %v1255 = vld [vmem:[#allocation6 + $0x28] sm:$0xff]
    %v1256 = vld [vmem:[#allocation6 + $0x30] sm:$0xff]
    %v1257 = vld [vmem:[#allocation6 + $0x38] sm:$0xff]
    %v1258 = vld [vmem:[#allocation6 + $0x40] sm:$0xff]
    %v1259 = vld [vmem:[#allocation6 + $0x48] sm:$0xff]
    %v1260 = vld [vmem:[#allocation6 + $0x50] sm:$0xff]
    %v1261 = vld [vmem:[#allocation6 + $0x58] sm:$0xff]
    %v1262 = vld [vmem:[#allocation6 + $0x60] sm:$0xff]
    %v1263 = vld [vmem:[#allocation6 + $0x68] sm:$0xff]
    %v1264 = vld [vmem:[#allocation6 + $0x70] sm:$0xff]
    %v1265 = vld [vmem:[#allocation6 + $0x78] sm:$0xff]
    %v1266 = vld [vmem:[#allocation6 + $0x80] sm:$0xff]
    %v1267 = vld [vmem:[#allocation6 + $0x88] sm:$0xff]
    %v1268 = vld [vmem:[#allocation6 + $0x90] sm:$0xff]
    %v1269 = vld [vmem:[#allocation6 + $0x98] sm:$0xff]
    %v1270 = vld [vmem:[#allocation6 + $0xa0] sm:$0xff]
    %v1271 = vld [vmem:[#allocation6 + $0xa8] sm:$0xff]
    %v1272 = vld [vmem:[#allocation6 + $0xb0] sm:$0xff]
    %v1273 = vld [vmem:[#allocation6 + $0xb8] sm:$0xff]
    %v1274 = vld [vmem:[#allocation6 + $0xc0] sm:$0xff]
    %v1275 = vld [vmem:[#allocation6 + $0xc8] sm:$0xff]
    %v1276 = vld [vmem:[#allocation6 + $0xd0] sm:$0xff]
    %v1277 = vld [vmem:[#allocation6 + $0xd8] sm:$0xff]
    %v1278 = vld [vmem:[#allocation6 + $0xe0] sm:$0xff]
    %v1279 = vld [vmem:[#allocation6 + $0xe8] sm:$0xff]
    %v1280 = vld [vmem:[#allocation6 + $0xf0] sm:$0xff]
    %v1281 = vld [vmem:[#allocation6 + $0xf8] sm:$0xff]
    %v1282 = vld [vmem:[#allocation6 + $0x100] sm:$0xff]
    %v1283 = vld [vmem:[#allocation6 + $0x108] sm:$0xff]
    %v1284 = vld [vmem:[#allocation6 + $0x110] sm:$0xff]
    %v1285 = vld [vmem:[#allocation6 + $0x118] sm:$0xff]
    %v1286 = vld [vmem:[#allocation6 + $0x120] sm:$0xff]
    %v1287 = vld [vmem:[#allocation6 + $0x128] sm:$0xff]
    %v1288 = vld [vmem:[#allocation6 + $0x130] sm:$0xff]
    %v1289 = vld [vmem:[#allocation6 + $0x138] sm:$0xff]
    %v1290 = vld [vmem:[#allocation6 + $0x140] sm:$0xff]
    %v1291 = vld [vmem:[#allocation6 + $0x148] sm:$0xff]
    %v1292 = vld [vmem:[#allocation6 + $0x150] sm:$0xff]
    %v1293 = vld [vmem:[#allocation6 + $0x158] sm:$0xff]
    %v1294 = vld [vmem:[#allocation6 + $0x160] sm:$0xff]
    %v1295 = vld [vmem:[#allocation6 + $0x168] sm:$0xff]
    %v1296 = vld [vmem:[#allocation6 + $0x170] sm:$0xff]
    %v1297 = vld [vmem:[#allocation6 + $0x178] sm:$0xff]
    %v1298 = vld [vmem:[#allocation9] sm:$0x7]
    %v1300 = vrot.slane %v1248, 3
    %v1303 = vlaneseq
    %v1304 = vshrl.u32 %v1303, 7
    %v1305 = vsub.s32 0, %v1304
    %v1306 = vrot.slane %v1298, %v1305
    %v1307 = vlaneseq
    %v1308 = vshrl.u32 %v1307, 7
    %v1309 = vsub.s32 1, %v1308
    %v1310 = vrot.slane %v1298, %v1309
    %v1311 = vlaneseq
    %v1312 = vshrl.u32 %v1311, 7
    %v1313 = vsub.s32 2, %v1312
    %v1314 = vrot.slane %v1298, %v1313
    %1318 = vmatprep.subr.mxu0 %v1251
    %1319 = vmatpush1.msra.mxu0 %v1250
    %1320 = vmatprep.subr.mxu0 %v1254
    %1321 = vmatpush1.msra.mxu0 %v1253
    %1322 = vmatprep.subr.mxu0 %v1257
    %1323 = vmatpush1.msra.mxu0 %v1256
    %1324 = vmatprep.subr.mxu0 %v1260
    %1325 = vmatpush1.msra.mxu0 %v1259
    %1326 = vmatprep.subr.mxu0 %v1263
    %1327 = vmatpush1.msra.mxu0 %v1262
    %1328 = vmatprep.subr.mxu0 %v1266
    %1329 = vmatpush1.msra.mxu0 %v1265
    %1330 = vmatprep.subr.mxu0 %v1269
    %1331 = vmatpush1.msra.mxu0 %v1268
    %1332 = vmatprep.subr.mxu0 %v1272
    %1333 = vmatpush1.msra.mxu0 %v1271
    %1334 = vmatprep.subr.mxu0 %v1275
    %1335 = vmatpush1.msra.mxu0 %v1274
    %1336 = vmatprep.subr.mxu0 %v1278
    %1337 = vmatpush1.msra.mxu0 %v1277
    %1338 = vmatprep.subr.mxu0 %v1281
    %1339 = vmatpush1.msra.mxu0 %v1280
    %1340 = vmatprep.subr.mxu0 %v1284
    %1341 = vmatpush1.msra.mxu0 %v1283
    %1342 = vmatprep.subr.mxu0 %v1287
    %1343 = vmatpush1.msra.mxu0 %v1286
    %1344 = vmatprep.subr.mxu0 %v1290
    %1345 = vmatpush1.msra.mxu0 %v1289
    %1346 = vmatprep.subr.mxu0 %v1293
    %1347 = vmatpush1.msra.mxu0 %v1292
    %1348 = vmatprep.subr.mxu0 %v1296
    %1349 = vmatpush1.msra.mxu0 %v1295
    %1350 = vmatprep.subr.mxu0 0.0
    %1351 = vmatpush1.msra.mxu0 0.0
    %1352 = vmatprep.subr.mxu0 0.0
    %1353 = vmatpush1.msra.mxu0 0.0
    %1354 = vmatprep.subr.mxu0 0.0
    %1355 = vmatpush1.msra.mxu0 0.0
    %1356 = vmatprep.subr.mxu0 0.0
    %1357 = vmatpush1.msra.mxu0 0.0
    %1358 = vmatprep.subr.mxu0 0.0
    %1359 = vmatpush1.msra.mxu0 0.0
    %1360 = vmatprep.subr.mxu0 0.0
    %1361 = vmatpush1.msra.mxu0 0.0
    %1362 = vmatprep.subr.mxu0 0.0
    %1363 = vmatpush1.msra.mxu0 0.0
    %1364 = vmatprep.subr.mxu0 0.0
    %1365 = vmatpush1.msra.mxu0 0.0
    %1366 = vmatprep.subr.mxu0 0.0
    %1367 = vmatpush1.msra.mxu0 0.0
    %1368 = vmatprep.subr.mxu0 0.0
    %1369 = vmatpush1.msra.mxu0 0.0
    %1370 = vmatprep.subr.mxu0 0.0
    %1371 = vmatpush1.msra.mxu0 0.0
    %1372 = vmatprep.subr.mxu0 0.0
    %1373 = vmatpush1.msra.mxu0 0.0
    %1374 = vmatprep.subr.mxu0 0.0
    %1375 = vmatpush1.msra.mxu0 0.0
    %1376 = vmatprep.subr.mxu0 0.0
    %1377 = vmatpush1.msra.mxu0 0.0
    %1378 = vmatprep.subr.mxu0 0.0
    %1379 = vmatpush1.msra.mxu0 0.0
    %1380 = vmatprep.subr.mxu0 0.0
    %1381 = vmatpush1.msra.mxu0 0.0
    %1382 = vmatprep.mubr.f32.mxu0 0.0
    %1383 = vmatmul.mubr.f32.gmra.mrb[0].mxu0 %v1300
    %v1384 = vpop.f32.mrb[0].mxu0
    %v1385 = vadd.f32 %v1306, %v1384
    %v1386 = vpop.f32.mrb[0].mxu0
    %v1387 = vadd.f32 %v1310, %v1386
    %1388 = vdwg.mxu0
    %1389 = vmatprep.subr.mxu0 0.0
    %1390 = vmatpush1.msra.mxu0 %v1252
    %1391 = vmatprep.subr.mxu0 0.0
    %1392 = vmatpush1.msra.mxu0 %v1255
    %1393 = vmatprep.subr.mxu0 0.0
    %1394 = vmatpush1.msra.mxu0 %v1258
    %1395 = vmatprep.subr.mxu0 0.0
    %1396 = vmatpush1.msra.mxu0 %v1261
    %1397 = vmatprep.subr.mxu0 0.0
    %1398 = vmatpush1.msra.mxu0 %v1264
    %1399 = vmatprep.subr.mxu0 0.0
    %1400 = vmatpush1.msra.mxu0 %v1267
    %1401 = vmatprep.subr.mxu0 0.0
    %1402 = vmatpush1.msra.mxu0 %v1270
    %1403 = vmatprep.subr.mxu0 0.0
    %1404 = vmatpush1.msra.mxu0 %v1273
    %1405 = vmatprep.subr.mxu0 0.0
    %1406 = vmatpush1.msra.mxu0 %v1276
    %1407 = vmatprep.subr.mxu0 0.0
    %1408 = vmatpush1.msra.mxu0 %v1279
    %1409 = vmatprep.subr.mxu0 0.0
    %1410 = vmatpush1.msra.mxu0 %v1282
    %1411 = vmatprep.subr.mxu0 0.0
    %1412 = vmatpush1.msra.mxu0 %v1285
    %1413 = vmatprep.subr.mxu0 0.0
    %1414 = vmatpush1.msra.mxu0 %v1288
    %1415 = vmatprep.subr.mxu0 0.0
    %1416 = vmatpush1.msra.mxu0 %v1291
    %1417 = vmatprep.subr.mxu0 0.0
    %1418 = vmatpush1.msra.mxu0 %v1294
    %1419 = vmatprep.subr.mxu0 0.0
    %1420 = vmatpush1.msra.mxu0 %v1297
    %1421 = vmatprep.subr.mxu0 0.0
    %1422 = vmatpush1.msra.mxu0 0.0
    %1423 = vmatprep.subr.mxu0 0.0
    %1424 = vmatpush1.msra.mxu0 0.0
    %1425 = vmatprep.subr.mxu0 0.0
    %1426 = vmatpush1.msra.mxu0 0.0
    %1427 = vmatprep.subr.mxu0 0.0
    %1428 = vmatpush1.msra.mxu0 0.0
    %1429 = vmatprep.subr.mxu0 0.0
    %1430 = vmatpush1.msra.mxu0 0.0
    %1431 = vmatprep.subr.mxu0 0.0
    %1432 = vmatpush1.msra.mxu0 0.0
    %1433 = vmatprep.subr.mxu0 0.0
    %1434 = vmatpush1.msra.mxu0 0.0
    %1435 = vmatprep.subr.mxu0 0.0
    %1436 = vmatpush1.msra.mxu0 0.0
    %1437 = vmatprep.subr.mxu0 0.0
    %1438 = vmatpush1.msra.mxu0 0.0
    %1439 = vmatprep.subr.mxu0 0.0
    %1440 = vmatpush1.msra.mxu0 0.0
    %1441 = vmatprep.subr.mxu0 0.0
    %1442 = vmatpush1.msra.mxu0 0.0
    %1443 = vmatprep.subr.mxu0 0.0
    %1444 = vmatpush1.msra.mxu0 0.0
    %1445 = vmatprep.subr.mxu0 0.0
    %1446 = vmatpush1.msra.mxu0 0.0
    %1447 = vmatprep.subr.mxu0 0.0
    %1448 = vmatpush1.msra.mxu0 0.0
    %1449 = vmatprep.subr.mxu0 0.0
    %1450 = vmatpush1.msra.mxu0 0.0
    %1451 = vmatprep.subr.mxu0 0.0
    %1452 = vmatpush1.msra.mxu0 0.0
    %1453 = vmatprep.mubr.f32.mxu0 0.0
    %1454 = vmatmul.mubr.f32.gmra.mrb[0].mxu0 %v1300
    %v1455 = vpop.f32.mrb[0].mxu0
    %v1456 = vadd.f32 %v1314, %v1455
    %v1457 = vpop.f32.mrb[0].mxu0
    %1458 = vdwg.mxu0
    %v1461 = vrot.slane %v1385, 4
    %v1462 = vrot.slane %v1387, 4
    %v1465 = vadd.f32 %v223, %v1461
    %v1466 = vadd.f32 %v225, %v1462
    %v1467 = vxor.u32 %v1465, 2147483648
    %v1468 = vxor.u32 %v1466, 2147483648
    %v1469 = vmul.f32 %v1467, 1.442695
    %v1470 = vpow.pop %v1469
    %v1471 = vmul.f32 %v1468, 1.442695
    %v1472 = vpow.pop %v1471
    %v1473 = vadd.f32 %v1470, 1.0
    %v1474 = vadd.f32 %v1472, 1.0
    %v1475 = vrcp.pop %v1473
    %v1476 = vmul.f32 1.0, %v1475
    %v1477 = vrcp.pop %v1474
    %v1478 = vmul.f32 1.0, %v1477
    %v1480 = vrot.slane %v1456, 4
    %v1482 = vmul.f32 %v1476, %v1480
    %v1483 = vadd.f32 %v294, %v1482
    %v1484 = vtanh.pop %v1483
    %v1485 = vsub.f32 1.0, %v1478
    %v1486 = vmul.f32 %v1485, %v1484
    %v1487 = vrot.slane %v1248, 7
    %v1489 = vmul.f32 %v1478, %v1487
    %v1490 = vadd.f32 %v1486, %v1489
    %1491 = vst [vmem:[#allocation2] sm:$0x10] %v1490
    %v1492 = vld [vmem:[#allocation6] sm:$0xff]
    %v1493 = vld [vmem:[#allocation6 + $0x8] sm:$0xff]
    %v1494 = vld [vmem:[#allocation6 + $0x10] sm:$0xff]
    %v1495 = vld [vmem:[#allocation6 + $0x18] sm:$0xff]
    %v1496 = vld [vmem:[#allocation6 + $0x20] sm:$0xff]
    %v1497 = vld [vmem:[#allocation6 + $0x28] sm:$0xff]
    %v1498 = vld [vmem:[#allocation6 + $0x30] sm:$0xff]
    %v1499 = vld [vmem:[#allocation6 + $0x38] sm:$0xff]
    %v1500 = vld [vmem:[#allocation6 + $0x40] sm:$0xff]
    %v1501 = vld [vmem:[#allocation6 + $0x48] sm:$0xff]
    %v1502 = vld [vmem:[#allocation6 + $0x50] sm:$0xff]
    %v1503 = vld [vmem:[#allocation6 + $0x58] sm:$0xff]
    %v1504 = vld [vmem:[#allocation6 + $0x60] sm:$0xff]
    %v1505 = vld [vmem:[#allocation6 + $0x68] sm:$0xff]
    %v1506 = vld [vmem:[#allocation6 + $0x70] sm:$0xff]
    %v1507 = vld [vmem:[#allocation6 + $0x78] sm:$0xff]
    %v1508 = vld [vmem:[#allocation6 + $0x80] sm:$0xff]
    %v1509 = vld [vmem:[#allocation6 + $0x88] sm:$0xff]
    %v1510 = vld [vmem:[#allocation6 + $0x90] sm:$0xff]
    %v1511 = vld [vmem:[#allocation6 + $0x98] sm:$0xff]
    %v1512 = vld [vmem:[#allocation6 + $0xa0] sm:$0xff]
    %v1513 = vld [vmem:[#allocation6 + $0xa8] sm:$0xff]
    %v1514 = vld [vmem:[#allocation6 + $0xb0] sm:$0xff]
    %v1515 = vld [vmem:[#allocation6 + $0xb8] sm:$0xff]
    %v1516 = vld [vmem:[#allocation6 + $0xc0] sm:$0xff]
    %v1517 = vld [vmem:[#allocation6 + $0xc8] sm:$0xff]
    %v1518 = vld [vmem:[#allocation6 + $0xd0] sm:$0xff]
    %v1519 = vld [vmem:[#allocation6 + $0xd8] sm:$0xff]
    %v1520 = vld [vmem:[#allocation6 + $0xe0] sm:$0xff]
    %v1521 = vld [vmem:[#allocation6 + $0xe8] sm:$0xff]
    %v1522 = vld [vmem:[#allocation6 + $0xf0] sm:$0xff]
    %v1523 = vld [vmem:[#allocation6 + $0xf8] sm:$0xff]
    %v1524 = vld [vmem:[#allocation6 + $0x100] sm:$0xff]
    %v1525 = vld [vmem:[#allocation6 + $0x108] sm:$0xff]
    %v1526 = vld [vmem:[#allocation6 + $0x110] sm:$0xff]
    %v1527 = vld [vmem:[#allocation6 + $0x118] sm:$0xff]
    %v1528 = vld [vmem:[#allocation6 + $0x120] sm:$0xff]
    %v1529 = vld [vmem:[#allocation6 + $0x128] sm:$0xff]
    %v1530 = vld [vmem:[#allocation6 + $0x130] sm:$0xff]
    %v1531 = vld [vmem:[#allocation6 + $0x138] sm:$0xff]
    %v1532 = vld [vmem:[#allocation6 + $0x140] sm:$0xff]
    %v1533 = vld [vmem:[#allocation6 + $0x148] sm:$0xff]
    %v1534 = vld [vmem:[#allocation6 + $0x150] sm:$0xff]
    %v1535 = vld [vmem:[#allocation6 + $0x158] sm:$0xff]
    %v1536 = vld [vmem:[#allocation6 + $0x160] sm:$0xff]
    %v1537 = vld [vmem:[#allocation6 + $0x168] sm:$0xff]
    %v1538 = vld [vmem:[#allocation6 + $0x170] sm:$0xff]
    %v1539 = vld [vmem:[#allocation6 + $0x178] sm:$0xff]
    %v1540 = vld [vmem:[#allocation9] sm:$0x7]
    %v1542 = vrot.slane %v1490, 4
    %v1545 = vlaneseq
    %v1546 = vshrl.u32 %v1545, 7
    %v1547 = vsub.s32 0, %v1546
    %v1548 = vrot.slane %v1540, %v1547
    %v1549 = vlaneseq
    %v1550 = vshrl.u32 %v1549, 7
    %v1551 = vsub.s32 1, %v1550
    %v1552 = vrot.slane %v1540, %v1551
    %v1553 = vlaneseq
    %v1554 = vshrl.u32 %v1553, 7
    %v1555 = vsub.s32 2, %v1554
    %v1556 = vrot.slane %v1540, %v1555
    %1560 = vmatprep.subr.mxu0 %v1493
    %1561 = vmatpush1.msra.mxu0 %v1492
    %1562 = vmatprep.subr.mxu0 %v1496
    %1563 = vmatpush1.msra.mxu0 %v1495
    %1564 = vmatprep.subr.mxu0 %v1499
    %1565 = vmatpush1.msra.mxu0 %v1498
    %1566 = vmatprep.subr.mxu0 %v1502
    %1567 = vmatpush1.msra.mxu0 %v1501
    %1568 = vmatprep.subr.mxu0 %v1505
    %1569 = vmatpush1.msra.mxu0 %v1504
    %1570 = vmatprep.subr.mxu0 %v1508
    %1571 = vmatpush1.msra.mxu0 %v1507
    %1572 = vmatprep.subr.mxu0 %v1511
    %1573 = vmatpush1.msra.mxu0 %v1510
    %1574 = vmatprep.subr.mxu0 %v1514
    %1575 = vmatpush1.msra.mxu0 %v1513
    %1576 = vmatprep.subr.mxu0 %v1517
    %1577 = vmatpush1.msra.mxu0 %v1516
    %1578 = vmatprep.subr.mxu0 %v1520
    %1579 = vmatpush1.msra.mxu0 %v1519
    %1580 = vmatprep.subr.mxu0 %v1523
    %1581 = vmatpush1.msra.mxu0 %v1522
    %1582 = vmatprep.subr.mxu0 %v1526
    %1583 = vmatpush1.msra.mxu0 %v1525
    %1584 = vmatprep.subr.mxu0 %v1529
    %1585 = vmatpush1.msra.mxu0 %v1528
    %1586 = vmatprep.subr.mxu0 %v1532
    %1587 = vmatpush1.msra.mxu0 %v1531
    %1588 = vmatprep.subr.mxu0 %v1535
    %1589 = vmatpush1.msra.mxu0 %v1534
    %1590 = vmatprep.subr.mxu0 %v1538
    %1591 = vmatpush1.msra.mxu0 %v1537
    %1592 = vmatprep.subr.mxu0 0.0
    %1593 = vmatpush1.msra.mxu0 0.0
    %1594 = vmatprep.subr.mxu0 0.0
    %1595 = vmatpush1.msra.mxu0 0.0
    %1596 = vmatprep.subr.mxu0 0.0
    %1597 = vmatpush1.msra.mxu0 0.0
    %1598 = vmatprep.subr.mxu0 0.0
    %1599 = vmatpush1.msra.mxu0 0.0
    %1600 = vmatprep.subr.mxu0 0.0
    %1601 = vmatpush1.msra.mxu0 0.0
    %1602 = vmatprep.subr.mxu0 0.0
    %1603 = vmatpush1.msra.mxu0 0.0
    %1604 = vmatprep.subr.mxu0 0.0
    %1605 = vmatpush1.msra.mxu0 0.0
    %1606 = vmatprep.subr.mxu0 0.0
    %1607 = vmatpush1.msra.mxu0 0.0
    %1608 = vmatprep.subr.mxu0 0.0
    %1609 = vmatpush1.msra.mxu0 0.0
    %1610 = vmatprep.subr.mxu0 0.0
    %1611 = vmatpush1.msra.mxu0 0.0
    %1612 = vmatprep.subr.mxu0 0.0
    %1613 = vmatpush1.msra.mxu0 0.0
    %1614 = vmatprep.subr.mxu0 0.0
    %1615 = vmatpush1.msra.mxu0 0.0
    %1616 = vmatprep.subr.mxu0 0.0
    %1617 = vmatpush1.msra.mxu0 0.0
    %1618 = vmatprep.subr.mxu0 0.0
    %1619 = vmatpush1.msra.mxu0 0.0
    %1620 = vmatprep.subr.mxu0 0.0
    %1621 = vmatpush1.msra.mxu0 0.0
    %1622 = vmatprep.subr.mxu0 0.0
    %1623 = vmatpush1.msra.mxu0 0.0
    %1624 = vmatprep.mubr.f32.mxu0 0.0
    %1625 = vmatmul.mubr.f32.gmra.mrb[0].mxu0 %v1542
    %v1626 = vpop.f32.mrb[0].mxu0
    %v1627 = vadd.f32 %v1548, %v1626
    %v1628 = vpop.f32.mrb[0].mxu0
    %v1629 = vadd.f32 %v1552, %v1628
    %1630 = vdwg.mxu0
    %1631 = vmatprep.subr.mxu0 0.0
    %1632 = vmatpush1.msra.mxu0 %v1494
    %1633 = vmatprep.subr.mxu0 0.0
    %1634 = vmatpush1.msra.mxu0 %v1497
    %1635 = vmatprep.subr.mxu0 0.0
    %1636 = vmatpush1.msra.mxu0 %v1500
    %1637 = vmatprep.subr.mxu0 0.0
    %1638 = vmatpush1.msra.mxu0 %v1503
    %1639 = vmatprep.subr.mxu0 0.0
    %1640 = vmatpush1.msra.mxu0 %v1506
    %1641 = vmatprep.subr.mxu0 0.0
    %1642 = vmatpush1.msra.mxu0 %v1509
    %1643 = vmatprep.subr.mxu0 0.0
    %1644 = vmatpush1.msra.mxu0 %v1512
    %1645 = vmatprep.subr.mxu0 0.0
    %1646 = vmatpush1.msra.mxu0 %v1515
    %1647 = vmatprep.subr.mxu0 0.0
    %1648 = vmatpush1.msra.mxu0 %v1518
    %1649 = vmatprep.subr.mxu0 0.0
    %1650 = vmatpush1.msra.mxu0 %v1521
    %1651 = vmatprep.subr.mxu0 0.0
    %1652 = vmatpush1.msra.mxu0 %v1524
    %1653 = vmatprep.subr.mxu0 0.0
    %1654 = vmatpush1.msra.mxu0 %v1527
    %1655 = vmatprep.subr.mxu0 0.0
    %1656 = vmatpush1.msra.mxu0 %v1530
    %1657 = vmatprep.subr.mxu0 0.0
    %1658 = vmatpush1.msra.mxu0 %v1533
    %1659 = vmatprep.subr.mxu0 0.0
    %1660 = vmatpush1.msra.mxu0 %v1536
    %1661 = vmatprep.subr.mxu0 0.0
    %1662 = vmatpush1.msra.mxu0 %v1539
    %1663 = vmatprep.subr.mxu0 0.0
    %1664 = vmatpush1.msra.mxu0 0.0
    %1665 = vmatprep.subr.mxu0 0.0
    %1666 = vmatpush1.msra.mxu0 0.0
    %1667 = vmatprep.subr.mxu0 0.0
    %1668 = vmatpush1.msra.mxu0 0.0
    %1669 = vmatprep.subr.mxu0 0.0
    %1670 = vmatpush1.msra.mxu0 0.0
    %1671 = vmatprep.subr.mxu0 0.0
    %1672 = vmatpush1.msra.mxu0 0.0
    %1673 = vmatprep.subr.mxu0 0.0
    %1674 = vmatpush1.msra.mxu0 0.0
    %1675 = vmatprep.subr.mxu0 0.0
    %1676 = vmatpush1.msra.mxu0 0.0
    %1677 = vmatprep.subr.mxu0 0.0
    %1678 = vmatpush1.msra.mxu0 0.0
    %1679 = vmatprep.subr.mxu0 0.0
    %1680 = vmatpush1.msra.mxu0 0.0
    %1681 = vmatprep.subr.mxu0 0.0
    %1682 = vmatpush1.msra.mxu0 0.0
    %1683 = vmatprep.subr.mxu0 0.0
    %1684 = vmatpush1.msra.mxu0 0.0
    %1685 = vmatprep.subr.mxu0 0.0
    %1686 = vmatpush1.msra.mxu0 0.0
    %1687 = vmatprep.subr.mxu0 0.0
    %1688 = vmatpush1.msra.mxu0 0.0
    %1689 = vmatprep.subr.mxu0 0.0
    %1690 = vmatpush1.msra.mxu0 0.0
    %1691 = vmatprep.subr.mxu0 0.0
    %1692 = vmatpush1.msra.mxu0 0.0
    %1693 = vmatprep.subr.mxu0 0.0
    %1694 = vmatpush1.msra.mxu0 0.0
    %1695 = vmatprep.mubr.f32.mxu0 0.0
    %1696 = vmatmul.mubr.f32.gmra.mrb[0].mxu0 %v1542
    %v1697 = vpop.f32.mrb[0].mxu0
    %v1698 = vadd.f32 %v1556, %v1697
    %v1699 = vpop.f32.mrb[0].mxu0
    %1700 = vdwg.mxu0
    %v1703 = vrot.slane %v1627, 3
    %v1704 = vrot.slane %v1629, 3
    %v1707 = vadd.f32 %v223, %v1703
    %v1708 = vadd.f32 %v225, %v1704
    %v1709 = vxor.u32 %v1707, 2147483648
    %v1710 = vxor.u32 %v1708, 2147483648
    %v1711 = vmul.f32 %v1709, 1.442695
    %v1712 = vpow.pop %v1711
    %v1713 = vmul.f32 %v1710, 1.442695
    %v1714 = vpow.pop %v1713
    %v1715 = vadd.f32 %v1712, 1.0
    %v1716 = vadd.f32 %v1714, 1.0
    %v1717 = vrcp.pop %v1715
    %v1718 = vmul.f32 1.0, %v1717
    %v1719 = vrcp.pop %v1716
    %v1720 = vmul.f32 1.0, %v1719
    %v1722 = vrot.slane %v1698, 3
    %v1724 = vmul.f32 %v1718, %v1722
    %v1725 = vadd.f32 %v294, %v1724
    %v1726 = vtanh.pop %v1725
    %v1727 = vsub.f32 1.0, %v1720
    %v1728 = vmul.f32 %v1727, %v1726
    %v1729 = vrot.slane %v1490, 7
    %v1731 = vmul.f32 %v1720, %v1729
    %v1732 = vadd.f32 %v1728, %v1731
    %1733 = vst [vmem:[#allocation2] sm:$0x20] %v1732
    %v1734 = vld [vmem:[#allocation6] sm:$0xff]
    %v1735 = vld [vmem:[#allocation6 + $0x8] sm:$0xff]
    %v1736 = vld [vmem:[#allocation6 + $0x10] sm:$0xff]
    %v1737 = vld [vmem:[#allocation6 + $0x18] sm:$0xff]
    %v1738 = vld [vmem:[#allocation6 + $0x20] sm:$0xff]
    %v1739 = vld [vmem:[#allocation6 + $0x28] sm:$0xff]
    %v1740 = vld [vmem:[#allocation6 + $0x30] sm:$0xff]
    %v1741 = vld [vmem:[#allocation6 + $0x38] sm:$0xff]
    %v1742 = vld [vmem:[#allocation6 + $0x40] sm:$0xff]
    %v1743 = vld [vmem:[#allocation6 + $0x48] sm:$0xff]
    %v1744 = vld [vmem:[#allocation6 + $0x50] sm:$0xff]
    %v1745 = vld [vmem:[#allocation6 + $0x58] sm:$0xff]
    %v1746 = vld [vmem:[#allocation6 + $0x60] sm:$0xff]
    %v1747 = vld [vmem:[#allocation6 + $0x68] sm:$0xff]
    %v1748 = vld [vmem:[#allocation6 + $0x70] sm:$0xff]
    %v1749 = vld [vmem:[#allocation6 + $0x78] sm:$0xff]
    %v1750 = vld [vmem:[#allocation6 + $0x80] sm:$0xff]
    %v1751 = vld [vmem:[#allocation6 + $0x88] sm:$0xff]
    %v1752 = vld [vmem:[#allocation6 + $0x90] sm:$0xff]
    %v1753 = vld [vmem:[#allocation6 + $0x98] sm:$0xff]
    %v1754 = vld [vmem:[#allocation6 + $0xa0] sm:$0xff]
    %v1755 = vld [vmem:[#allocation6 + $0xa8] sm:$0xff]
    %v1756 = vld [vmem:[#allocation6 + $0xb0] sm:$0xff]
    %v1757 = vld [vmem:[#allocation6 + $0xb8] sm:$0xff]
    %v1758 = vld [vmem:[#allocation6 + $0xc0] sm:$0xff]
    %v1759 = vld [vmem:[#allocation6 + $0xc8] sm:$0xff]
    %v1760 = vld [vmem:[#allocation6 + $0xd0] sm:$0xff]
    %v1761 = vld [vmem:[#allocation6 + $0xd8] sm:$0xff]
    %v1762 = vld [vmem:[#allocation6 + $0xe0] sm:$0xff]
    %v1763 = vld [vmem:[#allocation6 + $0xe8] sm:$0xff]
    %v1764 = vld [vmem:[#allocation6 + $0xf0] sm:$0xff]
    %v1765 = vld [vmem:[#allocation6 + $0xf8] sm:$0xff]
    %v1766 = vld [vmem:[#allocation6 + $0x100] sm:$0xff]
    %v1767 = vld [vmem:[#allocation6 + $0x108] sm:$0xff]
    %v1768 = vld [vmem:[#allocation6 + $0x110] sm:$0xff]
    %v1769 = vld [vmem:[#allocation6 + $0x118] sm:$0xff]
    %v1770 = vld [vmem:[#allocation6 + $0x120] sm:$0xff]
    %v1771 = vld [vmem:[#allocation6 + $0x128] sm:$0xff]
    %v1772 = vld [vmem:[#allocation6 + $0x130] sm:$0xff]
    %v1773 = vld [vmem:[#allocation6 + $0x138] sm:$0xff]
    %v1774 = vld [vmem:[#allocation6 + $0x140] sm:$0xff]
    %v1775 = vld [vmem:[#allocation6 + $0x148] sm:$0xff]
    %v1776 = vld [vmem:[#allocation6 + $0x150] sm:$0xff]
    %v1777 = vld [vmem:[#allocation6 + $0x158] sm:$0xff]
    %v1778 = vld [vmem:[#allocation6 + $0x160] sm:$0xff]
    %v1779 = vld [vmem:[#allocation6 + $0x168] sm:$0xff]
    %v1780 = vld [vmem:[#allocation6 + $0x170] sm:$0xff]
    %v1781 = vld [vmem:[#allocation6 + $0x178] sm:$0xff]
    %v1782 = vld [vmem:[#allocation9] sm:$0x7]
    %v1784 = vrot.slane %v1732, 5
    %v1787 = vlaneseq
    %v1788 = vshrl.u32 %v1787, 7
    %v1789 = vsub.s32 0, %v1788
    %v1790 = vrot.slane %v1782, %v1789
    %v1791 = vlaneseq
    %v1792 = vshrl.u32 %v1791, 7
    %v1793 = vsub.s32 1, %v1792
    %v1794 = vrot.slane %v1782, %v1793
    %v1795 = vlaneseq
    %v1796 = vshrl.u32 %v1795, 7
    %v1797 = vsub.s32 2, %v1796
    %v1798 = vrot.slane %v1782, %v1797
    %1802 = vmatprep.subr.mxu0 %v1735
    %1803 = vmatpush1.msra.mxu0 %v1734
    %1804 = vmatprep.subr.mxu0 %v1738
    %1805 = vmatpush1.msra.mxu0 %v1737
    %1806 = vmatprep.subr.mxu0 %v1741
    %1807 = vmatpush1.msra.mxu0 %v1740
    %1808 = vmatprep.subr.mxu0 %v1744
    %1809 = vmatpush1.msra.mxu0 %v1743
    %1810 = vmatprep.subr.mxu0 %v1747
    %1811 = vmatpush1.msra.mxu0 %v1746
    %1812 = vmatprep.subr.mxu0 %v1750
    %1813 = vmatpush1.msra.mxu0 %v1749
    %1814 = vmatprep.subr.mxu0 %v1753
    %1815 = vmatpush1.msra.mxu0 %v1752
    %1816 = vmatprep.subr.mxu0 %v1756
    %1817 = vmatpush1.msra.mxu0 %v1755
    %1818 = vmatprep.subr.mxu0 %v1759
    %1819 = vmatpush1.msra.mxu0 %v1758
    %1820 = vmatprep.subr.mxu0 %v1762
    %1821 = vmatpush1.msra.mxu0 %v1761
    %1822 = vmatprep.subr.mxu0 %v1765
    %1823 = vmatpush1.msra.mxu0 %v1764
    %1824 = vmatprep.subr.mxu0 %v1768
    %1825 = vmatpush1.msra.mxu0 %v1767
    %1826 = vmatprep.subr.mxu0 %v1771
    %1827 = vmatpush1.msra.mxu0 %v1770
    %1828 = vmatprep.subr.mxu0 %v1774
    %1829 = vmatpush1.msra.mxu0 %v1773
    %1830 = vmatprep.subr.mxu0 %v1777
    %1831 = vmatpush1.msra.mxu0 %v1776
    %1832 = vmatprep.subr.mxu0 %v1780
    %1833 = vmatpush1.msra.mxu0 %v1779
    %1834 = vmatprep.subr.mxu0 0.0
    %1835 = vmatpush1.msra.mxu0 0.0
    %1836 = vmatprep.subr.mxu0 0.0
    %1837 = vmatpush1.msra.mxu0 0.0
    %1838 = vmatprep.subr.mxu0 0.0
    %1839 = vmatpush1.msra.mxu0 0.0
    %1840 = vmatprep.subr.mxu0 0.0
    %1841 = vmatpush1.msra.mxu0 0.0
    %1842 = vmatprep.subr.mxu0 0.0
    %1843 = vmatpush1.msra.mxu0 0.0
    %1844 = vmatprep.subr.mxu0 0.0
    %1845 = vmatpush1.msra.mxu0 0.0
    %1846 = vmatprep.subr.mxu0 0.0
    %1847 = vmatpush1.msra.mxu0 0.0
    %1848 = vmatprep.subr.mxu0 0.0
    %1849 = vmatpush1.msra.mxu0 0.0
    %1850 = vmatprep.subr.mxu0 0.0
    %1851 = vmatpush1.msra.mxu0 0.0
    %1852 = vmatprep.subr.mxu0 0.0
    %1853 = vmatpush1.msra.mxu0 0.0
    %1854 = vmatprep.subr.mxu0 0.0
    %1855 = vmatpush1.msra.mxu0 0.0
    %1856 = vmatprep.subr.mxu0 0.0
    %1857 = vmatpush1.msra.mxu0 0.0
    %1858 = vmatprep.subr.mxu0 0.0
    %1859 = vmatpush1.msra.mxu0 0.0
    %1860 = vmatprep.subr.mxu0 0.0
    %1861 = vmatpush1.msra.mxu0 0.0
    %1862 = vmatprep.subr.mxu0 0.0
    %1863 = vmatpush1.msra.mxu0 0.0
    %1864 = vmatprep.subr.mxu0 0.0
    %1865 = vmatpush1.msra.mxu0 0.0
    %1866 = vmatprep.mubr.f32.mxu0 0.0
    %1867 = vmatmul.mubr.f32.gmra.mrb[0].mxu0 %v1784
    %v1868 = vpop.f32.mrb[0].mxu0
    %v1869 = vadd.f32 %v1790, %v1868
    %v1870 = vpop.f32.mrb[0].mxu0
    %v1871 = vadd.f32 %v1794, %v1870
    %1872 = vdwg.mxu0
    %1873 = vmatprep.subr.mxu0 0.0
    %1874 = vmatpush1.msra.mxu0 %v1736
    %1875 = vmatprep.subr.mxu0 0.0
    %1876 = vmatpush1.msra.mxu0 %v1739
    %1877 = vmatprep.subr.mxu0 0.0
    %1878 = vmatpush1.msra.mxu0 %v1742
    %1879 = vmatprep.subr.mxu0 0.0
    %1880 = vmatpush1.msra.mxu0 %v1745
    %1881 = vmatprep.subr.mxu0 0.0
    %1882 = vmatpush1.msra.mxu0 %v1748
    %1883 = vmatprep.subr.mxu0 0.0
    %1884 = vmatpush1.msra.mxu0 %v1751
    %1885 = vmatprep.subr.mxu0 0.0
    %1886 = vmatpush1.msra.mxu0 %v1754
    %1887 = vmatprep.subr.mxu0 0.0
    %1888 = vmatpush1.msra.mxu0 %v1757
    %1889 = vmatprep.subr.mxu0 0.0
    %1890 = vmatpush1.msra.mxu0 %v1760
    %1891 = vmatprep.subr.mxu0 0.0
    %1892 = vmatpush1.msra.mxu0 %v1763
    %1893 = vmatprep.subr.mxu0 0.0
    %1894 = vmatpush1.msra.mxu0 %v1766
    %1895 = vmatprep.subr.mxu0 0.0
    %1896 = vmatpush1.msra.mxu0 %v1769
    %1897 = vmatprep.subr.mxu0 0.0
    %1898 = vmatpush1.msra.mxu0 %v1772
    %1899 = vmatprep.subr.mxu0 0.0
    %1900 = vmatpush1.msra.mxu0 %v1775
    %1901 = vmatprep.subr.mxu0 0.0
    %1902 = vmatpush1.msra.mxu0 %v1778
    %1903 = vmatprep.subr.mxu0 0.0
    %1904 = vmatpush1.msra.mxu0 %v1781
    %1905 = vmatprep.subr.mxu0 0.0
    %1906 = vmatpush1.msra.mxu0 0.0
    %1907 = vmatprep.subr.mxu0 0.0
    %1908 = vmatpush1.msra.mxu0 0.0
    %1909 = vmatprep.subr.mxu0 0.0
    %1910 = vmatpush1.msra.mxu0 0.0
    %1911 = vmatprep.subr.mxu0 0.0
    %1912 = vmatpush1.msra.mxu0 0.0
    %1913 = vmatprep.subr.mxu0 0.0
    %1914 = vmatpush1.msra.mxu0 0.0
    %1915 = vmatprep.subr.mxu0 0.0
    %1916 = vmatpush1.msra.mxu0 0.0
    %1917 = vmatprep.subr.mxu0 0.0
    %1918 = vmatpush1.msra.mxu0 0.0
    %1919 = vmatprep.subr.mxu0 0.0
    %1920 = vmatpush1.msra.mxu0 0.0
    %1921 = vmatprep.subr.mxu0 0.0
    %1922 = vmatpush1.msra.mxu0 0.0
    %1923 = vmatprep.subr.mxu0 0.0
    %1924 = vmatpush1.msra.mxu0 0.0
    %1925 = vmatprep.subr.mxu0 0.0
    %1926 = vmatpush1.msra.mxu0 0.0
    %1927 = vmatprep.subr.mxu0 0.0
    %1928 = vmatpush1.msra.mxu0 0.0
    %1929 = vmatprep.subr.mxu0 0.0
    %1930 = vmatpush1.msra.mxu0 0.0
    %1931 = vmatprep.subr.mxu0 0.0
    %1932 = vmatpush1.msra.mxu0 0.0
    %1933 = vmatprep.subr.mxu0 0.0
    %1934 = vmatpush1.msra.mxu0 0.0
    %1935 = vmatprep.subr.mxu0 0.0
    %1936 = vmatpush1.msra.mxu0 0.0
    %1937 = vmatprep.mubr.f32.mxu0 0.0
    %1938 = vmatmul.mubr.f32.gmra.mrb[0].mxu0 %v1784
    %v1939 = vpop.f32.mrb[0].mxu0
    %v1940 = vadd.f32 %v1798, %v1939
    %v1941 = vpop.f32.mrb[0].mxu0
    %1942 = vdwg.mxu0
    %v1945 = vrot.slane %v1869, 2
    %v1946 = vrot.slane %v1871, 2
    %v1949 = vadd.f32 %v223, %v1945
    %v1950 = vadd.f32 %v225, %v1946
    %v1951 = vxor.u32 %v1949, 2147483648
    %v1952 = vxor.u32 %v1950, 2147483648
    %v1953 = vmul.f32 %v1951, 1.442695
    %v1954 = vpow.pop %v1953
    %v1955 = vmul.f32 %v1952, 1.442695
    %v1956 = vpow.pop %v1955
    %v1957 = vadd.f32 %v1954, 1.0
    %v1958 = vadd.f32 %v1956, 1.0
    %v1959 = vrcp.pop %v1957
    %v1960 = vmul.f32 1.0, %v1959
    %v1961 = vrcp.pop %v1958
    %v1962 = vmul.f32 1.0, %v1961
    %v1964 = vrot.slane %v1940, 2
    %v1966 = vmul.f32 %v1960, %v1964
    %v1967 = vadd.f32 %v294, %v1966
    %v1968 = vtanh.pop %v1967
    %v1969 = vsub.f32 1.0, %v1962
    %v1970 = vmul.f32 %v1969, %v1968
    %v1971 = vrot.slane %v1732, 7
    %v1973 = vmul.f32 %v1962, %v1971
    %v1974 = vadd.f32 %v1970, %v1973
    %1975 = vst [vmem:[#allocation2] sm:$0x40] %v1974
    %v1976 = vld [vmem:[#allocation6] sm:$0xff]
    %v1977 = vld [vmem:[#allocation6 + $0x8] sm:$0xff]
    %v1978 = vld [vmem:[#allocation6 + $0x10] sm:$0xff]
    %v1979 = vld [vmem:[#allocation6 + $0x18] sm:$0xff]
    %v1980 = vld [vmem:[#allocation6 + $0x20] sm:$0xff]
    %v1981 = vld [vmem:[#allocation6 + $0x28] sm:$0xff]
    %v1982 = vld [vmem:[#allocation6 + $0x30] sm:$0xff]
    %v1983 = vld [vmem:[#allocation6 + $0x38] sm:$0xff]
    %v1984 = vld [vmem:[#allocation6 + $0x40] sm:$0xff]
    %v1985 = vld [vmem:[#allocation6 + $0x48] sm:$0xff]
    %v1986 = vld [vmem:[#allocation6 + $0x50] sm:$0xff]
    %v1987 = vld [vmem:[#allocation6 + $0x58] sm:$0xff]
    %v1988 = vld [vmem:[#allocation6 + $0x60] sm:$0xff]
    %v1989 = vld [vmem:[#allocation6 + $0x68] sm:$0xff]
    %v1990 = vld [vmem:[#allocation6 + $0x70] sm:$0xff]
    %v1991 = vld [vmem:[#allocation6 + $0x78] sm:$0xff]
    %v1992 = vld [vmem:[#allocation6 + $0x80] sm:$0xff]
    %v1993 = vld [vmem:[#allocation6 + $0x88] sm:$0xff]
    %v1994 = vld [vmem:[#allocation6 + $0x90] sm:$0xff]
    %v1995 = vld [vmem:[#allocation6 + $0x98] sm:$0xff]
    %v1996 = vld [vmem:[#allocation6 + $0xa0] sm:$0xff]
    %v1997 = vld [vmem:[#allocation6 + $0xa8] sm:$0xff]
    %v1998 = vld [vmem:[#allocation6 + $0xb0] sm:$0xff]
    %v1999 = vld [vmem:[#allocation6 + $0xb8] sm:$0xff]
    %v2000 = vld [vmem:[#allocation6 + $0xc0] sm:$0xff]
    %v2001 = vld [vmem:[#allocation6 + $0xc8] sm:$0xff]
    %v2002 = vld [vmem:[#allocation6 + $0xd0] sm:$0xff]
    %v2003 = vld [vmem:[#allocation6 + $0xd8] sm:$0xff]
    %v2004 = vld [vmem:[#allocation6 + $0xe0] sm:$0xff]
    %v2005 = vld [vmem:[#allocation6 + $0xe8] sm:$0xff]
    %v2006 = vld [vmem:[#allocation6 + $0xf0] sm:$0xff]
    %v2007 = vld [vmem:[#allocation6 + $0xf8] sm:$0xff]
    %v2008 = vld [vmem:[#allocation6 + $0x100] sm:$0xff]
    %v2009 = vld [vmem:[#allocation6 + $0x108] sm:$0xff]
    %v2010 = vld [vmem:[#allocation6 + $0x110] sm:$0xff]
    %v2011 = vld [vmem:[#allocation6 + $0x118] sm:$0xff]
    %v2012 = vld [vmem:[#allocation6 + $0x120] sm:$0xff]
    %v2013 = vld [vmem:[#allocation6 + $0x128] sm:$0xff]
    %v2014 = vld [vmem:[#allocation6 + $0x130] sm:$0xff]
    %v2015 = vld [vmem:[#allocation6 + $0x138] sm:$0xff]
    %v2016 = vld [vmem:[#allocation6 + $0x140] sm:$0xff]
    %v2017 = vld [vmem:[#allocation6 + $0x148] sm:$0xff]
    %v2018 = vld [vmem:[#allocation6 + $0x150] sm:$0xff]
    %v2019 = vld [vmem:[#allocation6 + $0x158] sm:$0xff]
    %v2020 = vld [vmem:[#allocation6 + $0x160] sm:$0xff]
    %v2021 = vld [vmem:[#allocation6 + $0x168] sm:$0xff]
    %v2022 = vld [vmem:[#allocation6 + $0x170] sm:$0xff]
    %v2023 = vld [vmem:[#allocation6 + $0x178] sm:$0xff]
    %v2024 = vld [vmem:[#allocation9] sm:$0x7]
    %v2026 = vrot.slane %v1974, 6
    %v2029 = vlaneseq
    %v2030 = vshrl.u32 %v2029, 7
    %v2031 = vsub.s32 0, %v2030
    %v2032 = vrot.slane %v2024, %v2031
    %v2033 = vlaneseq
    %v2034 = vshrl.u32 %v2033, 7
    %v2035 = vsub.s32 1, %v2034
    %v2036 = vrot.slane %v2024, %v2035
    %v2037 = vlaneseq
    %v2038 = vshrl.u32 %v2037, 7
    %v2039 = vsub.s32 2, %v2038
    %v2040 = vrot.slane %v2024, %v2039
    %2044 = vmatprep.subr.mxu0 %v1977
    %2045 = vmatpush1.msra.mxu0 %v1976
    %2046 = vmatprep.subr.mxu0 %v1980
    %2047 = vmatpush1.msra.mxu0 %v1979
    %2048 = vmatprep.subr.mxu0 %v1983
    %2049 = vmatpush1.msra.mxu0 %v1982
    %2050 = vmatprep.subr.mxu0 %v1986
    %2051 = vmatpush1.msra.mxu0 %v1985
    %2052 = vmatprep.subr.mxu0 %v1989
    %2053 = vmatpush1.msra.mxu0 %v1988
    %2054 = vmatprep.subr.mxu0 %v1992
    %2055 = vmatpush1.msra.mxu0 %v1991
    %2056 = vmatprep.subr.mxu0 %v1995
    %2057 = vmatpush1.msra.mxu0 %v1994
    %2058 = vmatprep.subr.mxu0 %v1998
    %2059 = vmatpush1.msra.mxu0 %v1997
    %2060 = vmatprep.subr.mxu0 %v2001
    %2061 = vmatpush1.msra.mxu0 %v2000
    %2062 = vmatprep.subr.mxu0 %v2004
    %2063 = vmatpush1.msra.mxu0 %v2003
    %2064 = vmatprep.subr.mxu0 %v2007
    %2065 = vmatpush1.msra.mxu0 %v2006
    %2066 = vmatprep.subr.mxu0 %v2010
    %2067 = vmatpush1.msra.mxu0 %v2009
    %2068 = vmatprep.subr.mxu0 %v2013
    %2069 = vmatpush1.msra.mxu0 %v2012
    %2070 = vmatprep.subr.mxu0 %v2016
    %2071 = vmatpush1.msra.mxu0 %v2015
    %2072 = vmatprep.subr.mxu0 %v2019
    %2073 = vmatpush1.msra.mxu0 %v2018
    %2074 = vmatprep.subr.mxu0 %v2022
    %2075 = vmatpush1.msra.mxu0 %v2021
    %2076 = vmatprep.subr.mxu0 0.0
    %2077 = vmatpush1.msra.mxu0 0.0
    %2078 = vmatprep.subr.mxu0 0.0
    %2079 = vmatpush1.msra.mxu0 0.0
    %2080 = vmatprep.subr.mxu0 0.0
    %2081 = vmatpush1.msra.mxu0 0.0
    %2082 = vmatprep.subr.mxu0 0.0
    %2083 = vmatpush1.msra.mxu0 0.0
    %2084 = vmatprep.subr.mxu0 0.0
    %2085 = vmatpush1.msra.mxu0 0.0
    %2086 = vmatprep.subr.mxu0 0.0
    %2087 = vmatpush1.msra.mxu0 0.0
    %2088 = vmatprep.subr.mxu0 0.0
    %2089 = vmatpush1.msra.mxu0 0.0
    %2090 = vmatprep.subr.mxu0 0.0
    %2091 = vmatpush1.msra.mxu0 0.0
    %2092 = vmatprep.subr.mxu0 0.0
    %2093 = vmatpush1.msra.mxu0 0.0
    %2094 = vmatprep.subr.mxu0 0.0
    %2095 = vmatpush1.msra.mxu0 0.0
    %2096 = vmatprep.subr.mxu0 0.0
    %2097 = vmatpush1.msra.mxu0 0.0
    %2098 = vmatprep.subr.mxu0 0.0
    %2099 = vmatpush1.msra.mxu0 0.0
    %2100 = vmatprep.subr.mxu0 0.0
    %2101 = vmatpush1.msra.mxu0 0.0
    %2102 = vmatprep.subr.mxu0 0.0
    %2103 = vmatpush1.msra.mxu0 0.0
    %2104 = vmatprep.subr.mxu0 0.0
    %2105 = vmatpush1.msra.mxu0 0.0
    %2106 = vmatprep.subr.mxu0 0.0
    %2107 = vmatpush1.msra.mxu0 0.0
    %2108 = vmatprep.mubr.f32.mxu0 0.0
    %2109 = vmatmul.mubr.f32.gmra.mrb[0].mxu0 %v2026
    %v2110 = vpop.f32.mrb[0].mxu0
    %v2111 = vadd.f32 %v2032, %v2110
    %v2112 = vpop.f32.mrb[0].mxu0
    %v2113 = vadd.f32 %v2036, %v2112
    %2114 = vdwg.mxu0
    %2115 = vmatprep.subr.mxu0 0.0
    %2116 = vmatpush1.msra.mxu0 %v1978
    %2117 = vmatprep.subr.mxu0 0.0
    %2118 = vmatpush1.msra.mxu0 %v1981
    %2119 = vmatprep.subr.mxu0 0.0
    %2120 = vmatpush1.msra.mxu0 %v1984
    %2121 = vmatprep.subr.mxu0 0.0
    %2122 = vmatpush1.msra.mxu0 %v1987
    %2123 = vmatprep.subr.mxu0 0.0
    %2124 = vmatpush1.msra.mxu0 %v1990
    %2125 = vmatprep.subr.mxu0 0.0
    %2126 = vmatpush1.msra.mxu0 %v1993
    %2127 = vmatprep.subr.mxu0 0.0
    %2128 = vmatpush1.msra.mxu0 %v1996
    %2129 = vmatprep.subr.mxu0 0.0
    %2130 = vmatpush1.msra.mxu0 %v1999
    %2131 = vmatprep.subr.mxu0 0.0
    %2132 = vmatpush1.msra.mxu0 %v2002
    %2133 = vmatprep.subr.mxu0 0.0
    %2134 = vmatpush1.msra.mxu0 %v2005
    %2135 = vmatprep.subr.mxu0 0.0
    %2136 = vmatpush1.msra.mxu0 %v2008
    %2137 = vmatprep.subr.mxu0 0.0
    %2138 = vmatpush1.msra.mxu0 %v2011
    %2139 = vmatprep.subr.mxu0 0.0
    %2140 = vmatpush1.msra.mxu0 %v2014
    %2141 = vmatprep.subr.mxu0 0.0
    %2142 = vmatpush1.msra.mxu0 %v2017
    %2143 = vmatprep.subr.mxu0 0.0
    %2144 = vmatpush1.msra.mxu0 %v2020
    %2145 = vmatprep.subr.mxu0 0.0
    %2146 = vmatpush1.msra.mxu0 %v2023
    %2147 = vmatprep.subr.mxu0 0.0
    %2148 = vmatpush1.msra.mxu0 0.0
    %2149 = vmatprep.subr.mxu0 0.0
    %2150 = vmatpush1.msra.mxu0 0.0
    %2151 = vmatprep.subr.mxu0 0.0
    %2152 = vmatpush1.msra.mxu0 0.0
    %2153 = vmatprep.subr.mxu0 0.0
    %2154 = vmatpush1.msra.mxu0 0.0
    %2155 = vmatprep.subr.mxu0 0.0
    %2156 = vmatpush1.msra.mxu0 0.0
    %2157 = vmatprep.subr.mxu0 0.0
    %2158 = vmatpush1.msra.mxu0 0.0
    %2159 = vmatprep.subr.mxu0 0.0
    %2160 = vmatpush1.msra.mxu0 0.0
    %2161 = vmatprep.subr.mxu0 0.0
    %2162 = vmatpush1.msra.mxu0 0.0
    %2163 = vmatprep.subr.mxu0 0.0
    %2164 = vmatpush1.msra.mxu0 0.0
    %2165 = vmatprep.subr.mxu0 0.0
    %2166 = vmatpush1.msra.mxu0 0.0
    %2167 = vmatprep.subr.mxu0 0.0
    %2168 = vmatpush1.msra.mxu0 0.0
    %2169 = vmatprep.subr.mxu0 0.0
    %2170 = vmatpush1.msra.mxu0 0.0
    %2171 = vmatprep.subr.mxu0 0.0
    %2172 = vmatpush1.msra.mxu0 0.0
    %2173 = vmatprep.subr.mxu0 0.0
    %2174 = vmatpush1.msra.mxu0 0.0
    %2175 = vmatprep.subr.mxu0 0.0
    %2176 = vmatpush1.msra.mxu0 0.0
    %2177 = vmatprep.subr.mxu0 0.0
    %2178 = vmatpush1.msra.mxu0 0.0
    %2179 = vmatprep.mubr.f32.mxu0 0.0
    %2180 = vmatmul.mubr.f32.gmra.mrb[0].mxu0 %v2026
    %v2181 = vpop.f32.mrb[0].mxu0
    %v2182 = vadd.f32 %v2040, %v2181
    %v2183 = vpop.f32.mrb[0].mxu0
    %2184 = vdwg.mxu0
    %v2187 = vrot.slane %v2111, 1
    %v2188 = vrot.slane %v2113, 1
    %v2191 = vadd.f32 %v223, %v2187
    %v2192 = vadd.f32 %v225, %v2188
    %v2193 = vxor.u32 %v2191, 2147483648
    %v2194 = vxor.u32 %v2192, 2147483648
    %v2195 = vmul.f32 %v2193, 1.442695
    %v2196 = vpow.pop %v2195
    %v2197 = vmul.f32 %v2194, 1.442695
    %v2198 = vpow.pop %v2197
    %v2199 = vadd.f32 %v2196, 1.0
    %v2200 = vadd.f32 %v2198, 1.0
    %v2201 = vrcp.pop %v2199
    %v2202 = vmul.f32 1.0, %v2201
    %v2203 = vrcp.pop %v2200
    %v2204 = vmul.f32 1.0, %v2203
    %v2206 = vrot.slane %v2182, 1
    %v2208 = vmul.f32 %v2202, %v2206
    %v2209 = vadd.f32 %v294, %v2208
    %v2210 = vtanh.pop %v2209
    %v2211 = vsub.f32 1.0, %v2204
    %v2212 = vmul.f32 %v2211, %v2210
    %v2213 = vrot.slane %v1974, 7
    %v2215 = vmul.f32 %v2204, %v2213
    %v2216 = vadd.f32 %v2212, %v2215
    %2217 = vst [vmem:[#allocation2] sm:$0x80] %v2216
    %2218 = vst [vmem:[#allocation12 - $0x7] sm:$0x80] %v2216
    %v2219 = vld [vmem:[#allocation2] sm:$0xff]
    %s2220 = scalar_lea.vmem [#allocation3], 384
    %v2221 = vld [vmem:[%s2220] sm:$0xff]
    %v2222 = vld [vmem:[%s2220 + $0x8] sm:$0xff]
    %v2223 = vld [vmem:[%s2220 + $0x10] sm:$0xff]
    %v2224 = vld [vmem:[%s2220 + $0x18] sm:$0xff]
    %v2225 = vld [vmem:[%s2220 + $0x20] sm:$0xff]
    %v2226 = vld [vmem:[%s2220 + $0x28] sm:$0xff]
    %v2227 = vld [vmem:[%s2220 + $0x30] sm:$0xff]
    %v2228 = vld [vmem:[%s2220 + $0x38] sm:$0xff]
    %v2229 = vld [vmem:[%s2220 + $0x40] sm:$0xff]
    %v2230 = vld [vmem:[%s2220 + $0x48] sm:$0xff]
    %v2231 = vld [vmem:[%s2220 + $0x50] sm:$0xff]
    %v2232 = vld [vmem:[%s2220 + $0x58] sm:$0xff]
    %v2233 = vld [vmem:[%s2220 + $0x60] sm:$0xff]
    %v2234 = vld [vmem:[%s2220 + $0x68] sm:$0xff]
    %v2235 = vld [vmem:[%s2220 + $0x70] sm:$0xff]
    %v2236 = vld [vmem:[%s2220 + $0x78] sm:$0xff]
    %v2237 = vld [vmem:[%s2220 + $0x80] sm:$0xff]
    %v2238 = vld [vmem:[%s2220 + $0x88] sm:$0xff]
    %v2239 = vld [vmem:[%s2220 + $0x90] sm:$0xff]
    %v2240 = vld [vmem:[%s2220 + $0x98] sm:$0xff]
    %v2241 = vld [vmem:[%s2220 + $0xa0] sm:$0xff]
    %v2242 = vld [vmem:[%s2220 + $0xa8] sm:$0xff]
    %v2243 = vld [vmem:[%s2220 + $0xb0] sm:$0xff]
    %v2244 = vld [vmem:[%s2220 + $0xb8] sm:$0xff]
    %v2245 = vld [vmem:[%s2220 + $0xc0] sm:$0xff]
    %v2246 = vld [vmem:[%s2220 + $0xc8] sm:$0xff]
    %v2247 = vld [vmem:[%s2220 + $0xd0] sm:$0xff]
    %v2248 = vld [vmem:[%s2220 + $0xd8] sm:$0xff]
    %v2249 = vld [vmem:[%s2220 + $0xe0] sm:$0xff]
    %v2250 = vld [vmem:[%s2220 + $0xe8] sm:$0xff]
    %v2251 = vld [vmem:[%s2220 + $0xf0] sm:$0xff]
    %v2252 = vld [vmem:[%s2220 + $0xf8] sm:$0xff]
    %v2253 = vld [vmem:[%s2220 + $0x100] sm:$0xff]
    %v2254 = vld [vmem:[%s2220 + $0x108] sm:$0xff]
    %v2255 = vld [vmem:[%s2220 + $0x110] sm:$0xff]
    %v2256 = vld [vmem:[%s2220 + $0x118] sm:$0xff]
    %v2257 = vld [vmem:[%s2220 + $0x120] sm:$0xff]
    %v2258 = vld [vmem:[%s2220 + $0x128] sm:$0xff]
    %v2259 = vld [vmem:[%s2220 + $0x130] sm:$0xff]
    %v2260 = vld [vmem:[%s2220 + $0x138] sm:$0xff]
    %v2261 = vld [vmem:[%s2220 + $0x140] sm:$0xff]
    %v2262 = vld [vmem:[%s2220 + $0x148] sm:$0xff]
    %v2263 = vld [vmem:[%s2220 + $0x150] sm:$0xff]
    %v2264 = vld [vmem:[%s2220 + $0x158] sm:$0xff]
    %v2265 = vld [vmem:[%s2220 + $0x160] sm:$0xff]
    %v2266 = vld [vmem:[%s2220 + $0x168] sm:$0xff]
    %v2267 = vld [vmem:[%s2220 + $0x170] sm:$0xff]
    %v2268 = vld [vmem:[%s2220 + $0x178] sm:$0xff]
    %s2269 = scalar_lea.vmem [#allocation8], 3
    %v2270 = vld [vmem:[%s2269] sm:$0x7]
    %v2272 = vlaneseq
    %v2273 = vshrl.u32 %v2272, 7
    %v2274 = vsub.s32 0, %v2273
    %v2275 = vrot.slane %v2270, %v2274
    %v2276 = vlaneseq
    %v2277 = vshrl.u32 %v2276, 7
    %v2278 = vsub.s32 1, %v2277
    %v2279 = vrot.slane %v2270, %v2278
    %v2280 = vlaneseq
    %v2281 = vshrl.u32 %v2280, 7
    %v2282 = vsub.s32 2, %v2281
    %v2283 = vrot.slane %v2270, %v2282
    %2287 = vmatprep.subr.mxu0 %v2222
    %2288 = vmatpush1.msra.mxu0 %v2221
    %2289 = vmatprep.subr.mxu0 %v2225
    %2290 = vmatpush1.msra.mxu0 %v2224
    %2291 = vmatprep.subr.mxu0 %v2228
    %2292 = vmatpush1.msra.mxu0 %v2227
    %2293 = vmatprep.subr.mxu0 %v2231
    %2294 = vmatpush1.msra.mxu0 %v2230
    %2295 = vmatprep.subr.mxu0 %v2234
    %2296 = vmatpush1.msra.mxu0 %v2233
    %2297 = vmatprep.subr.mxu0 %v2237
    %2298 = vmatpush1.msra.mxu0 %v2236
    %2299 = vmatprep.subr.mxu0 %v2240
    %2300 = vmatpush1.msra.mxu0 %v2239
    %2301 = vmatprep.subr.mxu0 %v2243
    %2302 = vmatpush1.msra.mxu0 %v2242
    %2303 = vmatprep.subr.mxu0 %v2246
    %2304 = vmatpush1.msra.mxu0 %v2245
    %2305 = vmatprep.subr.mxu0 %v2249
    %2306 = vmatpush1.msra.mxu0 %v2248
    %2307 = vmatprep.subr.mxu0 %v2252
    %2308 = vmatpush1.msra.mxu0 %v2251
    %2309 = vmatprep.subr.mxu0 %v2255
    %2310 = vmatpush1.msra.mxu0 %v2254
    %2311 = vmatprep.subr.mxu0 %v2258
    %2312 = vmatpush1.msra.mxu0 %v2257
    %2313 = vmatprep.subr.mxu0 %v2261
    %2314 = vmatpush1.msra.mxu0 %v2260
    %2315 = vmatprep.subr.mxu0 %v2264
    %2316 = vmatpush1.msra.mxu0 %v2263
    %2317 = vmatprep.subr.mxu0 %v2267
    %2318 = vmatpush1.msra.mxu0 %v2266
    %2319 = vmatprep.subr.mxu0 0.0
    %2320 = vmatpush1.msra.mxu0 0.0
    %2321 = vmatprep.subr.mxu0 0.0
    %2322 = vmatpush1.msra.mxu0 0.0
    %2323 = vmatprep.subr.mxu0 0.0
    %2324 = vmatpush1.msra.mxu0 0.0
    %2325 = vmatprep.subr.mxu0 0.0
    %2326 = vmatpush1.msra.mxu0 0.0
    %2327 = vmatprep.subr.mxu0 0.0
    %2328 = vmatpush1.msra.mxu0 0.0
    %2329 = vmatprep.subr.mxu0 0.0
    %2330 = vmatpush1.msra.mxu0 0.0
    %2331 = vmatprep.subr.mxu0 0.0
    %2332 = vmatpush1.msra.mxu0 0.0
    %2333 = vmatprep.subr.mxu0 0.0
    %2334 = vmatpush1.msra.mxu0 0.0
    %2335 = vmatprep.subr.mxu0 0.0
    %2336 = vmatpush1.msra.mxu0 0.0
    %2337 = vmatprep.subr.mxu0 0.0
    %2338 = vmatpush1.msra.mxu0 0.0
    %2339 = vmatprep.subr.mxu0 0.0
    %2340 = vmatpush1.msra.mxu0 0.0
    %2341 = vmatprep.subr.mxu0 0.0
    %2342 = vmatpush1.msra.mxu0 0.0
    %2343 = vmatprep.subr.mxu0 0.0
    %2344 = vmatpush1.msra.mxu0 0.0
    %2345 = vmatprep.subr.mxu0 0.0
    %2346 = vmatpush1.msra.mxu0 0.0
    %2347 = vmatprep.subr.mxu0 0.0
    %2348 = vmatpush1.msra.mxu0 0.0
    %2349 = vmatprep.subr.mxu0 0.0
    %2350 = vmatpush1.msra.mxu0 0.0
    %2351 = vmatprep.mubr.f32.mxu0 0.0
    %2352 = vmatmul.mubr.f32.gmra.mrb[0].mxu0 %v2219
    %v2353 = vpop.f32.mrb[0].mxu0
    %v2354 = vadd.f32 %v2275, %v2353
    %v2355 = vpop.f32.mrb[0].mxu0
    %v2356 = vadd.f32 %v2279, %v2355
    %2357 = vdwg.mxu0
    %2358 = vmatprep.subr.mxu0 0.0
    %2359 = vmatpush1.msra.mxu0 %v2223
    %2360 = vmatprep.subr.mxu0 0.0
    %2361 = vmatpush1.msra.mxu0 %v2226
    %2362 = vmatprep.subr.mxu0 0.0
    %2363 = vmatpush1.msra.mxu0 %v2229
    %2364 = vmatprep.subr.mxu0 0.0
    %2365 = vmatpush1.msra.mxu0 %v2232
    %2366 = vmatprep.subr.mxu0 0.0
    %2367 = vmatpush1.msra.mxu0 %v2235
    %2368 = vmatprep.subr.mxu0 0.0
    %2369 = vmatpush1.msra.mxu0 %v2238
    %2370 = vmatprep.subr.mxu0 0.0
    %2371 = vmatpush1.msra.mxu0 %v2241
    %2372 = vmatprep.subr.mxu0 0.0
    %2373 = vmatpush1.msra.mxu0 %v2244
    %2374 = vmatprep.subr.mxu0 0.0
    %2375 = vmatpush1.msra.mxu0 %v2247
    %2376 = vmatprep.subr.mxu0 0.0
    %2377 = vmatpush1.msra.mxu0 %v2250
    %2378 = vmatprep.subr.mxu0 0.0
    %2379 = vmatpush1.msra.mxu0 %v2253
    %2380 = vmatprep.subr.mxu0 0.0
    %2381 = vmatpush1.msra.mxu0 %v2256
    %2382 = vmatprep.subr.mxu0 0.0
    %2383 = vmatpush1.msra.mxu0 %v2259
    %2384 = vmatprep.subr.mxu0 0.0
    %2385 = vmatpush1.msra.mxu0 %v2262
    %2386 = vmatprep.subr.mxu0 0.0
    %2387 = vmatpush1.msra.mxu0 %v2265
    %2388 = vmatprep.subr.mxu0 0.0
    %2389 = vmatpush1.msra.mxu0 %v2268
    %2390 = vmatprep.subr.mxu0 0.0
    %2391 = vmatpush1.msra.mxu0 0.0
    %2392 = vmatprep.subr.mxu0 0.0
    %2393 = vmatpush1.msra.mxu0 0.0
    %2394 = vmatprep.subr.mxu0 0.0
    %2395 = vmatpush1.msra.mxu0 0.0
    %2396 = vmatprep.subr.mxu0 0.0
    %2397 = vmatpush1.msra.mxu0 0.0
    %2398 = vmatprep.subr.mxu0 0.0
    %2399 = vmatpush1.msra.mxu0 0.0
    %2400 = vmatprep.subr.mxu0 0.0
    %2401 = vmatpush1.msra.mxu0 0.0
    %2402 = vmatprep.subr.mxu0 0.0
    %2403 = vmatpush1.msra.mxu0 0.0
    %2404 = vmatprep.subr.mxu0 0.0
    %2405 = vmatpush1.msra.mxu0 0.0
    %2406 = vmatprep.subr.mxu0 0.0
    %2407 = vmatpush1.msra.mxu0 0.0
    %2408 = vmatprep.subr.mxu0 0.0
    %2409 = vmatpush1.msra.mxu0 0.0
    %2410 = vmatprep.subr.mxu0 0.0
    %2411 = vmatpush1.msra.mxu0 0.0
    %2412 = vmatprep.subr.mxu0 0.0
    %2413 = vmatpush1.msra.mxu0 0.0
    %2414 = vmatprep.subr.mxu0 0.0
    %2415 = vmatpush1.msra.mxu0 0.0
    %2416 = vmatprep.subr.mxu0 0.0
    %2417 = vmatpush1.msra.mxu0 0.0
    %2418 = vmatprep.subr.mxu0 0.0
    %2419 = vmatpush1.msra.mxu0 0.0
    %2420 = vmatprep.subr.mxu0 0.0
    %2421 = vmatpush1.msra.mxu0 0.0
    %2422 = vmatprep.mubr.f32.mxu0 0.0
    %2423 = vmatmul.mubr.f32.gmra.mrb[0].mxu0 %v2219
    %v2424 = vpop.f32.mrb[0].mxu0
    %v2425 = vadd.f32 %v2283, %v2424
    %v2426 = vpop.f32.mrb[0].mxu0
    %2427 = vdwg.mxu0
    %s2428 = scalar_lea.vmem %s7, 1
    %v2429 = vld [vmem:[%s2428] sm:$0x1]
    %s2430 = scalar_lea.vmem [#allocation6], 384
    %v2431 = vld [vmem:[%s2430] sm:$0xff]
    %v2432 = vld [vmem:[%s2430 + $0x8] sm:$0xff]
    %v2433 = vld [vmem:[%s2430 + $0x10] sm:$0xff]
    %v2434 = vld [vmem:[%s2430 + $0x18] sm:$0xff]
    %v2435 = vld [vmem:[%s2430 + $0x20] sm:$0xff]
    %v2436 = vld [vmem:[%s2430 + $0x28] sm:$0xff]
    %v2437 = vld [vmem:[%s2430 + $0x30] sm:$0xff]
    %v2438 = vld [vmem:[%s2430 + $0x38] sm:$0xff]
    %v2439 = vld [vmem:[%s2430 + $0x40] sm:$0xff]
    %v2440 = vld [vmem:[%s2430 + $0x48] sm:$0xff]
    %v2441 = vld [vmem:[%s2430 + $0x50] sm:$0xff]
    %v2442 = vld [vmem:[%s2430 + $0x58] sm:$0xff]
    %v2443 = vld [vmem:[%s2430 + $0x60] sm:$0xff]
    %v2444 = vld [vmem:[%s2430 + $0x68] sm:$0xff]
    %v2445 = vld [vmem:[%s2430 + $0x70] sm:$0xff]
    %v2446 = vld [vmem:[%s2430 + $0x78] sm:$0xff]
    %v2447 = vld [vmem:[%s2430 + $0x80] sm:$0xff]
    %v2448 = vld [vmem:[%s2430 + $0x88] sm:$0xff]
    %v2449 = vld [vmem:[%s2430 + $0x90] sm:$0xff]
    %v2450 = vld [vmem:[%s2430 + $0x98] sm:$0xff]
    %v2451 = vld [vmem:[%s2430 + $0xa0] sm:$0xff]
    %v2452 = vld [vmem:[%s2430 + $0xa8] sm:$0xff]
    %v2453 = vld [vmem:[%s2430 + $0xb0] sm:$0xff]
    %v2454 = vld [vmem:[%s2430 + $0xb8] sm:$0xff]
    %v2455 = vld [vmem:[%s2430 + $0xc0] sm:$0xff]
    %v2456 = vld [vmem:[%s2430 + $0xc8] sm:$0xff]
    %v2457 = vld [vmem:[%s2430 + $0xd0] sm:$0xff]
    %v2458 = vld [vmem:[%s2430 + $0xd8] sm:$0xff]
    %v2459 = vld [vmem:[%s2430 + $0xe0] sm:$0xff]
    %v2460 = vld [vmem:[%s2430 + $0xe8] sm:$0xff]
    %v2461 = vld [vmem:[%s2430 + $0xf0] sm:$0xff]
    %v2462 = vld [vmem:[%s2430 + $0xf8] sm:$0xff]
    %v2463 = vld [vmem:[%s2430 + $0x100] sm:$0xff]
    %v2464 = vld [vmem:[%s2430 + $0x108] sm:$0xff]
    %v2465 = vld [vmem:[%s2430 + $0x110] sm:$0xff]
    %v2466 = vld [vmem:[%s2430 + $0x118] sm:$0xff]
    %v2467 = vld [vmem:[%s2430 + $0x120] sm:$0xff]
    %v2468 = vld [vmem:[%s2430 + $0x128] sm:$0xff]
    %v2469 = vld [vmem:[%s2430 + $0x130] sm:$0xff]
    %v2470 = vld [vmem:[%s2430 + $0x138] sm:$0xff]
    %v2471 = vld [vmem:[%s2430 + $0x140] sm:$0xff]
    %v2472 = vld [vmem:[%s2430 + $0x148] sm:$0xff]
    %v2473 = vld [vmem:[%s2430 + $0x150] sm:$0xff]
    %v2474 = vld [vmem:[%s2430 + $0x158] sm:$0xff]
    %v2475 = vld [vmem:[%s2430 + $0x160] sm:$0xff]
    %v2476 = vld [vmem:[%s2430 + $0x168] sm:$0xff]
    %v2477 = vld [vmem:[%s2430 + $0x170] sm:$0xff]
    %v2478 = vld [vmem:[%s2430 + $0x178] sm:$0xff]
    %s2479 = scalar_lea.vmem [#allocation9], 3
    %v2480 = vld [vmem:[%s2479] sm:$0x7]
    %v2482 = vlaneseq
    %v2483 = vshrl.u32 %v2482, 7
    %v2484 = vsub.s32 0, %v2483
    %v2485 = vrot.slane %v2480, %v2484
    %v2486 = vlaneseq
    %v2487 = vshrl.u32 %v2486, 7
    %v2488 = vsub.s32 1, %v2487
    %v2489 = vrot.slane %v2480, %v2488
    %v2490 = vlaneseq
    %v2491 = vshrl.u32 %v2490, 7
    %v2492 = vsub.s32 2, %v2491
    %v2493 = vrot.slane %v2480, %v2492
    %2497 = vmatprep.subr.mxu0 %v2432
    %2498 = vmatpush1.msra.mxu0 %v2431
    %2499 = vmatprep.subr.mxu0 %v2435
    %2500 = vmatpush1.msra.mxu0 %v2434
    %2501 = vmatprep.subr.mxu0 %v2438
    %2502 = vmatpush1.msra.mxu0 %v2437
    %2503 = vmatprep.subr.mxu0 %v2441
    %2504 = vmatpush1.msra.mxu0 %v2440
    %2505 = vmatprep.subr.mxu0 %v2444
    %2506 = vmatpush1.msra.mxu0 %v2443
    %2507 = vmatprep.subr.mxu0 %v2447
    %2508 = vmatpush1.msra.mxu0 %v2446
    %2509 = vmatprep.subr.mxu0 %v2450
    %2510 = vmatpush1.msra.mxu0 %v2449
    %2511 = vmatprep.subr.mxu0 %v2453
    %2512 = vmatpush1.msra.mxu0 %v2452
    %2513 = vmatprep.subr.mxu0 %v2456
    %2514 = vmatpush1.msra.mxu0 %v2455
    %2515 = vmatprep.subr.mxu0 %v2459
    %2516 = vmatpush1.msra.mxu0 %v2458
    %2517 = vmatprep.subr.mxu0 %v2462
    %2518 = vmatpush1.msra.mxu0 %v2461
    %2519 = vmatprep.subr.mxu0 %v2465
    %2520 = vmatpush1.msra.mxu0 %v2464
    %2521 = vmatprep.subr.mxu0 %v2468
    %2522 = vmatpush1.msra.mxu0 %v2467
    %2523 = vmatprep.subr.mxu0 %v2471
    %2524 = vmatpush1.msra.mxu0 %v2470
    %2525 = vmatprep.subr.mxu0 %v2474
    %2526 = vmatpush1.msra.mxu0 %v2473
    %2527 = vmatprep.subr.mxu0 %v2477
    %2528 = vmatpush1.msra.mxu0 %v2476
    %2529 = vmatprep.subr.mxu0 0.0
    %2530 = vmatpush1.msra.mxu0 0.0
    %2531 = vmatprep.subr.mxu0 0.0
    %2532 = vmatpush1.msra.mxu0 0.0
    %2533 = vmatprep.subr.mxu0 0.0
    %2534 = vmatpush1.msra.mxu0 0.0
    %2535 = vmatprep.subr.mxu0 0.0
    %2536 = vmatpush1.msra.mxu0 0.0
    %2537 = vmatprep.subr.mxu0 0.0
    %2538 = vmatpush1.msra.mxu0 0.0
    %2539 = vmatprep.subr.mxu0 0.0
    %2540 = vmatpush1.msra.mxu0 0.0
    %2541 = vmatprep.subr.mxu0 0.0
    %2542 = vmatpush1.msra.mxu0 0.0
    %2543 = vmatprep.subr.mxu0 0.0
    %2544 = vmatpush1.msra.mxu0 0.0
    %2545 = vmatprep.subr.mxu0 0.0
    %2546 = vmatpush1.msra.mxu0 0.0
    %2547 = vmatprep.subr.mxu0 0.0
    %2548 = vmatpush1.msra.mxu0 0.0
    %2549 = vmatprep.subr.mxu0 0.0
    %2550 = vmatpush1.msra.mxu0 0.0
    %2551 = vmatprep.subr.mxu0 0.0
    %2552 = vmatpush1.msra.mxu0 0.0
    %2553 = vmatprep.subr.mxu0 0.0
    %2554 = vmatpush1.msra.mxu0 0.0
    %2555 = vmatprep.subr.mxu0 0.0
    %2556 = vmatpush1.msra.mxu0 0.0
    %2557 = vmatprep.subr.mxu0 0.0
    %2558 = vmatpush1.msra.mxu0 0.0
    %2559 = vmatprep.subr.mxu0 0.0
    %2560 = vmatpush1.msra.mxu0 0.0
    %2561 = vmatprep.mubr.f32.mxu0 0.0
    %2562 = vmatmul.mubr.f32.gmra.mrb[0].mxu0 %v2429
    %v2563 = vpop.f32.mrb[0].mxu0
    %v2564 = vadd.f32 %v2485, %v2563
    %v2565 = vpop.f32.mrb[0].mxu0
    %v2566 = vadd.f32 %v2489, %v2565
    %2567 = vdwg.mxu0
    %2568 = vmatprep.subr.mxu0 0.0
    %2569 = vmatpush1.msra.mxu0 %v2433
    %2570 = vmatprep.subr.mxu0 0.0
    %2571 = vmatpush1.msra.mxu0 %v2436
    %2572 = vmatprep.subr.mxu0 0.0
    %2573 = vmatpush1.msra.mxu0 %v2439
    %2574 = vmatprep.subr.mxu0 0.0
    %2575 = vmatpush1.msra.mxu0 %v2442
    %2576 = vmatprep.subr.mxu0 0.0
    %2577 = vmatpush1.msra.mxu0 %v2445
    %2578 = vmatprep.subr.mxu0 0.0
    %2579 = vmatpush1.msra.mxu0 %v2448
    %2580 = vmatprep.subr.mxu0 0.0
    %2581 = vmatpush1.msra.mxu0 %v2451
    %2582 = vmatprep.subr.mxu0 0.0
    %2583 = vmatpush1.msra.mxu0 %v2454
    %2584 = vmatprep.subr.mxu0 0.0
    %2585 = vmatpush1.msra.mxu0 %v2457
    %2586 = vmatprep.subr.mxu0 0.0
    %2587 = vmatpush1.msra.mxu0 %v2460
    %2588 = vmatprep.subr.mxu0 0.0
    %2589 = vmatpush1.msra.mxu0 %v2463
    %2590 = vmatprep.subr.mxu0 0.0
    %2591 = vmatpush1.msra.mxu0 %v2466
    %2592 = vmatprep.subr.mxu0 0.0
    %2593 = vmatpush1.msra.mxu0 %v2469
    %2594 = vmatprep.subr.mxu0 0.0
    %2595 = vmatpush1.msra.mxu0 %v2472
    %2596 = vmatprep.subr.mxu0 0.0
    %2597 = vmatpush1.msra.mxu0 %v2475
    %2598 = vmatprep.subr.mxu0 0.0
    %2599 = vmatpush1.msra.mxu0 %v2478
    %2600 = vmatprep.subr.mxu0 0.0
    %2601 = vmatpush1.msra.mxu0 0.0
    %2602 = vmatprep.subr.mxu0 0.0
    %2603 = vmatpush1.msra.mxu0 0.0
    %2604 = vmatprep.subr.mxu0 0.0
    %2605 = vmatpush1.msra.mxu0 0.0
    %2606 = vmatprep.subr.mxu0 0.0
    %2607 = vmatpush1.msra.mxu0 0.0
    %2608 = vmatprep.subr.mxu0 0.0
    %2609 = vmatpush1.msra.mxu0 0.0
    %2610 = vmatprep.subr.mxu0 0.0
    %2611 = vmatpush1.msra.mxu0 0.0
    %2612 = vmatprep.subr.mxu0 0.0
    %2613 = vmatpush1.msra.mxu0 0.0
    %2614 = vmatprep.subr.mxu0 0.0
    %2615 = vmatpush1.msra.mxu0 0.0
    %2616 = vmatprep.subr.mxu0 0.0
    %2617 = vmatpush1.msra.mxu0 0.0
    %2618 = vmatprep.subr.mxu0 0.0
    %2619 = vmatpush1.msra.mxu0 0.0
    %2620 = vmatprep.subr.mxu0 0.0
    %2621 = vmatpush1.msra.mxu0 0.0
    %2622 = vmatprep.subr.mxu0 0.0
    %2623 = vmatpush1.msra.mxu0 0.0
    %2624 = vmatprep.subr.mxu0 0.0
    %2625 = vmatpush1.msra.mxu0 0.0
    %2626 = vmatprep.subr.mxu0 0.0
    %2627 = vmatpush1.msra.mxu0 0.0
    %2628 = vmatprep.subr.mxu0 0.0
    %2629 = vmatpush1.msra.mxu0 0.0
    %2630 = vmatprep.subr.mxu0 0.0
    %2631 = vmatpush1.msra.mxu0 0.0
    %2632 = vmatprep.mubr.f32.mxu0 0.0
    %2633 = vmatmul.mubr.f32.gmra.mrb[0].mxu0 %v2429
    %v2634 = vpop.f32.mrb[0].mxu0
    %v2635 = vadd.f32 %v2493, %v2634
    %v2636 = vpop.f32.mrb[0].mxu0
    %2637 = vdwg.mxu0
    %v2638 = vadd.f32 %v2354, %v2564
    %v2639 = vadd.f32 %v2356, %v2566
    %v2640 = vxor.u32 %v2638, 2147483648
    %v2641 = vxor.u32 %v2639, 2147483648
    %v2642 = vmul.f32 %v2640, 1.442695
    %v2643 = vpow.pop %v2642
    %v2644 = vmul.f32 %v2641, 1.442695
    %v2645 = vpow.pop %v2644
    %v2646 = vadd.f32 %v2643, 1.0
    %v2647 = vadd.f32 %v2645, 1.0
    %v2648 = vrcp.pop %v2646
    %v2649 = vmul.f32 1.0, %v2648
    %v2650 = vrcp.pop %v2647
    %v2651 = vmul.f32 1.0, %v2650
    %v2652 = vmul.f32 %v2649, %v2635
    %v2653 = vadd.f32 %v2425, %v2652
    %v2654 = vtanh.pop %v2653
    %v2655 = vsub.f32 1.0, %v2651
    %v2656 = vmul.f32 %v2655, %v2654
    %v2657 = vmul.f32 %v2651, %v2429
    %v2658 = vadd.f32 %v2656, %v2657
    %2659 = vst [vmem:[#allocation2] sm:$0x1] %v2658
    %v2660 = vld [vmem:[%s2430] sm:$0xff]
    %v2661 = vld [vmem:[%s2430 + $0x8] sm:$0xff]
    %v2662 = vld [vmem:[%s2430 + $0x10] sm:$0xff]
    %v2663 = vld [vmem:[%s2430 + $0x18] sm:$0xff]
    %v2664 = vld [vmem:[%s2430 + $0x20] sm:$0xff]
    %v2665 = vld [vmem:[%s2430 + $0x28] sm:$0xff]
    %v2666 = vld [vmem:[%s2430 + $0x30] sm:$0xff]
    %v2667 = vld [vmem:[%s2430 + $0x38] sm:$0xff]
    %v2668 = vld [vmem:[%s2430 + $0x40] sm:$0xff]
    %v2669 = vld [vmem:[%s2430 + $0x48] sm:$0xff]
    %v2670 = vld [vmem:[%s2430 + $0x50] sm:$0xff]
    %v2671 = vld [vmem:[%s2430 + $0x58] sm:$0xff]
    %v2672 = vld [vmem:[%s2430 + $0x60] sm:$0xff]
    %v2673 = vld [vmem:[%s2430 + $0x68] sm:$0xff]
    %v2674 = vld [vmem:[%s2430 + $0x70] sm:$0xff]
    %v2675 = vld [vmem:[%s2430 + $0x78] sm:$0xff]
    %v2676 = vld [vmem:[%s2430 + $0x80] sm:$0xff]
    %v2677 = vld [vmem:[%s2430 + $0x88] sm:$0xff]
    %v2678 = vld [vmem:[%s2430 + $0x90] sm:$0xff]
    %v2679 = vld [vmem:[%s2430 + $0x98] sm:$0xff]
    %v2680 = vld [vmem:[%s2430 + $0xa0] sm:$0xff]
    %v2681 = vld [vmem:[%s2430 + $0xa8] sm:$0xff]
    %v2682 = vld [vmem:[%s2430 + $0xb0] sm:$0xff]
    %v2683 = vld [vmem:[%s2430 + $0xb8] sm:$0xff]
    %v2684 = vld [vmem:[%s2430 + $0xc0] sm:$0xff]
    %v2685 = vld [vmem:[%s2430 + $0xc8] sm:$0xff]
    %v2686 = vld [vmem:[%s2430 + $0xd0] sm:$0xff]
    %v2687 = vld [vmem:[%s2430 + $0xd8] sm:$0xff]
    %v2688 = vld [vmem:[%s2430 + $0xe0] sm:$0xff]
    %v2689 = vld [vmem:[%s2430 + $0xe8] sm:$0xff]
    %v2690 = vld [vmem:[%s2430 + $0xf0] sm:$0xff]
    %v2691 = vld [vmem:[%s2430 + $0xf8] sm:$0xff]
    %v2692 = vld [vmem:[%s2430 + $0x100] sm:$0xff]
    %v2693 = vld [vmem:[%s2430 + $0x108] sm:$0xff]
    %v2694 = vld [vmem:[%s2430 + $0x110] sm:$0xff]
    %v2695 = vld [vmem:[%s2430 + $0x118] sm:$0xff]
    %v2696 = vld [vmem:[%s2430 + $0x120] sm:$0xff]
    %v2697 = vld [vmem:[%s2430 + $0x128] sm:$0xff]
    %v2698 = vld [vmem:[%s2430 + $0x130] sm:$0xff]
    %v2699 = vld [vmem:[%s2430 + $0x138] sm:$0xff]
    %v2700 = vld [vmem:[%s2430 + $0x140] sm:$0xff]
    %v2701 = vld [vmem:[%s2430 + $0x148] sm:$0xff]
    %v2702 = vld [vmem:[%s2430 + $0x150] sm:$0xff]
    %v2703 = vld [vmem:[%s2430 + $0x158] sm:$0xff]
    %v2704 = vld [vmem:[%s2430 + $0x160] sm:$0xff]
    %v2705 = vld [vmem:[%s2430 + $0x168] sm:$0xff]
    %v2706 = vld [vmem:[%s2430 + $0x170] sm:$0xff]
    %v2707 = vld [vmem:[%s2430 + $0x178] sm:$0xff]
    %v2708 = vld [vmem:[%s2479] sm:$0x7]
    %v2710 = vlaneseq
    %v2711 = vshrl.u32 %v2710, 7
    %v2712 = vsub.s32 0, %v2711
    %v2713 = vrot.slane %v2708, %v2712
    %v2714 = vlaneseq
    %v2715 = vshrl.u32 %v2714, 7
    %v2716 = vsub.s32 1, %v2715
    %v2717 = vrot.slane %v2708, %v2716
    %v2718 = vlaneseq
    %v2719 = vshrl.u32 %v2718, 7
    %v2720 = vsub.s32 2, %v2719
    %v2721 = vrot.slane %v2708, %v2720
    %2725 = vmatprep.subr.mxu0 %v2661
    %2726 = vmatpush1.msra.mxu0 %v2660
    %2727 = vmatprep.subr.mxu0 %v2664
    %2728 = vmatpush1.msra.mxu0 %v2663
    %2729 = vmatprep.subr.mxu0 %v2667
    %2730 = vmatpush1.msra.mxu0 %v2666
    %2731 = vmatprep.subr.mxu0 %v2670
    %2732 = vmatpush1.msra.mxu0 %v2669
    %2733 = vmatprep.subr.mxu0 %v2673
    %2734 = vmatpush1.msra.mxu0 %v2672
    %2735 = vmatprep.subr.mxu0 %v2676
    %2736 = vmatpush1.msra.mxu0 %v2675
    %2737 = vmatprep.subr.mxu0 %v2679
    %2738 = vmatpush1.msra.mxu0 %v2678
    %2739 = vmatprep.subr.mxu0 %v2682
    %2740 = vmatpush1.msra.mxu0 %v2681
    %2741 = vmatprep.subr.mxu0 %v2685
    %2742 = vmatpush1.msra.mxu0 %v2684
    %2743 = vmatprep.subr.mxu0 %v2688
    %2744 = vmatpush1.msra.mxu0 %v2687
    %2745 = vmatprep.subr.mxu0 %v2691
    %2746 = vmatpush1.msra.mxu0 %v2690
    %2747 = vmatprep.subr.mxu0 %v2694
    %2748 = vmatpush1.msra.mxu0 %v2693
    %2749 = vmatprep.subr.mxu0 %v2697
    %2750 = vmatpush1.msra.mxu0 %v2696
    %2751 = vmatprep.subr.mxu0 %v2700
    %2752 = vmatpush1.msra.mxu0 %v2699
    %2753 = vmatprep.subr.mxu0 %v2703
    %2754 = vmatpush1.msra.mxu0 %v2702
    %2755 = vmatprep.subr.mxu0 %v2706
    %2756 = vmatpush1.msra.mxu0 %v2705
    %2757 = vmatprep.subr.mxu0 0.0
    %2758 = vmatpush1.msra.mxu0 0.0
    %2759 = vmatprep.subr.mxu0 0.0
    %2760 = vmatpush1.msra.mxu0 0.0
    %2761 = vmatprep.subr.mxu0 0.0
    %2762 = vmatpush1.msra.mxu0 0.0
    %2763 = vmatprep.subr.mxu0 0.0
    %2764 = vmatpush1.msra.mxu0 0.0
    %2765 = vmatprep.subr.mxu0 0.0
    %2766 = vmatpush1.msra.mxu0 0.0
    %2767 = vmatprep.subr.mxu0 0.0
    %2768 = vmatpush1.msra.mxu0 0.0
    %2769 = vmatprep.subr.mxu0 0.0
    %2770 = vmatpush1.msra.mxu0 0.0
    %2771 = vmatprep.subr.mxu0 0.0
    %2772 = vmatpush1.msra.mxu0 0.0
    %2773 = vmatprep.subr.mxu0 0.0
    %2774 = vmatpush1.msra.mxu0 0.0
    %2775 = vmatprep.subr.mxu0 0.0
    %2776 = vmatpush1.msra.mxu0 0.0
    %2777 = vmatprep.subr.mxu0 0.0
    %2778 = vmatpush1.msra.mxu0 0.0
    %2779 = vmatprep.subr.mxu0 0.0
    %2780 = vmatpush1.msra.mxu0 0.0
    %2781 = vmatprep.subr.mxu0 0.0
    %2782 = vmatpush1.msra.mxu0 0.0
    %2783 = vmatprep.subr.mxu0 0.0
    %2784 = vmatpush1.msra.mxu0 0.0
    %2785 = vmatprep.subr.mxu0 0.0
    %2786 = vmatpush1.msra.mxu0 0.0
    %2787 = vmatprep.subr.mxu0 0.0
    %2788 = vmatpush1.msra.mxu0 0.0
    %2789 = vmatprep.mubr.f32.mxu0 0.0
    %2790 = vmatmul.mubr.f32.gmra.mrb[0].mxu0 %v2658
    %v2791 = vpop.f32.mrb[0].mxu0
    %v2792 = vadd.f32 %v2713, %v2791
    %v2793 = vpop.f32.mrb[0].mxu0
    %v2794 = vadd.f32 %v2717, %v2793
    %2795 = vdwg.mxu0
    %2796 = vmatprep.subr.mxu0 0.0
    %2797 = vmatpush1.msra.mxu0 %v2662
    %2798 = vmatprep.subr.mxu0 0.0
    %2799 = vmatpush1.msra.mxu0 %v2665
    %2800 = vmatprep.subr.mxu0 0.0
    %2801 = vmatpush1.msra.mxu0 %v2668
    %2802 = vmatprep.subr.mxu0 0.0
    %2803 = vmatpush1.msra.mxu0 %v2671
    %2804 = vmatprep.subr.mxu0 0.0
    %2805 = vmatpush1.msra.mxu0 %v2674
    %2806 = vmatprep.subr.mxu0 0.0
    %2807 = vmatpush1.msra.mxu0 %v2677
    %2808 = vmatprep.subr.mxu0 0.0
    %2809 = vmatpush1.msra.mxu0 %v2680
    %2810 = vmatprep.subr.mxu0 0.0
    %2811 = vmatpush1.msra.mxu0 %v2683
    %2812 = vmatprep.subr.mxu0 0.0
    %2813 = vmatpush1.msra.mxu0 %v2686
    %2814 = vmatprep.subr.mxu0 0.0
    %2815 = vmatpush1.msra.mxu0 %v2689
    %2816 = vmatprep.subr.mxu0 0.0
    %2817 = vmatpush1.msra.mxu0 %v2692
    %2818 = vmatprep.subr.mxu0 0.0
    %2819 = vmatpush1.msra.mxu0 %v2695
    %2820 = vmatprep.subr.mxu0 0.0
    %2821 = vmatpush1.msra.mxu0 %v2698
    %2822 = vmatprep.subr.mxu0 0.0
    %2823 = vmatpush1.msra.mxu0 %v2701
    %2824 = vmatprep.subr.mxu0 0.0
    %2825 = vmatpush1.msra.mxu0 %v2704
    %2826 = vmatprep.subr.mxu0 0.0
    %2827 = vmatpush1.msra.mxu0 %v2707
    %2828 = vmatprep.subr.mxu0 0.0
    %2829 = vmatpush1.msra.mxu0 0.0
    %2830 = vmatprep.subr.mxu0 0.0
    %2831 = vmatpush1.msra.mxu0 0.0
    %2832 = vmatprep.subr.mxu0 0.0
    %2833 = vmatpush1.msra.mxu0 0.0
    %2834 = vmatprep.subr.mxu0 0.0
    %2835 = vmatpush1.msra.mxu0 0.0
    %2836 = vmatprep.subr.mxu0 0.0
    %2837 = vmatpush1.msra.mxu0 0.0
    %2838 = vmatprep.subr.mxu0 0.0
    %2839 = vmatpush1.msra.mxu0 0.0
    %2840 = vmatprep.subr.mxu0 0.0
    %2841 = vmatpush1.msra.mxu0 0.0
    %2842 = vmatprep.subr.mxu0 0.0
    %2843 = vmatpush1.msra.mxu0 0.0
    %2844 = vmatprep.subr.mxu0 0.0
    %2845 = vmatpush1.msra.mxu0 0.0
    %2846 = vmatprep.subr.mxu0 0.0
    %2847 = vmatpush1.msra.mxu0 0.0
    %2848 = vmatprep.subr.mxu0 0.0
    %2849 = vmatpush1.msra.mxu0 0.0
    %2850 = vmatprep.subr.mxu0 0.0
    %2851 = vmatpush1.msra.mxu0 0.0
    %2852 = vmatprep.subr.mxu0 0.0
    %2853 = vmatpush1.msra.mxu0 0.0
    %2854 = vmatprep.subr.mxu0 0.0
    %2855 = vmatpush1.msra.mxu0 0.0
    %2856 = vmatprep.subr.mxu0 0.0
    %2857 = vmatpush1.msra.mxu0 0.0
    %2858 = vmatprep.subr.mxu0 0.0
    %2859 = vmatpush1.msra.mxu0 0.0
    %2860 = vmatprep.mubr.f32.mxu0 0.0
    %2861 = vmatmul.mubr.f32.gmra.mrb[0].mxu0 %v2658
    %v2862 = vpop.f32.mrb[0].mxu0
    %v2863 = vadd.f32 %v2721, %v2862
    %v2864 = vpop.f32.mrb[0].mxu0
    %2865 = vdwg.mxu0
    %v2868 = vrot.slane %v2792, 7
    %v2869 = vrot.slane %v2794, 7
    %v2872 = vadd.f32 %v2354, %v2868
    %v2873 = vadd.f32 %v2356, %v2869
    %v2874 = vxor.u32 %v2872, 2147483648
    %v2875 = vxor.u32 %v2873, 2147483648
    %v2876 = vmul.f32 %v2874, 1.442695
    %v2877 = vpow.pop %v2876
    %v2878 = vmul.f32 %v2875, 1.442695
    %v2879 = vpow.pop %v2878
    %v2880 = vadd.f32 %v2877, 1.0
    %v2881 = vadd.f32 %v2879, 1.0
    %v2882 = vrcp.pop %v2880
    %v2883 = vmul.f32 1.0, %v2882
    %v2884 = vrcp.pop %v2881
    %v2885 = vmul.f32 1.0, %v2884
    %v2887 = vrot.slane %v2863, 7
    %v2889 = vmul.f32 %v2883, %v2887
    %v2890 = vadd.f32 %v2425, %v2889
    %v2891 = vtanh.pop %v2890
    %v2892 = vsub.f32 1.0, %v2885
    %v2893 = vmul.f32 %v2892, %v2891
    %v2895 = vrot.slane %v2658, 7
    %v2897 = vmul.f32 %v2885, %v2895
    %v2898 = vadd.f32 %v2893, %v2897
    %2899 = vst [vmem:[#allocation2] sm:$0x2] %v2898
    %v2900 = vld [vmem:[%s2430] sm:$0xff]
    %v2901 = vld [vmem:[%s2430 + $0x8] sm:$0xff]
    %v2902 = vld [vmem:[%s2430 + $0x10] sm:$0xff]
    %v2903 = vld [vmem:[%s2430 + $0x18] sm:$0xff]
    %v2904 = vld [vmem:[%s2430 + $0x20] sm:$0xff]
    %v2905 = vld [vmem:[%s2430 + $0x28] sm:$0xff]
    %v2906 = vld [vmem:[%s2430 + $0x30] sm:$0xff]
    %v2907 = vld [vmem:[%s2430 + $0x38] sm:$0xff]
    %v2908 = vld [vmem:[%s2430 + $0x40] sm:$0xff]
    %v2909 = vld [vmem:[%s2430 + $0x48] sm:$0xff]
    %v2910 = vld [vmem:[%s2430 + $0x50] sm:$0xff]
    %v2911 = vld [vmem:[%s2430 + $0x58] sm:$0xff]
    %v2912 = vld [vmem:[%s2430 + $0x60] sm:$0xff]
    %v2913 = vld [vmem:[%s2430 + $0x68] sm:$0xff]
    %v2914 = vld [vmem:[%s2430 + $0x70] sm:$0xff]
    %v2915 = vld [vmem:[%s2430 + $0x78] sm:$0xff]
    %v2916 = vld [vmem:[%s2430 + $0x80] sm:$0xff]
    %v2917 = vld [vmem:[%s2430 + $0x88] sm:$0xff]
    %v2918 = vld [vmem:[%s2430 + $0x90] sm:$0xff]
    %v2919 = vld [vmem:[%s2430 + $0x98] sm:$0xff]
    %v2920 = vld [vmem:[%s2430 + $0xa0] sm:$0xff]
    %v2921 = vld [vmem:[%s2430 + $0xa8] sm:$0xff]
    %v2922 = vld [vmem:[%s2430 + $0xb0] sm:$0xff]
    %v2923 = vld [vmem:[%s2430 + $0xb8] sm:$0xff]
    %v2924 = vld [vmem:[%s2430 + $0xc0] sm:$0xff]
    %v2925 = vld [vmem:[%s2430 + $0xc8] sm:$0xff]
    %v2926 = vld [vmem:[%s2430 + $0xd0] sm:$0xff]
    %v2927 = vld [vmem:[%s2430 + $0xd8] sm:$0xff]
    %v2928 = vld [vmem:[%s2430 + $0xe0] sm:$0xff]
    %v2929 = vld [vmem:[%s2430 + $0xe8] sm:$0xff]
    %v2930 = vld [vmem:[%s2430 + $0xf0] sm:$0xff]
    %v2931 = vld [vmem:[%s2430 + $0xf8] sm:$0xff]
    %v2932 = vld [vmem:[%s2430 + $0x100] sm:$0xff]
    %v2933 = vld [vmem:[%s2430 + $0x108] sm:$0xff]
    %v2934 = vld [vmem:[%s2430 + $0x110] sm:$0xff]
    %v2935 = vld [vmem:[%s2430 + $0x118] sm:$0xff]
    %v2936 = vld [vmem:[%s2430 + $0x120] sm:$0xff]
    %v2937 = vld [vmem:[%s2430 + $0x128] sm:$0xff]
    %v2938 = vld [vmem:[%s2430 + $0x130] sm:$0xff]
    %v2939 = vld [vmem:[%s2430 + $0x138] sm:$0xff]
    %v2940 = vld [vmem:[%s2430 + $0x140] sm:$0xff]
    %v2941 = vld [vmem:[%s2430 + $0x148] sm:$0xff]
    %v2942 = vld [vmem:[%s2430 + $0x150] sm:$0xff]
    %v2943 = vld [vmem:[%s2430 + $0x158] sm:$0xff]
    %v2944 = vld [vmem:[%s2430 + $0x160] sm:$0xff]
    %v2945 = vld [vmem:[%s2430 + $0x168] sm:$0xff]
    %v2946 = vld [vmem:[%s2430 + $0x170] sm:$0xff]
    %v2947 = vld [vmem:[%s2430 + $0x178] sm:$0xff]
    %v2948 = vld [vmem:[%s2479] sm:$0x7]
    %v2950 = vrot.slane %v2898, 1
    %v2953 = vlaneseq
    %v2954 = vshrl.u32 %v2953, 7
    %v2955 = vsub.s32 0, %v2954
    %v2956 = vrot.slane %v2948, %v2955
    %v2957 = vlaneseq
    %v2958 = vshrl.u32 %v2957, 7
    %v2959 = vsub.s32 1, %v2958
    %v2960 = vrot.slane %v2948, %v2959
    %v2961 = vlaneseq
    %v2962 = vshrl.u32 %v2961, 7
    %v2963 = vsub.s32 2, %v2962
    %v2964 = vrot.slane %v2948, %v2963
    %2968 = vmatprep.subr.mxu0 %v2901
    %2969 = vmatpush1.msra.mxu0 %v2900
    %2970 = vmatprep.subr.mxu0 %v2904
    %2971 = vmatpush1.msra.mxu0 %v2903
    %2972 = vmatprep.subr.mxu0 %v2907
    %2973 = vmatpush1.msra.mxu0 %v2906
    %2974 = vmatprep.subr.mxu0 %v2910
    %2975 = vmatpush1.msra.mxu0 %v2909
    %2976 = vmatprep.subr.mxu0 %v2913
    %2977 = vmatpush1.msra.mxu0 %v2912
    %2978 = vmatprep.subr.mxu0 %v2916
    %2979 = vmatpush1.msra.mxu0 %v2915
    %2980 = vmatprep.subr.mxu0 %v2919
    %2981 = vmatpush1.msra.mxu0 %v2918
    %2982 = vmatprep.subr.mxu0 %v2922
    %2983 = vmatpush1.msra.mxu0 %v2921
    %2984 = vmatprep.subr.mxu0 %v2925
    %2985 = vmatpush1.msra.mxu0 %v2924
    %2986 = vmatprep.subr.mxu0 %v2928
    %2987 = vmatpush1.msra.mxu0 %v2927
    %2988 = vmatprep.subr.mxu0 %v2931
    %2989 = vmatpush1.msra.mxu0 %v2930
    %2990 = vmatprep.subr.mxu0 %v2934
    %2991 = vmatpush1.msra.mxu0 %v2933
    %2992 = vmatprep.subr.mxu0 %v2937
    %2993 = vmatpush1.msra.mxu0 %v2936
    %2994 = vmatprep.subr.mxu0 %v2940
    %2995 = vmatpush1.msra.mxu0 %v2939
    %2996 = vmatprep.subr.mxu0 %v2943
    %2997 = vmatpush1.msra.mxu0 %v2942
    %2998 = vmatprep.subr.mxu0 %v2946
    %2999 = vmatpush1.msra.mxu0 %v2945
    %3000 = vmatprep.subr.mxu0 0.0
    %3001 = vmatpush1.msra.mxu0 0.0
    %3002 = vmatprep.subr.mxu0 0.0
    %3003 = vmatpush1.msra.mxu0 0.0
    %3004 = vmatprep.subr.mxu0 0.0
    %3005 = vmatpush1.msra.mxu0 0.0
    %3006 = vmatprep.subr.mxu0 0.0
    %3007 = vmatpush1.msra.mxu0 0.0
    %3008 = vmatprep.subr.mxu0 0.0
    %3009 = vmatpush1.msra.mxu0 0.0
    %3010 = vmatprep.subr.mxu0 0.0
    %3011 = vmatpush1.msra.mxu0 0.0
    %3012 = vmatprep.subr.mxu0 0.0
    %3013 = vmatpush1.msra.mxu0 0.0
    %3014 = vmatprep.subr.mxu0 0.0
    %3015 = vmatpush1.msra.mxu0 0.0
    %3016 = vmatprep.subr.mxu0 0.0
    %3017 = vmatpush1.msra.mxu0 0.0
    %3018 = vmatprep.subr.mxu0 0.0
    %3019 = vmatpush1.msra.mxu0 0.0
    %3020 = vmatprep.subr.mxu0 0.0
    %3021 = vmatpush1.msra.mxu0 0.0
    %3022 = vmatprep.subr.mxu0 0.0
    %3023 = vmatpush1.msra.mxu0 0.0
    %3024 = vmatprep.subr.mxu0 0.0
    %3025 = vmatpush1.msra.mxu0 0.0
    %3026 = vmatprep.subr.mxu0 0.0
    %3027 = vmatpush1.msra.mxu0 0.0
    %3028 = vmatprep.subr.mxu0 0.0
    %3029 = vmatpush1.msra.mxu0 0.0
    %3030 = vmatprep.subr.mxu0 0.0
    %3031 = vmatpush1.msra.mxu0 0.0
    %3032 = vmatprep.mubr.f32.mxu0 0.0
    %3033 = vmatmul.mubr.f32.gmra.mrb[0].mxu0 %v2950
    %v3034 = vpop.f32.mrb[0].mxu0
    %v3035 = vadd.f32 %v2956, %v3034
    %v3036 = vpop.f32.mrb[0].mxu0
    %v3037 = vadd.f32 %v2960, %v3036
    %3038 = vdwg.mxu0
    %3039 = vmatprep.subr.mxu0 0.0
    %3040 = vmatpush1.msra.mxu0 %v2902
    %3041 = vmatprep.subr.mxu0 0.0
    %3042 = vmatpush1.msra.mxu0 %v2905
    %3043 = vmatprep.subr.mxu0 0.0
    %3044 = vmatpush1.msra.mxu0 %v2908
    %3045 = vmatprep.subr.mxu0 0.0
    %3046 = vmatpush1.msra.mxu0 %v2911
    %3047 = vmatprep.subr.mxu0 0.0
    %3048 = vmatpush1.msra.mxu0 %v2914
    %3049 = vmatprep.subr.mxu0 0.0
    %3050 = vmatpush1.msra.mxu0 %v2917
    %3051 = vmatprep.subr.mxu0 0.0
    %3052 = vmatpush1.msra.mxu0 %v2920
    %3053 = vmatprep.subr.mxu0 0.0
    %3054 = vmatpush1.msra.mxu0 %v2923
    %3055 = vmatprep.subr.mxu0 0.0
    %3056 = vmatpush1.msra.mxu0 %v2926
    %3057 = vmatprep.subr.mxu0 0.0
    %3058 = vmatpush1.msra.mxu0 %v2929
    %3059 = vmatprep.subr.mxu0 0.0
    %3060 = vmatpush1.msra.mxu0 %v2932
    %3061 = vmatprep.subr.mxu0 0.0
    %3062 = vmatpush1.msra.mxu0 %v2935
    %3063 = vmatprep.subr.mxu0 0.0
    %3064 = vmatpush1.msra.mxu0 %v2938
    %3065 = vmatprep.subr.mxu0 0.0
    %3066 = vmatpush1.msra.mxu0 %v2941
    %3067 = vmatprep.subr.mxu0 0.0
    %3068 = vmatpush1.msra.mxu0 %v2944
    %3069 = vmatprep.subr.mxu0 0.0
    %3070 = vmatpush1.msra.mxu0 %v2947
    %3071 = vmatprep.subr.mxu0 0.0
    %3072 = vmatpush1.msra.mxu0 0.0
    %3073 = vmatprep.subr.mxu0 0.0
    %3074 = vmatpush1.msra.mxu0 0.0
    %3075 = vmatprep.subr.mxu0 0.0
    %3076 = vmatpush1.msra.mxu0 0.0
    %3077 = vmatprep.subr.mxu0 0.0
    %3078 = vmatpush1.msra.mxu0 0.0
    %3079 = vmatprep.subr.mxu0 0.0
    %3080 = vmatpush1.msra.mxu0 0.0
    %3081 = vmatprep.subr.mxu0 0.0
    %3082 = vmatpush1.msra.mxu0 0.0
    %3083 = vmatprep.subr.mxu0 0.0
    %3084 = vmatpush1.msra.mxu0 0.0
    %3085 = vmatprep.subr.mxu0 0.0
    %3086 = vmatpush1.msra.mxu0 0.0
    %3087 = vmatprep.subr.mxu0 0.0
    %3088 = vmatpush1.msra.mxu0 0.0
    %3089 = vmatprep.subr.mxu0 0.0
    %3090 = vmatpush1.msra.mxu0 0.0
    %3091 = vmatprep.subr.mxu0 0.0
    %3092 = vmatpush1.msra.mxu0 0.0
    %3093 = vmatprep.subr.mxu0 0.0
    %3094 = vmatpush1.msra.mxu0 0.0
    %3095 = vmatprep.subr.mxu0 0.0
    %3096 = vmatpush1.msra.mxu0 0.0
    %3097 = vmatprep.subr.mxu0 0.0
    %3098 = vmatpush1.msra.mxu0 0.0
    %3099 = vmatprep.subr.mxu0 0.0
    %3100 = vmatpush1.msra.mxu0 0.0
    %3101 = vmatprep.subr.mxu0 0.0
    %3102 = vmatpush1.msra.mxu0 0.0
    %3103 = vmatprep.mubr.f32.mxu0 0.0
    %3104 = vmatmul.mubr.f32.gmra.mrb[0].mxu0 %v2950
    %v3105 = vpop.f32.mrb[0].mxu0
    %v3106 = vadd.f32 %v2964, %v3105
    %v3107 = vpop.f32.mrb[0].mxu0
    %3108 = vdwg.mxu0
    %v3111 = vrot.slane %v3035, 6
    %v3112 = vrot.slane %v3037, 6
    %v3115 = vadd.f32 %v2354, %v3111
    %v3116 = vadd.f32 %v2356, %v3112
    %v3117 = vxor.u32 %v3115, 2147483648
    %v3118 = vxor.u32 %v3116, 2147483648
    %v3119 = vmul.f32 %v3117, 1.442695
    %v3120 = vpow.pop %v3119
    %v3121 = vmul.f32 %v3118, 1.442695
    %v3122 = vpow.pop %v3121
    %v3123 = vadd.f32 %v3120, 1.0
    %v3124 = vadd.f32 %v3122, 1.0
    %v3125 = vrcp.pop %v3123
    %v3126 = vmul.f32 1.0, %v3125
    %v3127 = vrcp.pop %v3124
    %v3128 = vmul.f32 1.0, %v3127
    %v3130 = vrot.slane %v3106, 6
    %v3132 = vmul.f32 %v3126, %v3130
    %v3133 = vadd.f32 %v2425, %v3132
    %v3134 = vtanh.pop %v3133
    %v3135 = vsub.f32 1.0, %v3128
    %v3136 = vmul.f32 %v3135, %v3134
    %v3137 = vrot.slane %v2898, 7
    %v3139 = vmul.f32 %v3128, %v3137
    %v3140 = vadd.f32 %v3136, %v3139
    %3141 = vst [vmem:[#allocation2] sm:$0x4] %v3140
    %v3142 = vld [vmem:[%s2430] sm:$0xff]
    %v3143 = vld [vmem:[%s2430 + $0x8] sm:$0xff]
    %v3144 = vld [vmem:[%s2430 + $0x10] sm:$0xff]
    %v3145 = vld [vmem:[%s2430 + $0x18] sm:$0xff]
    %v3146 = vld [vmem:[%s2430 + $0x20] sm:$0xff]
    %v3147 = vld [vmem:[%s2430 + $0x28] sm:$0xff]
    %v3148 = vld [vmem:[%s2430 + $0x30] sm:$0xff]
    %v3149 = vld [vmem:[%s2430 + $0x38] sm:$0xff]
    %v3150 = vld [vmem:[%s2430 + $0x40] sm:$0xff]
    %v3151 = vld [vmem:[%s2430 + $0x48] sm:$0xff]
    %v3152 = vld [vmem:[%s2430 + $0x50] sm:$0xff]
    %v3153 = vld [vmem:[%s2430 + $0x58] sm:$0xff]
    %v3154 = vld [vmem:[%s2430 + $0x60] sm:$0xff]
    %v3155 = vld [vmem:[%s2430 + $0x68] sm:$0xff]
    %v3156 = vld [vmem:[%s2430 + $0x70] sm:$0xff]
    %v3157 = vld [vmem:[%s2430 + $0x78] sm:$0xff]
    %v3158 = vld [vmem:[%s2430 + $0x80] sm:$0xff]
    %v3159 = vld [vmem:[%s2430 + $0x88] sm:$0xff]
    %v3160 = vld [vmem:[%s2430 + $0x90] sm:$0xff]
    %v3161 = vld [vmem:[%s2430 + $0x98] sm:$0xff]
    %v3162 = vld [vmem:[%s2430 + $0xa0] sm:$0xff]
    %v3163 = vld [vmem:[%s2430 + $0xa8] sm:$0xff]
    %v3164 = vld [vmem:[%s2430 + $0xb0] sm:$0xff]
    %v3165 = vld [vmem:[%s2430 + $0xb8] sm:$0xff]
    %v3166 = vld [vmem:[%s2430 + $0xc0] sm:$0xff]
    %v3167 = vld [vmem:[%s2430 + $0xc8] sm:$0xff]
    %v3168 = vld [vmem:[%s2430 + $0xd0] sm:$0xff]
    %v3169 = vld [vmem:[%s2430 + $0xd8] sm:$0xff]
    %v3170 = vld [vmem:[%s2430 + $0xe0] sm:$0xff]
    %v3171 = vld [vmem:[%s2430 + $0xe8] sm:$0xff]
    %v3172 = vld [vmem:[%s2430 + $0xf0] sm:$0xff]
    %v3173 = vld [vmem:[%s2430 + $0xf8] sm:$0xff]
    %v3174 = vld [vmem:[%s2430 + $0x100] sm:$0xff]
    %v3175 = vld [vmem:[%s2430 + $0x108] sm:$0xff]
    %v3176 = vld [vmem:[%s2430 + $0x110] sm:$0xff]
    %v3177 = vld [vmem:[%s2430 + $0x118] sm:$0xff]
    %v3178 = vld [vmem:[%s2430 + $0x120] sm:$0xff]
    %v3179 = vld [vmem:[%s2430 + $0x128] sm:$0xff]
    %v3180 = vld [vmem:[%s2430 + $0x130] sm:$0xff]
    %v3181 = vld [vmem:[%s2430 + $0x138] sm:$0xff]
    %v3182 = vld [vmem:[%s2430 + $0x140] sm:$0xff]
    %v3183 = vld [vmem:[%s2430 + $0x148] sm:$0xff]
    %v3184 = vld [vmem:[%s2430 + $0x150] sm:$0xff]
    %v3185 = vld [vmem:[%s2430 + $0x158] sm:$0xff]
    %v3186 = vld [vmem:[%s2430 + $0x160] sm:$0xff]
    %v3187 = vld [vmem:[%s2430 + $0x168] sm:$0xff]
    %v3188 = vld [vmem:[%s2430 + $0x170] sm:$0xff]
    %v3189 = vld [vmem:[%s2430 + $0x178] sm:$0xff]
    %v3190 = vld [vmem:[%s2479] sm:$0x7]
    %v3192 = vrot.slane %v3140, 2
    %v3195 = vlaneseq
    %v3196 = vshrl.u32 %v3195, 7
    %v3197 = vsub.s32 0, %v3196
    %v3198 = vrot.slane %v3190, %v3197
    %v3199 = vlaneseq
    %v3200 = vshrl.u32 %v3199, 7
    %v3201 = vsub.s32 1, %v3200
    %v3202 = vrot.slane %v3190, %v3201
    %v3203 = vlaneseq
    %v3204 = vshrl.u32 %v3203, 7
    %v3205 = vsub.s32 2, %v3204
    %v3206 = vrot.slane %v3190, %v3205
    %3210 = vmatprep.subr.mxu0 %v3143
    %3211 = vmatpush1.msra.mxu0 %v3142
    %3212 = vmatprep.subr.mxu0 %v3146
    %3213 = vmatpush1.msra.mxu0 %v3145
    %3214 = vmatprep.subr.mxu0 %v3149
    %3215 = vmatpush1.msra.mxu0 %v3148
    %3216 = vmatprep.subr.mxu0 %v3152
    %3217 = vmatpush1.msra.mxu0 %v3151
    %3218 = vmatprep.subr.mxu0 %v3155
    %3219 = vmatpush1.msra.mxu0 %v3154
    %3220 = vmatprep.subr.mxu0 %v3158
    %3221 = vmatpush1.msra.mxu0 %v3157
    %3222 = vmatprep.subr.mxu0 %v3161
    %3223 = vmatpush1.msra.mxu0 %v3160
    %3224 = vmatprep.subr.mxu0 %v3164
    %3225 = vmatpush1.msra.mxu0 %v3163
    %3226 = vmatprep.subr.mxu0 %v3167
    %3227 = vmatpush1.msra.mxu0 %v3166
    %3228 = vmatprep.subr.mxu0 %v3170
    %3229 = vmatpush1.msra.mxu0 %v3169
    %3230 = vmatprep.subr.mxu0 %v3173
    %3231 = vmatpush1.msra.mxu0 %v3172
    %3232 = vmatprep.subr.mxu0 %v3176
    %3233 = vmatpush1.msra.mxu0 %v3175
    %3234 = vmatprep.subr.mxu0 %v3179
    %3235 = vmatpush1.msra.mxu0 %v3178
    %3236 = vmatprep.subr.mxu0 %v3182
    %3237 = vmatpush1.msra.mxu0 %v3181
    %3238 = vmatprep.subr.mxu0 %v3185
    %3239 = vmatpush1.msra.mxu0 %v3184
    %3240 = vmatprep.subr.mxu0 %v3188
    %3241 = vmatpush1.msra.mxu0 %v3187
    %3242 = vmatprep.subr.mxu0 0.0
    %3243 = vmatpush1.msra.mxu0 0.0
    %3244 = vmatprep.subr.mxu0 0.0
    %3245 = vmatpush1.msra.mxu0 0.0
    %3246 = vmatprep.subr.mxu0 0.0
    %3247 = vmatpush1.msra.mxu0 0.0
    %3248 = vmatprep.subr.mxu0 0.0
    %3249 = vmatpush1.msra.mxu0 0.0
    %3250 = vmatprep.subr.mxu0 0.0
    %3251 = vmatpush1.msra.mxu0 0.0
    %3252 = vmatprep.subr.mxu0 0.0
    %3253 = vmatpush1.msra.mxu0 0.0
    %3254 = vmatprep.subr.mxu0 0.0
    %3255 = vmatpush1.msra.mxu0 0.0
    %3256 = vmatprep.subr.mxu0 0.0
    %3257 = vmatpush1.msra.mxu0 0.0
    %3258 = vmatprep.subr.mxu0 0.0
    %3259 = vmatpush1.msra.mxu0 0.0
    %3260 = vmatprep.subr.mxu0 0.0
    %3261 = vmatpush1.msra.mxu0 0.0
    %3262 = vmatprep.subr.mxu0 0.0
    %3263 = vmatpush1.msra.mxu0 0.0
    %3264 = vmatprep.subr.mxu0 0.0
    %3265 = vmatpush1.msra.mxu0 0.0
    %3266 = vmatprep.subr.mxu0 0.0
    %3267 = vmatpush1.msra.mxu0 0.0
    %3268 = vmatprep.subr.mxu0 0.0
    %3269 = vmatpush1.msra.mxu0 0.0
    %3270 = vmatprep.subr.mxu0 0.0
    %3271 = vmatpush1.msra.mxu0 0.0
    %3272 = vmatprep.subr.mxu0 0.0
    %3273 = vmatpush1.msra.mxu0 0.0
    %3274 = vmatprep.mubr.f32.mxu0 0.0
    %3275 = vmatmul.mubr.f32.gmra.mrb[0].mxu0 %v3192
    %v3276 = vpop.f32.mrb[0].mxu0
    %v3277 = vadd.f32 %v3198, %v3276
    %v3278 = vpop.f32.mrb[0].mxu0
    %v3279 = vadd.f32 %v3202, %v3278
    %3280 = vdwg.mxu0
    %3281 = vmatprep.subr.mxu0 0.0
    %3282 = vmatpush1.msra.mxu0 %v3144
    %3283 = vmatprep.subr.mxu0 0.0
    %3284 = vmatpush1.msra.mxu0 %v3147
    %3285 = vmatprep.subr.mxu0 0.0
    %3286 = vmatpush1.msra.mxu0 %v3150
    %3287 = vmatprep.subr.mxu0 0.0
    %3288 = vmatpush1.msra.mxu0 %v3153
    %3289 = vmatprep.subr.mxu0 0.0
    %3290 = vmatpush1.msra.mxu0 %v3156
    %3291 = vmatprep.subr.mxu0 0.0
    %3292 = vmatpush1.msra.mxu0 %v3159
    %3293 = vmatprep.subr.mxu0 0.0
    %3294 = vmatpush1.msra.mxu0 %v3162
    %3295 = vmatprep.subr.mxu0 0.0
    %3296 = vmatpush1.msra.mxu0 %v3165
    %3297 = vmatprep.subr.mxu0 0.0
    %3298 = vmatpush1.msra.mxu0 %v3168
    %3299 = vmatprep.subr.mxu0 0.0
    %3300 = vmatpush1.msra.mxu0 %v3171
    %3301 = vmatprep.subr.mxu0 0.0
    %3302 = vmatpush1.msra.mxu0 %v3174
    %3303 = vmatprep.subr.mxu0 0.0
    %3304 = vmatpush1.msra.mxu0 %v3177
    %3305 = vmatprep.subr.mxu0 0.0
    %3306 = vmatpush1.msra.mxu0 %v3180
    %3307 = vmatprep.subr.mxu0 0.0
    %3308 = vmatpush1.msra.mxu0 %v3183
    %3309 = vmatprep.subr.mxu0 0.0
    %3310 = vmatpush1.msra.mxu0 %v3186
    %3311 = vmatprep.subr.mxu0 0.0
    %3312 = vmatpush1.msra.mxu0 %v3189
    %3313 = vmatprep.subr.mxu0 0.0
    %3314 = vmatpush1.msra.mxu0 0.0
    %3315 = vmatprep.subr.mxu0 0.0
    %3316 = vmatpush1.msra.mxu0 0.0
    %3317 = vmatprep.subr.mxu0 0.0
    %3318 = vmatpush1.msra.mxu0 0.0
    %3319 = vmatprep.subr.mxu0 0.0
    %3320 = vmatpush1.msra.mxu0 0.0
    %3321 = vmatprep.subr.mxu0 0.0
    %3322 = vmatpush1.msra.mxu0 0.0
    %3323 = vmatprep.subr.mxu0 0.0
    %3324 = vmatpush1.msra.mxu0 0.0
    %3325 = vmatprep.subr.mxu0 0.0
    %3326 = vmatpush1.msra.mxu0 0.0
    %3327 = vmatprep.subr.mxu0 0.0
    %3328 = vmatpush1.msra.mxu0 0.0
    %3329 = vmatprep.subr.mxu0 0.0
    %3330 = vmatpush1.msra.mxu0 0.0
    %3331 = vmatprep.subr.mxu0 0.0
    %3332 = vmatpush1.msra.mxu0 0.0
    %3333 = vmatprep.subr.mxu0 0.0
    %3334 = vmatpush1.msra.mxu0 0.0
    %3335 = vmatprep.subr.mxu0 0.0
    %3336 = vmatpush1.msra.mxu0 0.0
    %3337 = vmatprep.subr.mxu0 0.0
    %3338 = vmatpush1.msra.mxu0 0.0
    %3339 = vmatprep.subr.mxu0 0.0
    %3340 = vmatpush1.msra.mxu0 0.0
    %3341 = vmatprep.subr.mxu0 0.0
    %3342 = vmatpush1.msra.mxu0 0.0
    %3343 = vmatprep.subr.mxu0 0.0
    %3344 = vmatpush1.msra.mxu0 0.0
    %3345 = vmatprep.mubr.f32.mxu0 0.0
    %3346 = vmatmul.mubr.f32.gmra.mrb[0].mxu0 %v3192
    %v3347 = vpop.f32.mrb[0].mxu0
    %v3348 = vadd.f32 %v3206, %v3347
    %v3349 = vpop.f32.mrb[0].mxu0
    %3350 = vdwg.mxu0
    %v3353 = vrot.slane %v3277, 5
    %v3354 = vrot.slane %v3279, 5
    %v3357 = vadd.f32 %v2354, %v3353
    %v3358 = vadd.f32 %v2356, %v3354
    %v3359 = vxor.u32 %v3357, 2147483648
    %v3360 = vxor.u32 %v3358, 2147483648
    %v3361 = vmul.f32 %v3359, 1.442695
    %v3362 = vpow.pop %v3361
    %v3363 = vmul.f32 %v3360, 1.442695
    %v3364 = vpow.pop %v3363
    %v3365 = vadd.f32 %v3362, 1.0
    %v3366 = vadd.f32 %v3364, 1.0
    %v3367 = vrcp.pop %v3365
    %v3368 = vmul.f32 1.0, %v3367
    %v3369 = vrcp.pop %v3366
    %v3370 = vmul.f32 1.0, %v3369
    %v3372 = vrot.slane %v3348, 5
    %v3374 = vmul.f32 %v3368, %v3372
    %v3375 = vadd.f32 %v2425, %v3374
    %v3376 = vtanh.pop %v3375
    %v3377 = vsub.f32 1.0, %v3370
    %v3378 = vmul.f32 %v3377, %v3376
    %v3379 = vrot.slane %v3140, 7
    %v3381 = vmul.f32 %v3370, %v3379
    %v3382 = vadd.f32 %v3378, %v3381
    %3383 = vst [vmem:[#allocation2] sm:$0x8] %v3382
    %v3384 = vld [vmem:[%s2430] sm:$0xff]
    %v3385 = vld [vmem:[%s2430 + $0x8] sm:$0xff]
    %v3386 = vld [vmem:[%s2430 + $0x10] sm:$0xff]
    %v3387 = vld [vmem:[%s2430 + $0x18] sm:$0xff]
    %v3388 = vld [vmem:[%s2430 + $0x20] sm:$0xff]
    %v3389 = vld [vmem:[%s2430 + $0x28] sm:$0xff]
    %v3390 = vld [vmem:[%s2430 + $0x30] sm:$0xff]
    %v3391 = vld [vmem:[%s2430 + $0x38] sm:$0xff]
    %v3392 = vld [vmem:[%s2430 + $0x40] sm:$0xff]
    %v3393 = vld [vmem:[%s2430 + $0x48] sm:$0xff]
    %v3394 = vld [vmem:[%s2430 + $0x50] sm:$0xff]
    %v3395 = vld [vmem:[%s2430 + $0x58] sm:$0xff]
    %v3396 = vld [vmem:[%s2430 + $0x60] sm:$0xff]
    %v3397 = vld [vmem:[%s2430 + $0x68] sm:$0xff]
    %v3398 = vld [vmem:[%s2430 + $0x70] sm:$0xff]
    %v3399 = vld [vmem:[%s2430 + $0x78] sm:$0xff]
    %v3400 = vld [vmem:[%s2430 + $0x80] sm:$0xff]
    %v3401 = vld [vmem:[%s2430 + $0x88] sm:$0xff]
    %v3402 = vld [vmem:[%s2430 + $0x90] sm:$0xff]
    %v3403 = vld [vmem:[%s2430 + $0x98] sm:$0xff]
    %v3404 = vld [vmem:[%s2430 + $0xa0] sm:$0xff]
    %v3405 = vld [vmem:[%s2430 + $0xa8] sm:$0xff]
    %v3406 = vld [vmem:[%s2430 + $0xb0] sm:$0xff]
    %v3407 = vld [vmem:[%s2430 + $0xb8] sm:$0xff]
    %v3408 = vld [vmem:[%s2430 + $0xc0] sm:$0xff]
    %v3409 = vld [vmem:[%s2430 + $0xc8] sm:$0xff]
    %v3410 = vld [vmem:[%s2430 + $0xd0] sm:$0xff]
    %v3411 = vld [vmem:[%s2430 + $0xd8] sm:$0xff]
    %v3412 = vld [vmem:[%s2430 + $0xe0] sm:$0xff]
    %v3413 = vld [vmem:[%s2430 + $0xe8] sm:$0xff]
    %v3414 = vld [vmem:[%s2430 + $0xf0] sm:$0xff]
    %v3415 = vld [vmem:[%s2430 + $0xf8] sm:$0xff]
    %v3416 = vld [vmem:[%s2430 + $0x100] sm:$0xff]
    %v3417 = vld [vmem:[%s2430 + $0x108] sm:$0xff]
    %v3418 = vld [vmem:[%s2430 + $0x110] sm:$0xff]
    %v3419 = vld [vmem:[%s2430 + $0x118] sm:$0xff]
    %v3420 = vld [vmem:[%s2430 + $0x120] sm:$0xff]
    %v3421 = vld [vmem:[%s2430 + $0x128] sm:$0xff]
    %v3422 = vld [vmem:[%s2430 + $0x130] sm:$0xff]
    %v3423 = vld [vmem:[%s2430 + $0x138] sm:$0xff]
    %v3424 = vld [vmem:[%s2430 + $0x140] sm:$0xff]
    %v3425 = vld [vmem:[%s2430 + $0x148] sm:$0xff]
    %v3426 = vld [vmem:[%s2430 + $0x150] sm:$0xff]
    %v3427 = vld [vmem:[%s2430 + $0x158] sm:$0xff]
    %v3428 = vld [vmem:[%s2430 + $0x160] sm:$0xff]
    %v3429 = vld [vmem:[%s2430 + $0x168] sm:$0xff]
    %v3430 = vld [vmem:[%s2430 + $0x170] sm:$0xff]
    %v3431 = vld [vmem:[%s2430 + $0x178] sm:$0xff]
    %v3432 = vld [vmem:[%s2479] sm:$0x7]
    %v3434 = vrot.slane %v3382, 3
    %v3437 = vlaneseq
    %v3438 = vshrl.u32 %v3437, 7
    %v3439 = vsub.s32 0, %v3438
    %v3440 = vrot.slane %v3432, %v3439
    %v3441 = vlaneseq
    %v3442 = vshrl.u32 %v3441, 7
    %v3443 = vsub.s32 1, %v3442
    %v3444 = vrot.slane %v3432, %v3443
    %v3445 = vlaneseq
    %v3446 = vshrl.u32 %v3445, 7
    %v3447 = vsub.s32 2, %v3446
    %v3448 = vrot.slane %v3432, %v3447
    %3452 = vmatprep.subr.mxu0 %v3385
    %3453 = vmatpush1.msra.mxu0 %v3384
    %3454 = vmatprep.subr.mxu0 %v3388
    %3455 = vmatpush1.msra.mxu0 %v3387
    %3456 = vmatprep.subr.mxu0 %v3391
    %3457 = vmatpush1.msra.mxu0 %v3390
    %3458 = vmatprep.subr.mxu0 %v3394
    %3459 = vmatpush1.msra.mxu0 %v3393
    %3460 = vmatprep.subr.mxu0 %v3397
    %3461 = vmatpush1.msra.mxu0 %v3396
    %3462 = vmatprep.subr.mxu0 %v3400
    %3463 = vmatpush1.msra.mxu0 %v3399
    %3464 = vmatprep.subr.mxu0 %v3403
    %3465 = vmatpush1.msra.mxu0 %v3402
    %3466 = vmatprep.subr.mxu0 %v3406
    %3467 = vmatpush1.msra.mxu0 %v3405
    %3468 = vmatprep.subr.mxu0 %v3409
    %3469 = vmatpush1.msra.mxu0 %v3408
    %3470 = vmatprep.subr.mxu0 %v3412
    %3471 = vmatpush1.msra.mxu0 %v3411
    %3472 = vmatprep.subr.mxu0 %v3415
    %3473 = vmatpush1.msra.mxu0 %v3414
    %3474 = vmatprep.subr.mxu0 %v3418
    %3475 = vmatpush1.msra.mxu0 %v3417
    %3476 = vmatprep.subr.mxu0 %v3421
    %3477 = vmatpush1.msra.mxu0 %v3420
    %3478 = vmatprep.subr.mxu0 %v3424
    %3479 = vmatpush1.msra.mxu0 %v3423
    %3480 = vmatprep.subr.mxu0 %v3427
    %3481 = vmatpush1.msra.mxu0 %v3426
    %3482 = vmatprep.subr.mxu0 %v3430
    %3483 = vmatpush1.msra.mxu0 %v3429
    %3484 = vmatprep.subr.mxu0 0.0
    %3485 = vmatpush1.msra.mxu0 0.0
    %3486 = vmatprep.subr.mxu0 0.0
    %3487 = vmatpush1.msra.mxu0 0.0
    %3488 = vmatprep.subr.mxu0 0.0
    %3489 = vmatpush1.msra.mxu0 0.0
    %3490 = vmatprep.subr.mxu0 0.0
    %3491 = vmatpush1.msra.mxu0 0.0
    %3492 = vmatprep.subr.mxu0 0.0
    %3493 = vmatpush1.msra.mxu0 0.0
    %3494 = vmatprep.subr.mxu0 0.0
    %3495 = vmatpush1.msra.mxu0 0.0
    %3496 = vmatprep.subr.mxu0 0.0
    %3497 = vmatpush1.msra.mxu0 0.0
    %3498 = vmatprep.subr.mxu0 0.0
    %3499 = vmatpush1.msra.mxu0 0.0
    %3500 = vmatprep.subr.mxu0 0.0
    %3501 = vmatpush1.msra.mxu0 0.0
    %3502 = vmatprep.subr.mxu0 0.0
    %3503 = vmatpush1.msra.mxu0 0.0
    %3504 = vmatprep.subr.mxu0 0.0
    %3505 = vmatpush1.msra.mxu0 0.0
    %3506 = vmatprep.subr.mxu0 0.0
    %3507 = vmatpush1.msra.mxu0 0.0
    %3508 = vmatprep.subr.mxu0 0.0
    %3509 = vmatpush1.msra.mxu0 0.0
    %3510 = vmatprep.subr.mxu0 0.0
    %3511 = vmatpush1.msra.mxu0 0.0
    %3512 = vmatprep.subr.mxu0 0.0
    %3513 = vmatpush1.msra.mxu0 0.0
    %3514 = vmatprep.subr.mxu0 0.0
    %3515 = vmatpush1.msra.mxu0 0.0
    %3516 = vmatprep.mubr.f32.mxu0 0.0
    %3517 = vmatmul.mubr.f32.gmra.mrb[0].mxu0 %v3434
    %v3518 = vpop.f32.mrb[0].mxu0
    %v3519 = vadd.f32 %v3440, %v3518
    %v3520 = vpop.f32.mrb[0].mxu0
    %v3521 = vadd.f32 %v3444, %v3520
    %3522 = vdwg.mxu0
    %3523 = vmatprep.subr.mxu0 0.0
    %3524 = vmatpush1.msra.mxu0 %v3386
    %3525 = vmatprep.subr.mxu0 0.0
    %3526 = vmatpush1.msra.mxu0 %v3389
    %3527 = vmatprep.subr.mxu0 0.0
    %3528 = vmatpush1.msra.mxu0 %v3392
    %3529 = vmatprep.subr.mxu0 0.0
    %3530 = vmatpush1.msra.mxu0 %v3395
    %3531 = vmatprep.subr.mxu0 0.0
    %3532 = vmatpush1.msra.mxu0 %v3398
    %3533 = vmatprep.subr.mxu0 0.0
    %3534 = vmatpush1.msra.mxu0 %v3401
    %3535 = vmatprep.subr.mxu0 0.0
    %3536 = vmatpush1.msra.mxu0 %v3404
    %3537 = vmatprep.subr.mxu0 0.0
    %3538 = vmatpush1.msra.mxu0 %v3407
    %3539 = vmatprep.subr.mxu0 0.0
    %3540 = vmatpush1.msra.mxu0 %v3410
    %3541 = vmatprep.subr.mxu0 0.0
    %3542 = vmatpush1.msra.mxu0 %v3413
    %3543 = vmatprep.subr.mxu0 0.0
    %3544 = vmatpush1.msra.mxu0 %v3416
    %3545 = vmatprep.subr.mxu0 0.0
    %3546 = vmatpush1.msra.mxu0 %v3419
    %3547 = vmatprep.subr.mxu0 0.0
    %3548 = vmatpush1.msra.mxu0 %v3422
    %3549 = vmatprep.subr.mxu0 0.0
    %3550 = vmatpush1.msra.mxu0 %v3425
    %3551 = vmatprep.subr.mxu0 0.0
    %3552 = vmatpush1.msra.mxu0 %v3428
    %3553 = vmatprep.subr.mxu0 0.0
    %3554 = vmatpush1.msra.mxu0 %v3431
    %3555 = vmatprep.subr.mxu0 0.0
    %3556 = vmatpush1.msra.mxu0 0.0
    %3557 = vmatprep.subr.mxu0 0.0
    %3558 = vmatpush1.msra.mxu0 0.0
    %3559 = vmatprep.subr.mxu0 0.0
    %3560 = vmatpush1.msra.mxu0 0.0
    %3561 = vmatprep.subr.mxu0 0.0
    %3562 = vmatpush1.msra.mxu0 0.0
    %3563 = vmatprep.subr.mxu0 0.0
    %3564 = vmatpush1.msra.mxu0 0.0
    %3565 = vmatprep.subr.mxu0 0.0
    %3566 = vmatpush1.msra.mxu0 0.0
    %3567 = vmatprep.subr.mxu0 0.0
    %3568 = vmatpush1.msra.mxu0 0.0
    %3569 = vmatprep.subr.mxu0 0.0
    %3570 = vmatpush1.msra.mxu0 0.0
    %3571 = vmatprep.subr.mxu0 0.0
    %3572 = vmatpush1.msra.mxu0 0.0
    %3573 = vmatprep.subr.mxu0 0.0
    %3574 = vmatpush1.msra.mxu0 0.0
    %3575 = vmatprep.subr.mxu0 0.0
    %3576 = vmatpush1.msra.mxu0 0.0
    %3577 = vmatprep.subr.mxu0 0.0
    %3578 = vmatpush1.msra.mxu0 0.0
    %3579 = vmatprep.subr.mxu0 0.0
    %3580 = vmatpush1.msra.mxu0 0.0
    %3581 = vmatprep.subr.mxu0 0.0
    %3582 = vmatpush1.msra.mxu0 0.0
    %3583 = vmatprep.subr.mxu0 0.0
    %3584 = vmatpush1.msra.mxu0 0.0
    %3585 = vmatprep.subr.mxu0 0.0
    %3586 = vmatpush1.msra.mxu0 0.0
    %3587 = vmatprep.mubr.f32.mxu0 0.0
    %3588 = vmatmul.mubr.f32.gmra.mrb[0].mxu0 %v3434
    %v3589 = vpop.f32.mrb[0].mxu0
    %v3590 = vadd.f32 %v3448, %v3589
    %v3591 = vpop.f32.mrb[0].mxu0
    %3592 = vdwg.mxu0
    %v3595 = vrot.slane %v3519, 4
    %v3596 = vrot.slane %v3521, 4
    %v3599 = vadd.f32 %v2354, %v3595
    %v3600 = vadd.f32 %v2356, %v3596
    %v3601 = vxor.u32 %v3599, 2147483648
    %v3602 = vxor.u32 %v3600, 2147483648
    %v3603 = vmul.f32 %v3601, 1.442695
    %v3604 = vpow.pop %v3603
    %v3605 = vmul.f32 %v3602, 1.442695
    %v3606 = vpow.pop %v3605
    %v3607 = vadd.f32 %v3604, 1.0
    %v3608 = vadd.f32 %v3606, 1.0
    %v3609 = vrcp.pop %v3607
    %v3610 = vmul.f32 1.0, %v3609
    %v3611 = vrcp.pop %v3608
    %v3612 = vmul.f32 1.0, %v3611
    %v3614 = vrot.slane %v3590, 4
    %v3616 = vmul.f32 %v3610, %v3614
    %v3617 = vadd.f32 %v2425, %v3616
    %v3618 = vtanh.pop %v3617
    %v3619 = vsub.f32 1.0, %v3612
    %v3620 = vmul.f32 %v3619, %v3618
    %v3621 = vrot.slane %v3382, 7
    %v3623 = vmul.f32 %v3612, %v3621
    %v3624 = vadd.f32 %v3620, %v3623
    %3625 = vst [vmem:[#allocation2] sm:$0x10] %v3624
    %v3626 = vld [vmem:[%s2430] sm:$0xff]
    %v3627 = vld [vmem:[%s2430 + $0x8] sm:$0xff]
    %v3628 = vld [vmem:[%s2430 + $0x10] sm:$0xff]
    %v3629 = vld [vmem:[%s2430 + $0x18] sm:$0xff]
    %v3630 = vld [vmem:[%s2430 + $0x20] sm:$0xff]
    %v3631 = vld [vmem:[%s2430 + $0x28] sm:$0xff]
    %v3632 = vld [vmem:[%s2430 + $0x30] sm:$0xff]
    %v3633 = vld [vmem:[%s2430 + $0x38] sm:$0xff]
    %v3634 = vld [vmem:[%s2430 + $0x40] sm:$0xff]
    %v3635 = vld [vmem:[%s2430 + $0x48] sm:$0xff]
    %v3636 = vld [vmem:[%s2430 + $0x50] sm:$0xff]
    %v3637 = vld [vmem:[%s2430 + $0x58] sm:$0xff]
    %v3638 = vld [vmem:[%s2430 + $0x60] sm:$0xff]
    %v3639 = vld [vmem:[%s2430 + $0x68] sm:$0xff]
    %v3640 = vld [vmem:[%s2430 + $0x70] sm:$0xff]
    %v3641 = vld [vmem:[%s2430 + $0x78] sm:$0xff]
    %v3642 = vld [vmem:[%s2430 + $0x80] sm:$0xff]
    %v3643 = vld [vmem:[%s2430 + $0x88] sm:$0xff]
    %v3644 = vld [vmem:[%s2430 + $0x90] sm:$0xff]
    %v3645 = vld [vmem:[%s2430 + $0x98] sm:$0xff]
    %v3646 = vld [vmem:[%s2430 + $0xa0] sm:$0xff]
    %v3647 = vld [vmem:[%s2430 + $0xa8] sm:$0xff]
    %v3648 = vld [vmem:[%s2430 + $0xb0] sm:$0xff]
    %v3649 = vld [vmem:[%s2430 + $0xb8] sm:$0xff]
    %v3650 = vld [vmem:[%s2430 + $0xc0] sm:$0xff]
    %v3651 = vld [vmem:[%s2430 + $0xc8] sm:$0xff]
    %v3652 = vld [vmem:[%s2430 + $0xd0] sm:$0xff]
    %v3653 = vld [vmem:[%s2430 + $0xd8] sm:$0xff]
    %v3654 = vld [vmem:[%s2430 + $0xe0] sm:$0xff]
    %v3655 = vld [vmem:[%s2430 + $0xe8] sm:$0xff]
    %v3656 = vld [vmem:[%s2430 + $0xf0] sm:$0xff]
    %v3657 = vld [vmem:[%s2430 + $0xf8] sm:$0xff]
    %v3658 = vld [vmem:[%s2430 + $0x100] sm:$0xff]
    %v3659 = vld [vmem:[%s2430 + $0x108] sm:$0xff]
    %v3660 = vld [vmem:[%s2430 + $0x110] sm:$0xff]
    %v3661 = vld [vmem:[%s2430 + $0x118] sm:$0xff]
    %v3662 = vld [vmem:[%s2430 + $0x120] sm:$0xff]
    %v3663 = vld [vmem:[%s2430 + $0x128] sm:$0xff]
    %v3664 = vld [vmem:[%s2430 + $0x130] sm:$0xff]
    %v3665 = vld [vmem:[%s2430 + $0x138] sm:$0xff]
    %v3666 = vld [vmem:[%s2430 + $0x140] sm:$0xff]
    %v3667 = vld [vmem:[%s2430 + $0x148] sm:$0xff]
    %v3668 = vld [vmem:[%s2430 + $0x150] sm:$0xff]
    %v3669 = vld [vmem:[%s2430 + $0x158] sm:$0xff]
    %v3670 = vld [vmem:[%s2430 + $0x160] sm:$0xff]
    %v3671 = vld [vmem:[%s2430 + $0x168] sm:$0xff]
    %v3672 = vld [vmem:[%s2430 + $0x170] sm:$0xff]
    %v3673 = vld [vmem:[%s2430 + $0x178] sm:$0xff]
    %v3674 = vld [vmem:[%s2479] sm:$0x7]
    %v3676 = vrot.slane %v3624, 4
    %v3679 = vlaneseq
    %v3680 = vshrl.u32 %v3679, 7
    %v3681 = vsub.s32 0, %v3680
    %v3682 = vrot.slane %v3674, %v3681
    %v3683 = vlaneseq
    %v3684 = vshrl.u32 %v3683, 7
    %v3685 = vsub.s32 1, %v3684
    %v3686 = vrot.slane %v3674, %v3685
    %v3687 = vlaneseq
    %v3688 = vshrl.u32 %v3687, 7
    %v3689 = vsub.s32 2, %v3688
    %v3690 = vrot.slane %v3674, %v3689
    %3694 = vmatprep.subr.mxu0 %v3627
    %3695 = vmatpush1.msra.mxu0 %v3626
    %3696 = vmatprep.subr.mxu0 %v3630
    %3697 = vmatpush1.msra.mxu0 %v3629
    %3698 = vmatprep.subr.mxu0 %v3633
    %3699 = vmatpush1.msra.mxu0 %v3632
    %3700 = vmatprep.subr.mxu0 %v3636
    %3701 = vmatpush1.msra.mxu0 %v3635
    %3702 = vmatprep.subr.mxu0 %v3639
    %3703 = vmatpush1.msra.mxu0 %v3638
    %3704 = vmatprep.subr.mxu0 %v3642
    %3705 = vmatpush1.msra.mxu0 %v3641
    %3706 = vmatprep.subr.mxu0 %v3645
    %3707 = vmatpush1.msra.mxu0 %v3644
    %3708 = vmatprep.subr.mxu0 %v3648
    %3709 = vmatpush1.msra.mxu0 %v3647
    %3710 = vmatprep.subr.mxu0 %v3651
    %3711 = vmatpush1.msra.mxu0 %v3650
    %3712 = vmatprep.subr.mxu0 %v3654
    %3713 = vmatpush1.msra.mxu0 %v3653
    %3714 = vmatprep.subr.mxu0 %v3657
    %3715 = vmatpush1.msra.mxu0 %v3656
    %3716 = vmatprep.subr.mxu0 %v3660
    %3717 = vmatpush1.msra.mxu0 %v3659
    %3718 = vmatprep.subr.mxu0 %v3663
    %3719 = vmatpush1.msra.mxu0 %v3662
    %3720 = vmatprep.subr.mxu0 %v3666
    %3721 = vmatpush1.msra.mxu0 %v3665
    %3722 = vmatprep.subr.mxu0 %v3669
    %3723 = vmatpush1.msra.mxu0 %v3668
    %3724 = vmatprep.subr.mxu0 %v3672
    %3725 = vmatpush1.msra.mxu0 %v3671
    %3726 = vmatprep.subr.mxu0 0.0
    %3727 = vmatpush1.msra.mxu0 0.0
    %3728 = vmatprep.subr.mxu0 0.0
    %3729 = vmatpush1.msra.mxu0 0.0
    %3730 = vmatprep.subr.mxu0 0.0
    %3731 = vmatpush1.msra.mxu0 0.0
    %3732 = vmatprep.subr.mxu0 0.0
    %3733 = vmatpush1.msra.mxu0 0.0
    %3734 = vmatprep.subr.mxu0 0.0
    %3735 = vmatpush1.msra.mxu0 0.0
    %3736 = vmatprep.subr.mxu0 0.0
    %3737 = vmatpush1.msra.mxu0 0.0
    %3738 = vmatprep.subr.mxu0 0.0
    %3739 = vmatpush1.msra.mxu0 0.0
    %3740 = vmatprep.subr.mxu0 0.0
    %3741 = vmatpush1.msra.mxu0 0.0
    %3742 = vmatprep.subr.mxu0 0.0
    %3743 = vmatpush1.msra.mxu0 0.0
    %3744 = vmatprep.subr.mxu0 0.0
    %3745 = vmatpush1.msra.mxu0 0.0
    %3746 = vmatprep.subr.mxu0 0.0
    %3747 = vmatpush1.msra.mxu0 0.0
    %3748 = vmatprep.subr.mxu0 0.0
    %3749 = vmatpush1.msra.mxu0 0.0
    %3750 = vmatprep.subr.mxu0 0.0
    %3751 = vmatpush1.msra.mxu0 0.0
    %3752 = vmatprep.subr.mxu0 0.0
    %3753 = vmatpush1.msra.mxu0 0.0
    %3754 = vmatprep.subr.mxu0 0.0
    %3755 = vmatpush1.msra.mxu0 0.0
    %3756 = vmatprep.subr.mxu0 0.0
    %3757 = vmatpush1.msra.mxu0 0.0
    %3758 = vmatprep.mubr.f32.mxu0 0.0
    %3759 = vmatmul.mubr.f32.gmra.mrb[0].mxu0 %v3676
    %v3760 = vpop.f32.mrb[0].mxu0
    %v3761 = vadd.f32 %v3682, %v3760
    %v3762 = vpop.f32.mrb[0].mxu0
    %v3763 = vadd.f32 %v3686, %v3762
    %3764 = vdwg.mxu0
    %3765 = vmatprep.subr.mxu0 0.0
    %3766 = vmatpush1.msra.mxu0 %v3628
    %3767 = vmatprep.subr.mxu0 0.0
    %3768 = vmatpush1.msra.mxu0 %v3631
    %3769 = vmatprep.subr.mxu0 0.0
    %3770 = vmatpush1.msra.mxu0 %v3634
    %3771 = vmatprep.subr.mxu0 0.0
    %3772 = vmatpush1.msra.mxu0 %v3637
    %3773 = vmatprep.subr.mxu0 0.0
    %3774 = vmatpush1.msra.mxu0 %v3640
    %3775 = vmatprep.subr.mxu0 0.0
    %3776 = vmatpush1.msra.mxu0 %v3643
    %3777 = vmatprep.subr.mxu0 0.0
    %3778 = vmatpush1.msra.mxu0 %v3646
    %3779 = vmatprep.subr.mxu0 0.0
    %3780 = vmatpush1.msra.mxu0 %v3649
    %3781 = vmatprep.subr.mxu0 0.0
    %3782 = vmatpush1.msra.mxu0 %v3652
    %3783 = vmatprep.subr.mxu0 0.0
    %3784 = vmatpush1.msra.mxu0 %v3655
    %3785 = vmatprep.subr.mxu0 0.0
    %3786 = vmatpush1.msra.mxu0 %v3658
    %3787 = vmatprep.subr.mxu0 0.0
    %3788 = vmatpush1.msra.mxu0 %v3661
    %3789 = vmatprep.subr.mxu0 0.0
    %3790 = vmatpush1.msra.mxu0 %v3664
    %3791 = vmatprep.subr.mxu0 0.0
    %3792 = vmatpush1.msra.mxu0 %v3667
    %3793 = vmatprep.subr.mxu0 0.0
    %3794 = vmatpush1.msra.mxu0 %v3670
    %3795 = vmatprep.subr.mxu0 0.0
    %3796 = vmatpush1.msra.mxu0 %v3673
    %3797 = vmatprep.subr.mxu0 0.0
    %3798 = vmatpush1.msra.mxu0 0.0
    %3799 = vmatprep.subr.mxu0 0.0
    %3800 = vmatpush1.msra.mxu0 0.0
    %3801 = vmatprep.subr.mxu0 0.0
    %3802 = vmatpush1.msra.mxu0 0.0
    %3803 = vmatprep.subr.mxu0 0.0
    %3804 = vmatpush1.msra.mxu0 0.0
    %3805 = vmatprep.subr.mxu0 0.0
    %3806 = vmatpush1.msra.mxu0 0.0
    %3807 = vmatprep.subr.mxu0 0.0
    %3808 = vmatpush1.msra.mxu0 0.0
    %3809 = vmatprep.subr.mxu0 0.0
    %3810 = vmatpush1.msra.mxu0 0.0
    %3811 = vmatprep.subr.mxu0 0.0
    %3812 = vmatpush1.msra.mxu0 0.0
    %3813 = vmatprep.subr.mxu0 0.0
    %3814 = vmatpush1.msra.mxu0 0.0
    %3815 = vmatprep.subr.mxu0 0.0
    %3816 = vmatpush1.msra.mxu0 0.0
    %3817 = vmatprep.subr.mxu0 0.0
    %3818 = vmatpush1.msra.mxu0 0.0
    %3819 = vmatprep.subr.mxu0 0.0
    %3820 = vmatpush1.msra.mxu0 0.0
    %3821 = vmatprep.subr.mxu0 0.0
    %3822 = vmatpush1.msra.mxu0 0.0
    %3823 = vmatprep.subr.mxu0 0.0
    %3824 = vmatpush1.msra.mxu0 0.0
    %3825 = vmatprep.subr.mxu0 0.0
    %3826 = vmatpush1.msra.mxu0 0.0
    %3827 = vmatprep.subr.mxu0 0.0
    %3828 = vmatpush1.msra.mxu0 0.0
    %3829 = vmatprep.mubr.f32.mxu0 0.0
    %3830 = vmatmul.mubr.f32.gmra.mrb[0].mxu0 %v3676
    %v3831 = vpop.f32.mrb[0].mxu0
    %v3832 = vadd.f32 %v3690, %v3831
    %v3833 = vpop.f32.mrb[0].mxu0
    %3834 = vdwg.mxu0
    %v3837 = vrot.slane %v3761, 3
    %v3838 = vrot.slane %v3763, 3
    %v3841 = vadd.f32 %v2354, %v3837
    %v3842 = vadd.f32 %v2356, %v3838
    %v3843 = vxor.u32 %v3841, 2147483648
    %v3844 = vxor.u32 %v3842, 2147483648
    %v3845 = vmul.f32 %v3843, 1.442695
    %v3846 = vpow.pop %v3845
    %v3847 = vmul.f32 %v3844, 1.442695
    %v3848 = vpow.pop %v3847
    %v3849 = vadd.f32 %v3846, 1.0
    %v3850 = vadd.f32 %v3848, 1.0
    %v3851 = vrcp.pop %v3849
    %v3852 = vmul.f32 1.0, %v3851
    %v3853 = vrcp.pop %v3850
    %v3854 = vmul.f32 1.0, %v3853
    %v3856 = vrot.slane %v3832, 3
    %v3858 = vmul.f32 %v3852, %v3856
    %v3859 = vadd.f32 %v2425, %v3858
    %v3860 = vtanh.pop %v3859
    %v3861 = vsub.f32 1.0, %v3854
    %v3862 = vmul.f32 %v3861, %v3860
    %v3863 = vrot.slane %v3624, 7
    %v3865 = vmul.f32 %v3854, %v3863
    %v3866 = vadd.f32 %v3862, %v3865
    %3867 = vst [vmem:[#allocation2] sm:$0x20] %v3866
    %v3868 = vld [vmem:[%s2430] sm:$0xff]
    %v3869 = vld [vmem:[%s2430 + $0x8] sm:$0xff]
    %v3870 = vld [vmem:[%s2430 + $0x10] sm:$0xff]
    %v3871 = vld [vmem:[%s2430 + $0x18] sm:$0xff]
    %v3872 = vld [vmem:[%s2430 + $0x20] sm:$0xff]
    %v3873 = vld [vmem:[%s2430 + $0x28] sm:$0xff]
    %v3874 = vld [vmem:[%s2430 + $0x30] sm:$0xff]
    %v3875 = vld [vmem:[%s2430 + $0x38] sm:$0xff]
    %v3876 = vld [vmem:[%s2430 + $0x40] sm:$0xff]
    %v3877 = vld [vmem:[%s2430 + $0x48] sm:$0xff]
    %v3878 = vld [vmem:[%s2430 + $0x50] sm:$0xff]
    %v3879 = vld [vmem:[%s2430 + $0x58] sm:$0xff]
    %v3880 = vld [vmem:[%s2430 + $0x60] sm:$0xff]
    %v3881 = vld [vmem:[%s2430 + $0x68] sm:$0xff]
    %v3882 = vld [vmem:[%s2430 + $0x70] sm:$0xff]
    %v3883 = vld [vmem:[%s2430 + $0x78] sm:$0xff]
    %v3884 = vld [vmem:[%s2430 + $0x80] sm:$0xff]
    %v3885 = vld [vmem:[%s2430 + $0x88] sm:$0xff]
    %v3886 = vld [vmem:[%s2430 + $0x90] sm:$0xff]
    %v3887 = vld [vmem:[%s2430 + $0x98] sm:$0xff]
    %v3888 = vld [vmem:[%s2430 + $0xa0] sm:$0xff]
    %v3889 = vld [vmem:[%s2430 + $0xa8] sm:$0xff]
    %v3890 = vld [vmem:[%s2430 + $0xb0] sm:$0xff]
    %v3891 = vld [vmem:[%s2430 + $0xb8] sm:$0xff]
    %v3892 = vld [vmem:[%s2430 + $0xc0] sm:$0xff]
    %v3893 = vld [vmem:[%s2430 + $0xc8] sm:$0xff]
    %v3894 = vld [vmem:[%s2430 + $0xd0] sm:$0xff]
    %v3895 = vld [vmem:[%s2430 + $0xd8] sm:$0xff]
    %v3896 = vld [vmem:[%s2430 + $0xe0] sm:$0xff]
    %v3897 = vld [vmem:[%s2430 + $0xe8] sm:$0xff]
    %v3898 = vld [vmem:[%s2430 + $0xf0] sm:$0xff]
    %v3899 = vld [vmem:[%s2430 + $0xf8] sm:$0xff]
    %v3900 = vld [vmem:[%s2430 + $0x100] sm:$0xff]
    %v3901 = vld [vmem:[%s2430 + $0x108] sm:$0xff]
    %v3902 = vld [vmem:[%s2430 + $0x110] sm:$0xff]
    %v3903 = vld [vmem:[%s2430 + $0x118] sm:$0xff]
    %v3904 = vld [vmem:[%s2430 + $0x120] sm:$0xff]
    %v3905 = vld [vmem:[%s2430 + $0x128] sm:$0xff]
    %v3906 = vld [vmem:[%s2430 + $0x130] sm:$0xff]
    %v3907 = vld [vmem:[%s2430 + $0x138] sm:$0xff]
    %v3908 = vld [vmem:[%s2430 + $0x140] sm:$0xff]
    %v3909 = vld [vmem:[%s2430 + $0x148] sm:$0xff]
    %v3910 = vld [vmem:[%s2430 + $0x150] sm:$0xff]
    %v3911 = vld [vmem:[%s2430 + $0x158] sm:$0xff]
    %v3912 = vld [vmem:[%s2430 + $0x160] sm:$0xff]
    %v3913 = vld [vmem:[%s2430 + $0x168] sm:$0xff]
    %v3914 = vld [vmem:[%s2430 + $0x170] sm:$0xff]
    %v3915 = vld [vmem:[%s2430 + $0x178] sm:$0xff]
    %v3916 = vld [vmem:[%s2479] sm:$0x7]
    %v3918 = vrot.slane %v3866, 5
    %v3921 = vlaneseq
    %v3922 = vshrl.u32 %v3921, 7
    %v3923 = vsub.s32 0, %v3922
    %v3924 = vrot.slane %v3916, %v3923
    %v3925 = vlaneseq
    %v3926 = vshrl.u32 %v3925, 7
    %v3927 = vsub.s32 1, %v3926
    %v3928 = vrot.slane %v3916, %v3927
    %v3929 = vlaneseq
    %v3930 = vshrl.u32 %v3929, 7
    %v3931 = vsub.s32 2, %v3930
    %v3932 = vrot.slane %v3916, %v3931
    %3936 = vmatprep.subr.mxu0 %v3869
    %3937 = vmatpush1.msra.mxu0 %v3868
    %3938 = vmatprep.subr.mxu0 %v3872
    %3939 = vmatpush1.msra.mxu0 %v3871
    %3940 = vmatprep.subr.mxu0 %v3875
    %3941 = vmatpush1.msra.mxu0 %v3874
    %3942 = vmatprep.subr.mxu0 %v3878
    %3943 = vmatpush1.msra.mxu0 %v3877
    %3944 = vmatprep.subr.mxu0 %v3881
    %3945 = vmatpush1.msra.mxu0 %v3880
    %3946 = vmatprep.subr.mxu0 %v3884
    %3947 = vmatpush1.msra.mxu0 %v3883
    %3948 = vmatprep.subr.mxu0 %v3887
    %3949 = vmatpush1.msra.mxu0 %v3886
    %3950 = vmatprep.subr.mxu0 %v3890
    %3951 = vmatpush1.msra.mxu0 %v3889
    %3952 = vmatprep.subr.mxu0 %v3893
    %3953 = vmatpush1.msra.mxu0 %v3892
    %3954 = vmatprep.subr.mxu0 %v3896
    %3955 = vmatpush1.msra.mxu0 %v3895
    %3956 = vmatprep.subr.mxu0 %v3899
    %3957 = vmatpush1.msra.mxu0 %v3898
    %3958 = vmatprep.subr.mxu0 %v3902
    %3959 = vmatpush1.msra.mxu0 %v3901
    %3960 = vmatprep.subr.mxu0 %v3905
    %3961 = vmatpush1.msra.mxu0 %v3904
    %3962 = vmatprep.subr.mxu0 %v3908
    %3963 = vmatpush1.msra.mxu0 %v3907
    %3964 = vmatprep.subr.mxu0 %v3911
    %3965 = vmatpush1.msra.mxu0 %v3910
    %3966 = vmatprep.subr.mxu0 %v3914
    %3967 = vmatpush1.msra.mxu0 %v3913
    %3968 = vmatprep.subr.mxu0 0.0
    %3969 = vmatpush1.msra.mxu0 0.0
    %3970 = vmatprep.subr.mxu0 0.0
    %3971 = vmatpush1.msra.mxu0 0.0
    %3972 = vmatprep.subr.mxu0 0.0
    %3973 = vmatpush1.msra.mxu0 0.0
    %3974 = vmatprep.subr.mxu0 0.0
    %3975 = vmatpush1.msra.mxu0 0.0
    %3976 = vmatprep.subr.mxu0 0.0
    %3977 = vmatpush1.msra.mxu0 0.0
    %3978 = vmatprep.subr.mxu0 0.0
    %3979 = vmatpush1.msra.mxu0 0.0
    %3980 = vmatprep.subr.mxu0 0.0
    %3981 = vmatpush1.msra.mxu0 0.0
    %3982 = vmatprep.subr.mxu0 0.0
    %3983 = vmatpush1.msra.mxu0 0.0
    %3984 = vmatprep.subr.mxu0 0.0
    %3985 = vmatpush1.msra.mxu0 0.0
    %3986 = vmatprep.subr.mxu0 0.0
    %3987 = vmatpush1.msra.mxu0 0.0
    %3988 = vmatprep.subr.mxu0 0.0
    %3989 = vmatpush1.msra.mxu0 0.0
    %3990 = vmatprep.subr.mxu0 0.0
    %3991 = vmatpush1.msra.mxu0 0.0
    %3992 = vmatprep.subr.mxu0 0.0
    %3993 = vmatpush1.msra.mxu0 0.0
    %3994 = vmatprep.subr.mxu0 0.0
    %3995 = vmatpush1.msra.mxu0 0.0
    %3996 = vmatprep.subr.mxu0 0.0
    %3997 = vmatpush1.msra.mxu0 0.0
    %3998 = vmatprep.subr.mxu0 0.0
    %3999 = vmatpush1.msra.mxu0 0.0
    %4000 = vmatprep.mubr.f32.mxu0 0.0
    %4001 = vmatmul.mubr.f32.gmra.mrb[0].mxu0 %v3918
    %v4002 = vpop.f32.mrb[0].mxu0
    %v4003 = vadd.f32 %v3924, %v4002
    %v4004 = vpop.f32.mrb[0].mxu0
    %v4005 = vadd.f32 %v3928, %v4004
    %4006 = vdwg.mxu0
    %4007 = vmatprep.subr.mxu0 0.0
    %4008 = vmatpush1.msra.mxu0 %v3870
    %4009 = vmatprep.subr.mxu0 0.0
    %4010 = vmatpush1.msra.mxu0 %v3873
    %4011 = vmatprep.subr.mxu0 0.0
    %4012 = vmatpush1.msra.mxu0 %v3876
    %4013 = vmatprep.subr.mxu0 0.0
    %4014 = vmatpush1.msra.mxu0 %v3879
    %4015 = vmatprep.subr.mxu0 0.0
    %4016 = vmatpush1.msra.mxu0 %v3882
    %4017 = vmatprep.subr.mxu0 0.0
    %4018 = vmatpush1.msra.mxu0 %v3885
    %4019 = vmatprep.subr.mxu0 0.0
    %4020 = vmatpush1.msra.mxu0 %v3888
    %4021 = vmatprep.subr.mxu0 0.0
    %4022 = vmatpush1.msra.mxu0 %v3891
    %4023 = vmatprep.subr.mxu0 0.0
    %4024 = vmatpush1.msra.mxu0 %v3894
    %4025 = vmatprep.subr.mxu0 0.0
    %4026 = vmatpush1.msra.mxu0 %v3897
    %4027 = vmatprep.subr.mxu0 0.0
    %4028 = vmatpush1.msra.mxu0 %v3900
    %4029 = vmatprep.subr.mxu0 0.0
    %4030 = vmatpush1.msra.mxu0 %v3903
    %4031 = vmatprep.subr.mxu0 0.0
    %4032 = vmatpush1.msra.mxu0 %v3906
    %4033 = vmatprep.subr.mxu0 0.0
    %4034 = vmatpush1.msra.mxu0 %v3909
    %4035 = vmatprep.subr.mxu0 0.0
    %4036 = vmatpush1.msra.mxu0 %v3912
    %4037 = vmatprep.subr.mxu0 0.0
    %4038 = vmatpush1.msra.mxu0 %v3915
    %4039 = vmatprep.subr.mxu0 0.0
    %4040 = vmatpush1.msra.mxu0 0.0
    %4041 = vmatprep.subr.mxu0 0.0
    %4042 = vmatpush1.msra.mxu0 0.0
    %4043 = vmatprep.subr.mxu0 0.0
    %4044 = vmatpush1.msra.mxu0 0.0
    %4045 = vmatprep.subr.mxu0 0.0
    %4046 = vmatpush1.msra.mxu0 0.0
    %4047 = vmatprep.subr.mxu0 0.0
    %4048 = vmatpush1.msra.mxu0 0.0
    %4049 = vmatprep.subr.mxu0 0.0
    %4050 = vmatpush1.msra.mxu0 0.0
    %4051 = vmatprep.subr.mxu0 0.0
    %4052 = vmatpush1.msra.mxu0 0.0
    %4053 = vmatprep.subr.mxu0 0.0
    %4054 = vmatpush1.msra.mxu0 0.0
    %4055 = vmatprep.subr.mxu0 0.0
    %4056 = vmatpush1.msra.mxu0 0.0
    %4057 = vmatprep.subr.mxu0 0.0
    %4058 = vmatpush1.msra.mxu0 0.0
    %4059 = vmatprep.subr.mxu0 0.0
    %4060 = vmatpush1.msra.mxu0 0.0
    %4061 = vmatprep.subr.mxu0 0.0
    %4062 = vmatpush1.msra.mxu0 0.0
    %4063 = vmatprep.subr.mxu0 0.0
    %4064 = vmatpush1.msra.mxu0 0.0
    %4065 = vmatprep.subr.mxu0 0.0
    %4066 = vmatpush1.msra.mxu0 0.0
    %4067 = vmatprep.subr.mxu0 0.0
    %4068 = vmatpush1.msra.mxu0 0.0
    %4069 = vmatprep.subr.mxu0 0.0
    %4070 = vmatpush1.msra.mxu0 0.0
    %4071 = vmatprep.mubr.f32.mxu0 0.0
    %4072 = vmatmul.mubr.f32.gmra.mrb[0].mxu0 %v3918
    %v4073 = vpop.f32.mrb[0].mxu0
    %v4074 = vadd.f32 %v3932, %v4073
    %v4075 = vpop.f32.mrb[0].mxu0
    %4076 = vdwg.mxu0
    %v4079 = vrot.slane %v4003, 2
    %v4080 = vrot.slane %v4005, 2
    %v4083 = vadd.f32 %v2354, %v4079
    %v4084 = vadd.f32 %v2356, %v4080
    %v4085 = vxor.u32 %v4083, 2147483648
    %v4086 = vxor.u32 %v4084, 2147483648
    %v4087 = vmul.f32 %v4085, 1.442695
    %v4088 = vpow.pop %v4087
    %v4089 = vmul.f32 %v4086, 1.442695
    %v4090 = vpow.pop %v4089
    %v4091 = vadd.f32 %v4088, 1.0
    %v4092 = vadd.f32 %v4090, 1.0
    %v4093 = vrcp.pop %v4091
    %v4094 = vmul.f32 1.0, %v4093
    %v4095 = vrcp.pop %v4092
    %v4096 = vmul.f32 1.0, %v4095
    %v4098 = vrot.slane %v4074, 2
    %v4100 = vmul.f32 %v4094, %v4098
    %v4101 = vadd.f32 %v2425, %v4100
    %v4102 = vtanh.pop %v4101
    %v4103 = vsub.f32 1.0, %v4096
    %v4104 = vmul.f32 %v4103, %v4102
    %v4105 = vrot.slane %v3866, 7
    %v4107 = vmul.f32 %v4096, %v4105
    %v4108 = vadd.f32 %v4104, %v4107
    %4109 = vst [vmem:[#allocation2] sm:$0x40] %v4108
    %v4110 = vld [vmem:[%s2430] sm:$0xff]
    %v4111 = vld [vmem:[%s2430 + $0x8] sm:$0xff]
    %v4112 = vld [vmem:[%s2430 + $0x10] sm:$0xff]
    %v4113 = vld [vmem:[%s2430 + $0x18] sm:$0xff]
    %v4114 = vld [vmem:[%s2430 + $0x20] sm:$0xff]
    %v4115 = vld [vmem:[%s2430 + $0x28] sm:$0xff]
    %v4116 = vld [vmem:[%s2430 + $0x30] sm:$0xff]
    %v4117 = vld [vmem:[%s2430 + $0x38] sm:$0xff]
    %v4118 = vld [vmem:[%s2430 + $0x40] sm:$0xff]
    %v4119 = vld [vmem:[%s2430 + $0x48] sm:$0xff]
    %v4120 = vld [vmem:[%s2430 + $0x50] sm:$0xff]
    %v4121 = vld [vmem:[%s2430 + $0x58] sm:$0xff]
    %v4122 = vld [vmem:[%s2430 + $0x60] sm:$0xff]
    %v4123 = vld [vmem:[%s2430 + $0x68] sm:$0xff]
    %v4124 = vld [vmem:[%s2430 + $0x70] sm:$0xff]
    %v4125 = vld [vmem:[%s2430 + $0x78] sm:$0xff]
    %v4126 = vld [vmem:[%s2430 + $0x80] sm:$0xff]
    %v4127 = vld [vmem:[%s2430 + $0x88] sm:$0xff]
    %v4128 = vld [vmem:[%s2430 + $0x90] sm:$0xff]
    %v4129 = vld [vmem:[%s2430 + $0x98] sm:$0xff]
    %v4130 = vld [vmem:[%s2430 + $0xa0] sm:$0xff]
    %v4131 = vld [vmem:[%s2430 + $0xa8] sm:$0xff]
    %v4132 = vld [vmem:[%s2430 + $0xb0] sm:$0xff]
    %v4133 = vld [vmem:[%s2430 + $0xb8] sm:$0xff]
    %v4134 = vld [vmem:[%s2430 + $0xc0] sm:$0xff]
    %v4135 = vld [vmem:[%s2430 + $0xc8] sm:$0xff]
    %v4136 = vld [vmem:[%s2430 + $0xd0] sm:$0xff]
    %v4137 = vld [vmem:[%s2430 + $0xd8] sm:$0xff]
    %v4138 = vld [vmem:[%s2430 + $0xe0] sm:$0xff]
    %v4139 = vld [vmem:[%s2430 + $0xe8] sm:$0xff]
    %v4140 = vld [vmem:[%s2430 + $0xf0] sm:$0xff]
    %v4141 = vld [vmem:[%s2430 + $0xf8] sm:$0xff]
    %v4142 = vld [vmem:[%s2430 + $0x100] sm:$0xff]
    %v4143 = vld [vmem:[%s2430 + $0x108] sm:$0xff]
    %v4144 = vld [vmem:[%s2430 + $0x110] sm:$0xff]
    %v4145 = vld [vmem:[%s2430 + $0x118] sm:$0xff]
    %v4146 = vld [vmem:[%s2430 + $0x120] sm:$0xff]
    %v4147 = vld [vmem:[%s2430 + $0x128] sm:$0xff]
    %v4148 = vld [vmem:[%s2430 + $0x130] sm:$0xff]
    %v4149 = vld [vmem:[%s2430 + $0x138] sm:$0xff]
    %v4150 = vld [vmem:[%s2430 + $0x140] sm:$0xff]
    %v4151 = vld [vmem:[%s2430 + $0x148] sm:$0xff]
    %v4152 = vld [vmem:[%s2430 + $0x150] sm:$0xff]
    %v4153 = vld [vmem:[%s2430 + $0x158] sm:$0xff]
    %v4154 = vld [vmem:[%s2430 + $0x160] sm:$0xff]
    %v4155 = vld [vmem:[%s2430 + $0x168] sm:$0xff]
    %v4156 = vld [vmem:[%s2430 + $0x170] sm:$0xff]
    %v4157 = vld [vmem:[%s2430 + $0x178] sm:$0xff]
    %v4158 = vld [vmem:[%s2479] sm:$0x7]
    %v4160 = vrot.slane %v4108, 6
    %v4163 = vlaneseq
    %v4164 = vshrl.u32 %v4163, 7
    %v4165 = vsub.s32 0, %v4164
    %v4166 = vrot.slane %v4158, %v4165
    %v4167 = vlaneseq
    %v4168 = vshrl.u32 %v4167, 7
    %v4169 = vsub.s32 1, %v4168
    %v4170 = vrot.slane %v4158, %v4169
    %v4171 = vlaneseq
    %v4172 = vshrl.u32 %v4171, 7
    %v4173 = vsub.s32 2, %v4172
    %v4174 = vrot.slane %v4158, %v4173
    %4178 = vmatprep.subr.mxu0 %v4111
    %4179 = vmatpush1.msra.mxu0 %v4110
    %4180 = vmatprep.subr.mxu0 %v4114
    %4181 = vmatpush1.msra.mxu0 %v4113
    %4182 = vmatprep.subr.mxu0 %v4117
    %4183 = vmatpush1.msra.mxu0 %v4116
    %4184 = vmatprep.subr.mxu0 %v4120
    %4185 = vmatpush1.msra.mxu0 %v4119
    %4186 = vmatprep.subr.mxu0 %v4123
    %4187 = vmatpush1.msra.mxu0 %v4122
    %4188 = vmatprep.subr.mxu0 %v4126
    %4189 = vmatpush1.msra.mxu0 %v4125
    %4190 = vmatprep.subr.mxu0 %v4129
    %4191 = vmatpush1.msra.mxu0 %v4128
    %4192 = vmatprep.subr.mxu0 %v4132
    %4193 = vmatpush1.msra.mxu0 %v4131
    %4194 = vmatprep.subr.mxu0 %v4135
    %4195 = vmatpush1.msra.mxu0 %v4134
    %4196 = vmatprep.subr.mxu0 %v4138
    %4197 = vmatpush1.msra.mxu0 %v4137
    %4198 = vmatprep.subr.mxu0 %v4141
    %4199 = vmatpush1.msra.mxu0 %v4140
    %4200 = vmatprep.subr.mxu0 %v4144
    %4201 = vmatpush1.msra.mxu0 %v4143
    %4202 = vmatprep.subr.mxu0 %v4147
    %4203 = vmatpush1.msra.mxu0 %v4146
    %4204 = vmatprep.subr.mxu0 %v4150
    %4205 = vmatpush1.msra.mxu0 %v4149
    %4206 = vmatprep.subr.mxu0 %v4153
    %4207 = vmatpush1.msra.mxu0 %v4152
    %4208 = vmatprep.subr.mxu0 %v4156
    %4209 = vmatpush1.msra.mxu0 %v4155
    %4210 = vmatprep.subr.mxu0 0.0
    %4211 = vmatpush1.msra.mxu0 0.0
    %4212 = vmatprep.subr.mxu0 0.0
    %4213 = vmatpush1.msra.mxu0 0.0
    %4214 = vmatprep.subr.mxu0 0.0
    %4215 = vmatpush1.msra.mxu0 0.0
    %4216 = vmatprep.subr.mxu0 0.0
    %4217 = vmatpush1.msra.mxu0 0.0
    %4218 = vmatprep.subr.mxu0 0.0
    %4219 = vmatpush1.msra.mxu0 0.0
    %4220 = vmatprep.subr.mxu0 0.0
    %4221 = vmatpush1.msra.mxu0 0.0
    %4222 = vmatprep.subr.mxu0 0.0
    %4223 = vmatpush1.msra.mxu0 0.0
    %4224 = vmatprep.subr.mxu0 0.0
    %4225 = vmatpush1.msra.mxu0 0.0
    %4226 = vmatprep.subr.mxu0 0.0
    %4227 = vmatpush1.msra.mxu0 0.0
    %4228 = vmatprep.subr.mxu0 0.0
    %4229 = vmatpush1.msra.mxu0 0.0
    %4230 = vmatprep.subr.mxu0 0.0
    %4231 = vmatpush1.msra.mxu0 0.0
    %4232 = vmatprep.subr.mxu0 0.0
    %4233 = vmatpush1.msra.mxu0 0.0
    %4234 = vmatprep.subr.mxu0 0.0
    %4235 = vmatpush1.msra.mxu0 0.0
    %4236 = vmatprep.subr.mxu0 0.0
    %4237 = vmatpush1.msra.mxu0 0.0
    %4238 = vmatprep.subr.mxu0 0.0
    %4239 = vmatpush1.msra.mxu0 0.0
    %4240 = vmatprep.subr.mxu0 0.0
    %4241 = vmatpush1.msra.mxu0 0.0
    %4242 = vmatprep.mubr.f32.mxu0 0.0
    %4243 = vmatmul.mubr.f32.gmra.mrb[0].mxu0 %v4160
    %v4244 = vpop.f32.mrb[0].mxu0
    %v4245 = vadd.f32 %v4166, %v4244
    %v4246 = vpop.f32.mrb[0].mxu0
    %v4247 = vadd.f32 %v4170, %v4246
    %4248 = vdwg.mxu0
    %4249 = vmatprep.subr.mxu0 0.0
    %4250 = vmatpush1.msra.mxu0 %v4112
    %4251 = vmatprep.subr.mxu0 0.0
    %4252 = vmatpush1.msra.mxu0 %v4115
    %4253 = vmatprep.subr.mxu0 0.0
    %4254 = vmatpush1.msra.mxu0 %v4118
    %4255 = vmatprep.subr.mxu0 0.0
    %4256 = vmatpush1.msra.mxu0 %v4121
    %4257 = vmatprep.subr.mxu0 0.0
    %4258 = vmatpush1.msra.mxu0 %v4124
    %4259 = vmatprep.subr.mxu0 0.0
    %4260 = vmatpush1.msra.mxu0 %v4127
    %4261 = vmatprep.subr.mxu0 0.0
    %4262 = vmatpush1.msra.mxu0 %v4130
    %4263 = vmatprep.subr.mxu0 0.0
    %4264 = vmatpush1.msra.mxu0 %v4133
    %4265 = vmatprep.subr.mxu0 0.0
    %4266 = vmatpush1.msra.mxu0 %v4136
    %4267 = vmatprep.subr.mxu0 0.0
    %4268 = vmatpush1.msra.mxu0 %v4139
    %4269 = vmatprep.subr.mxu0 0.0
    %4270 = vmatpush1.msra.mxu0 %v4142
    %4271 = vmatprep.subr.mxu0 0.0
    %4272 = vmatpush1.msra.mxu0 %v4145
    %4273 = vmatprep.subr.mxu0 0.0
    %4274 = vmatpush1.msra.mxu0 %v4148
    %4275 = vmatprep.subr.mxu0 0.0
    %4276 = vmatpush1.msra.mxu0 %v4151
    %4277 = vmatprep.subr.mxu0 0.0
    %4278 = vmatpush1.msra.mxu0 %v4154
    %4279 = vmatprep.subr.mxu0 0.0
    %4280 = vmatpush1.msra.mxu0 %v4157
    %4281 = vmatprep.subr.mxu0 0.0
    %4282 = vmatpush1.msra.mxu0 0.0
    %4283 = vmatprep.subr.mxu0 0.0
    %4284 = vmatpush1.msra.mxu0 0.0
    %4285 = vmatprep.subr.mxu0 0.0
    %4286 = vmatpush1.msra.mxu0 0.0
    %4287 = vmatprep.subr.mxu0 0.0
    %4288 = vmatpush1.msra.mxu0 0.0
    %4289 = vmatprep.subr.mxu0 0.0
    %4290 = vmatpush1.msra.mxu0 0.0
    %4291 = vmatprep.subr.mxu0 0.0
    %4292 = vmatpush1.msra.mxu0 0.0
    %4293 = vmatprep.subr.mxu0 0.0
    %4294 = vmatpush1.msra.mxu0 0.0
    %4295 = vmatprep.subr.mxu0 0.0
    %4296 = vmatpush1.msra.mxu0 0.0
    %4297 = vmatprep.subr.mxu0 0.0
    %4298 = vmatpush1.msra.mxu0 0.0
    %4299 = vmatprep.subr.mxu0 0.0
    %4300 = vmatpush1.msra.mxu0 0.0
    %4301 = vmatprep.subr.mxu0 0.0
    %4302 = vmatpush1.msra.mxu0 0.0
    %4303 = vmatprep.subr.mxu0 0.0
    %4304 = vmatpush1.msra.mxu0 0.0
    %4305 = vmatprep.subr.mxu0 0.0
    %4306 = vmatpush1.msra.mxu0 0.0
    %4307 = vmatprep.subr.mxu0 0.0
    %4308 = vmatpush1.msra.mxu0 0.0
    %4309 = vmatprep.subr.mxu0 0.0
    %4310 = vmatpush1.msra.mxu0 0.0
    %4311 = vmatprep.subr.mxu0 0.0
    %4312 = vmatpush1.msra.mxu0 0.0
    %4313 = vmatprep.mubr.f32.mxu0 0.0
    %4314 = vmatmul.mubr.f32.gmra.mrb[0].mxu0 %v4160
    %v4315 = vpop.f32.mrb[0].mxu0
    %v4316 = vadd.f32 %v4174, %v4315
    %v4317 = vpop.f32.mrb[0].mxu0
    %4318 = vdwg.mxu0
    %v4321 = vrot.slane %v4245, 1
    %v4322 = vrot.slane %v4247, 1
    %v4325 = vadd.f32 %v2354, %v4321
    %v4326 = vadd.f32 %v2356, %v4322
    %v4327 = vxor.u32 %v4325, 2147483648
    %v4328 = vxor.u32 %v4326, 2147483648
    %v4329 = vmul.f32 %v4327, 1.442695
    %v4330 = vpow.pop %v4329
    %v4331 = vmul.f32 %v4328, 1.442695
    %v4332 = vpow.pop %v4331
    %v4333 = vadd.f32 %v4330, 1.0
    %v4334 = vadd.f32 %v4332, 1.0
    %v4335 = vrcp.pop %v4333
    %v4336 = vmul.f32 1.0, %v4335
    %v4337 = vrcp.pop %v4334
    %v4338 = vmul.f32 1.0, %v4337
    %v4340 = vrot.slane %v4316, 1
    %v4342 = vmul.f32 %v4336, %v4340
    %v4343 = vadd.f32 %v2425, %v4342
    %v4344 = vtanh.pop %v4343
    %v4345 = vsub.f32 1.0, %v4338
    %v4346 = vmul.f32 %v4345, %v4344
    %v4347 = vrot.slane %v4108, 7
    %v4349 = vmul.f32 %v4338, %v4347
    %v4350 = vadd.f32 %v4346, %v4349
    %4351 = vst [vmem:[#allocation2] sm:$0x80] %v4350
    %s4352 = scalar_lea.vmem [#allocation12], 1
    %4353 = vst [vmem:[%s4352 - $0x7] sm:$0x80] %v4350
    %v4354 = vld [vmem:[#allocation2] sm:$0xff]
    %v4355 = vld [vmem:[%s5] sm:$0xff]
    %v4356 = vld [vmem:[%s5 + $0x8] sm:$0xff]
    %v4357 = vld [vmem:[%s5 + $0x10] sm:$0xff]
    %v4358 = vld [vmem:[%s5 + $0x18] sm:$0xff]
    %v4359 = vld [vmem:[%s5 + $0x20] sm:$0xff]
    %v4360 = vld [vmem:[%s5 + $0x28] sm:$0xff]
    %v4361 = vld [vmem:[%s5 + $0x30] sm:$0xff]
    %v4362 = vld [vmem:[%s5 + $0x38] sm:$0xff]
    %v4363 = vld [vmem:[%s5 + $0x40] sm:$0xff]
    %v4364 = vld [vmem:[%s5 + $0x48] sm:$0xff]
    %v4365 = vld [vmem:[%s5 + $0x50] sm:$0xff]
    %v4366 = vld [vmem:[%s5 + $0x58] sm:$0xff]
    %v4367 = vld [vmem:[%s5 + $0x60] sm:$0xff]
    %v4368 = vld [vmem:[%s5 + $0x68] sm:$0xff]
    %v4369 = vld [vmem:[%s5 + $0x70] sm:$0xff]
    %v4370 = vld [vmem:[%s5 + $0x78] sm:$0xff]
    %v4371 = vld [vmem:[%s6] sm:$0x1]
    %v4373 = vlaneseq
    %v4374 = vshrl.u32 %v4373, 7
    %v4375 = vsub.s32 0, %v4374
    %v4376 = vrot.slane %v4371, %v4375
    %4378 = vmatprep.subr.mxu0 0.0
    %4379 = vmatpush1.msra.mxu0 %v4355
    %4380 = vmatprep.subr.mxu0 0.0
    %4381 = vmatpush1.msra.mxu0 %v4356
    %4382 = vmatprep.subr.mxu0 0.0
    %4383 = vmatpush1.msra.mxu0 %v4357
    %4384 = vmatprep.subr.mxu0 0.0
    %4385 = vmatpush1.msra.mxu0 %v4358
    %4386 = vmatprep.subr.mxu0 0.0
    %4387 = vmatpush1.msra.mxu0 %v4359
    %4388 = vmatprep.subr.mxu0 0.0
    %4389 = vmatpush1.msra.mxu0 %v4360
    %4390 = vmatprep.subr.mxu0 0.0
    %4391 = vmatpush1.msra.mxu0 %v4361
    %4392 = vmatprep.subr.mxu0 0.0
    %4393 = vmatpush1.msra.mxu0 %v4362
    %4394 = vmatprep.subr.mxu0 0.0
    %4395 = vmatpush1.msra.mxu0 %v4363
    %4396 = vmatprep.subr.mxu0 0.0
    %4397 = vmatpush1.msra.mxu0 %v4364
    %4398 = vmatprep.subr.mxu0 0.0
    %4399 = vmatpush1.msra.mxu0 %v4365
    %4400 = vmatprep.subr.mxu0 0.0
    %4401 = vmatpush1.msra.mxu0 %v4366
    %4402 = vmatprep.subr.mxu0 0.0
    %4403 = vmatpush1.msra.mxu0 %v4367
    %4404 = vmatprep.subr.mxu0 0.0
    %4405 = vmatpush1.msra.mxu0 %v4368
    %4406 = vmatprep.subr.mxu0 0.0
    %4407 = vmatpush1.msra.mxu0 %v4369
    %4408 = vmatprep.subr.mxu0 0.0
    %4409 = vmatpush1.msra.mxu0 %v4370
    %4410 = vmatprep.subr.mxu0 0.0
    %4411 = vmatpush1.msra.mxu0 0.0
    %4412 = vmatprep.subr.mxu0 0.0
    %4413 = vmatpush1.msra.mxu0 0.0
    %4414 = vmatprep.subr.mxu0 0.0
    %4415 = vmatpush1.msra.mxu0 0.0
    %4416 = vmatprep.subr.mxu0 0.0
    %4417 = vmatpush1.msra.mxu0 0.0
    %4418 = vmatprep.subr.mxu0 0.0
    %4419 = vmatpush1.msra.mxu0 0.0
    %4420 = vmatprep.subr.mxu0 0.0
    %4421 = vmatpush1.msra.mxu0 0.0
    %4422 = vmatprep.subr.mxu0 0.0
    %4423 = vmatpush1.msra.mxu0 0.0
    %4424 = vmatprep.subr.mxu0 0.0
    %4425 = vmatpush1.msra.mxu0 0.0
    %4426 = vmatprep.subr.mxu0 0.0
    %4427 = vmatpush1.msra.mxu0 0.0
    %4428 = vmatprep.subr.mxu0 0.0
    %4429 = vmatpush1.msra.mxu0 0.0
    %4430 = vmatprep.subr.mxu0 0.0
    %4431 = vmatpush1.msra.mxu0 0.0
    %4432 = vmatprep.subr.mxu0 0.0
    %4433 = vmatpush1.msra.mxu0 0.0
    %4434 = vmatprep.subr.mxu0 0.0
    %4435 = vmatpush1.msra.mxu0 0.0
    %4436 = vmatprep.subr.mxu0 0.0
    %4437 = vmatpush1.msra.mxu0 0.0
    %4438 = vmatprep.subr.mxu0 0.0
    %4439 = vmatpush1.msra.mxu0 0.0
    %4440 = vmatprep.subr.mxu0 0.0
    %4441 = vmatpush1.msra.mxu0 0.0
    %4442 = vmatprep.mubr.f32.mxu0 0.0
    %4443 = vmatmul.mubr.f32.gmra.mrb[0].mxu0 %v4354
    %v4444 = vpop.f32.mrb[0].mxu0
    %v4445 = vadd.f32 %v4376, %v4444
    %v4446 = vpop.f32.mrb[0].mxu0
    %4447 = vdwg.mxu0
    %4448 = vst [vmem:[#allocation11] sm:$0xff] %v4445
    // Predicated region
    $region50: #{rnn_forward.1} parent=1 // pred_check
      _
    $region51: #{rnn_forward.1} parent=1 // pred_check_branch
      %4450 = sbr.rel (0) target = $region53
    $region52: #{rnn_forward.1} parent=1 // pred_region
      %s4452 = ssub.s32 128, 128
      %4453 = vsyncadd [#allocation5], %s4452
      %s4455 = sshll.u32 [#allocation11], 4
      %s4456 = int_to_ptr.vmem [resolvable:$true] %s4455
      %4458 = dma.vmem_to_hbm [thread:$0]  %s4456, 128, %s8, [#allocation5]
    $region53: #{rnn_forward.1} parent=1 // pred_fallthru
      _
    // Predicated region
    $region54: #{rnn_forward.1} parent=1 // pred_check
      _
    $region55: #{rnn_forward.1} parent=1 // pred_check_branch
      %4460 = sbr.rel (0) target = $region57
    $region56: #{rnn_forward.1} parent=1 // pred_region
      %s4462 = ssub.s32 32, 32
      %4463 = vsyncadd [#allocation13], %s4462
      %s4464 = sshll.u32 [#allocation12], 4
      %s4465 = int_to_ptr.vmem [resolvable:$true] %s4464
      %4470 = dma.vmem_to_hbm [thread:$0]  %s4465, 32, %s9, [#allocation13], 16, 16, 1
    $region57: #{rnn_forward.1} parent=1 // pred_fallthru
      _
    // Predicated region
    $region58: #{rnn_forward.1} parent=1 // pred_check
      _
    $region59: #{rnn_forward.1} parent=1 // pred_check_branch
      %4472 = sbr.rel (0) target = $region61
    $region60: #{rnn_forward.1} parent=1 // pred_region
      %4473 = dma.done [#allocation5], 128
    $region61: #{rnn_forward.1} parent=1 // pred_fallthru
      _
    // Predicated region
    $region62: #{rnn_forward.1} parent=1 // pred_check
      _
    $region63: #{rnn_forward.1} parent=1 // pred_check_branch
      %4475 = sbr.rel (0) target = $region65
    $region64: #{rnn_forward.1} parent=1 // pred_region
      %4476 = dma.done [#allocation13], 32
    $region65: #{rnn_forward.1} parent=1 // pred_fallthru
      _
    %4477 = vsyncpa [#allocation4], 1
    %4478 = vsyncpa [#allocation7], 1
    %4479 = vsyncpa [#allocation10], 1
    %4480 = vsyncpa [#allocation5], 1
    %4481 = vsyncpa [#allocation13], 1

</llo_original>
